<compile_context>
chip_gen: v7x
topology: tpu7x:2x2x1
jax: 0.10.0
libtpu: 0.0.40
codegen_flags: <defaults>
</compile_context>

<pallas_src>
import functools

import jax
import jax.numpy as jnp
from jax.experimental import pallas as pl
from jax.experimental.pallas import tpu as pltpu


# ----------------------------- fused forward kernel -------------------------

def _fused_kernel(ste2_ref, ste1_ref, x_ref,
                  wq_ref, bq_ref, wk_ref, bk_ref, wv_ref, bv_ref,
                  wo1_ref, bo1_ref, wo2_ref, bo2_ref,
                  out_ref, *, num_heads, d_head, num_nodes):
    """One grid step == one batch element.

    ste2_ref: (1, Tout*N, D)  query source
    ste1_ref: (1, Tin*N,  D)  key source
    x_ref:    (1, Tin*N,  D)  value source
    out_ref:  (1, Tout*N, D)
    Rows are ordered (t, n) with n fastest (free reshape of (B, T, N, D)).
    """

    def fc(x2d, w_ref, b_ref, relu):
        y = jnp.dot(x2d, w_ref[...], preferred_element_type=jnp.float32)
        y = y + b_ref[...]
        return jnp.maximum(y, 0.0) if relu else y

    # Input FCs (ReLU).  The 1/sqrt(d) scale is already folded into wq / bq.
    q = fc(ste2_ref[0], wq_ref, bq_ref, True)      # (Tout*N, D)
    k = fc(ste1_ref[0], wk_ref, bk_ref, True)      # (Tin*N,  D)
    v = fc(x_ref[0],    wv_ref, bv_ref, True)      # (Tin*N,  D)

    rq, rk = q.shape[0], k.shape[0]

    # Block-diagonal additive mask: row (t, n) may only attend to columns
    # (s, n).  Computed once, shared by all heads.
    row_id = jax.lax.broadcasted_iota(jnp.int32, (rq, rk), 0)
    col_id = jax.lax.broadcasted_iota(jnp.int32, (rq, rk), 1)
    if num_nodes & (num_nodes - 1) == 0:           # power of two -> cheap bit-and
        row_n = jnp.bitwise_and(row_id, num_nodes - 1)
        col_n = jnp.bitwise_and(col_id, num_nodes - 1)
    else:                                          # generic (rarely taken) path
        row_n = row_id % num_nodes
        col_n = col_id % num_nodes
    mask_bias = jnp.where(row_n == col_n, 0.0, -1e30).astype(jnp.float32)

    trans_b = (((1,), (1,)), ((), ()))             # contract last dims: q @ k^T
    head_outs = []
    for h in range(num_heads):
        sl = slice(h * d_head, (h + 1) * d_head)
        qh, kh, vh = q[:, sl], k[:, sl], v[:, sl]  # static lane slices
        s = jax.lax.dot_general(qh, kh, trans_b,
                                preferred_element_type=jnp.float32)
        s = s + mask_bias
        s = s - jnp.max(s, axis=-1, keepdims=True)
        p = jnp.exp(s)                             # masked entries -> exactly 0
        p = p * pl.reciprocal(jnp.sum(p, axis=-1, keepdims=True), approx=False)
        head_outs.append(jnp.dot(p, vh, preferred_element_type=jnp.float32))
    attn = jnp.concatenate(head_outs, axis=-1)     # (Tout*N, D)

    # Output FC: units [D, D], activations [ReLU, None].
    h1 = fc(attn, wo1_ref, bo1_ref, True)
    y = fc(h1, wo2_ref, bo2_ref, False)
    out_ref[0] = y.astype(out_ref.dtype)


# ----------------------------- TransformAttention ---------------------------

def init_params(key, D):
    """Deterministic params (xavier-normal weights, zero biases)."""
    def xavier(k, din, dout):
        std = (2.0 / (din + dout)) ** 0.5
        return std * jax.random.normal(k, (din, dout), dtype=jnp.float32)

    ks = jax.random.split(key, 5)
    zeros = jnp.zeros((D,), dtype=jnp.float32)
    return {
        "wq": xavier(ks[0], D, D), "bq": zeros,
        "wk": xavier(ks[1], D, D), "bk": zeros,
        "wv": xavier(ks[2], D, D), "bv": zeros,
        "wo1": xavier(ks[3], D, D), "bo1": zeros,
        "wo2": xavier(ks[4], D, D), "bo2": zeros,
    }


def transform_attention_forward(params, x, ste1, ste2, K):
    """
    x:    (B, Tin,  N, D)
    ste1: (B, Tin,  N, D)
    ste2: (B, Tout, N, D)
    ->    (B, Tout, N, D)
    """
    B, Tin, N, D = x.shape
    Tout = ste2.shape[1]
    assert D % K == 0
    d = D // K

    # Fold the 1/sqrt(d) attention scale into the query FC
    # (relu(s * z) == s * relu(z) for s > 0).
    scale = 1.0 / (float(d) ** 0.5)
    wq = params["wq"] * scale
    bq = params["bq"] * scale

    # Free row-major metadata reshapes: (B, T, N, D) -> (B, T*N, D).
    ste2_2d = ste2.reshape(B, Tout * N, D)
    ste1_2d = ste1.reshape(B, Tin * N, D)
    x_2d = x.reshape(B, Tin * N, D)

    def act_spec(rows):
        return pl.BlockSpec((1, rows, D), lambda b: (b, 0, 0))

    w_spec = pl.BlockSpec((D, D), lambda b: (0, 0))
    b_spec = pl.BlockSpec((1, D), lambda b: (0, 0))

    kernel = functools.partial(
        _fused_kernel, num_heads=K, d_head=d, num_nodes=N)

    out = pl.pallas_call(
        kernel,
        out_shape=jax.ShapeDtypeStruct((B, Tout * N, D), x.dtype),
        grid=(B,),
        in_specs=[act_spec(Tout * N), act_spec(Tin * N), act_spec(Tin * N),
                  w_spec, b_spec,      # wq, bq
                  w_spec, b_spec,      # wk, bk
                  w_spec, b_spec,      # wv, bv
                  w_spec, b_spec,      # wo1, bo1
                  w_spec, b_spec],     # wo2, bo2
        out_specs=pl.BlockSpec((1, Tout * N, D), lambda b: (b, 0, 0)),
        compiler_params=pltpu.CompilerParams(
            dimension_semantics=("parallel",),
            vmem_limit_bytes=32 * 1024 * 1024),
    )(ste2_2d, ste1_2d, x_2d,
      wq, bq.reshape(1, D),
      params["wk"], params["bk"].reshape(1, D),
      params["wv"], params["bv"].reshape(1, D),
      params["wo1"], params["bo1"].reshape(1, D),
      params["wo2"], params["bo2"].reshape(1, D))

    return out.reshape(B, Tout, N, D)


# ----------------------------- pure-JAX reference ---------------------------

def reference_forward(params, x, ste1, ste2, K):
    B, Tin, N, D = x.shape
    Tout = ste2.shape[1]
    d = D // K

    def fc(t, w, b, relu):
        y = jnp.einsum("btnd,de->btne", t, w) + b
        return jnp.maximum(y, 0.0) if relu else y

    q = fc(ste2, params["wq"], params["bq"], True)
    k = fc(ste1, params["wk"], params["bk"], True)
    v = fc(x, params["wv"], params["bv"], True)

    def heads(t):
        return jnp.transpose(
            t.reshape(B, -1, N, K, d), (0, 2, 3, 1, 4))  # (B, N, K, T, d)

    qh, kh, vh = heads(q), heads(k), heads(v)
    s = jnp.einsum("bnkqd,bnked->bnkqe", qh, kh) / ((D / K) ** 0.5)
    a = jax.nn.softmax(s, axis=-1)
    o = jnp.einsum("bnkqe,bnked->bnkqd", a, vh)          # (B, N, K, Tout, d)
    o = jnp.transpose(o, (0, 3, 1, 2, 4)).reshape(B, Tout, N, D)
    h = fc(o, params["wo1"], params["bo1"], True)
    return fc(h, params["wo2"], params["bo2"], False)


# ----------------------------- main ------------------------------------------

if __name__ == "__main__":
    B, Tin, Tout, N, K, D = 2, 8, 8, 16, 4, 32

    root = jax.random.PRNGKey(0)
    k_params, kx, k1, k2 = jax.random.split(root, 4)
    params = init_params(k_params, D)

    x = jax.random.normal(kx, (B, Tin, N, D), dtype=jnp.float32)
    ste1 = jax.random.normal(k1, (B, Tin, N, D), dtype=jnp.float32)
    ste2 = jax.random.normal(k2, (B, Tout, N, D), dtype=jnp.float32)

    out = transform_attention_forward(params, x, ste1, ste2, K)
    out = jax.block_until_ready(out)

    ref = reference_forward(params, x, ste1, ste2, K)
    assert out.shape == (B, Tout, N, D), out.shape
    assert jnp.allclose(out, ref, rtol=1e-4, atol=1e-4), (
        float(jnp.max(jnp.abs(out - ref))))

    print("KERNEL_OK")
</pallas_src>

<mosaic_0001>
module attributes {stable_mosaic.version = 11 : i64} {
  func.func @_fused_kernel(%arg0: i32, %arg1: memref<1x128x32xf32, #tpu.memory_space<vmem>>, %arg2: memref<1x128x32xf32, #tpu.memory_space<vmem>>, %arg3: memref<1x128x32xf32, #tpu.memory_space<vmem>>, %arg4: memref<32x32xf32, #tpu.memory_space<vmem>>, %arg5: memref<1x32xf32, #tpu.memory_space<vmem>>, %arg6: memref<32x32xf32, #tpu.memory_space<vmem>>, %arg7: memref<1x32xf32, #tpu.memory_space<vmem>>, %arg8: memref<32x32xf32, #tpu.memory_space<vmem>>, %arg9: memref<1x32xf32, #tpu.memory_space<vmem>>, %arg10: memref<32x32xf32, #tpu.memory_space<vmem>>, %arg11: memref<1x32xf32, #tpu.memory_space<vmem>>, %arg12: memref<32x32xf32, #tpu.memory_space<vmem>>, %arg13: memref<1x32xf32, #tpu.memory_space<vmem>>, %arg14: memref<1x128x32xf32, #tpu.memory_space<vmem>>) attributes {dimension_semantics = [#tpu.dimension_semantics<parallel>], iteration_bounds = array<i64: 2>, scalar_prefetch = 0 : i64, scratch_operands = 0 : i64, tpu.core_type = #tpu.core_type<tc>, window_params = [{transform_indices = @transform_0, window_bounds = array<i64: 1, 128, 32>}, {transform_indices = @transform_1, window_bounds = array<i64: 1, 128, 32>}, {transform_indices = @transform_2, window_bounds = array<i64: 1, 128, 32>}, {pipeline_mode = #tpu.pipeline_mode<synchronous>, transform_indices = @transform_3, window_bounds = array<i64: 32, 32>}, {pipeline_mode = #tpu.pipeline_mode<synchronous>, transform_indices = @transform_4, window_bounds = array<i64: 1, 32>}, {pipeline_mode = #tpu.pipeline_mode<synchronous>, transform_indices = @transform_5, window_bounds = array<i64: 32, 32>}, {pipeline_mode = #tpu.pipeline_mode<synchronous>, transform_indices = @transform_6, window_bounds = array<i64: 1, 32>}, {pipeline_mode = #tpu.pipeline_mode<synchronous>, transform_indices = @transform_7, window_bounds = array<i64: 32, 32>}, {pipeline_mode = #tpu.pipeline_mode<synchronous>, transform_indices = @transform_8, window_bounds = array<i64: 1, 32>}, {pipeline_mode = #tpu.pipeline_mode<synchronous>, transform_indices = @transform_9, window_bounds = array<i64: 32, 32>}, {pipeline_mode = #tpu.pipeline_mode<synchronous>, transform_indices = @transform_10, window_bounds = array<i64: 1, 32>}, {pipeline_mode = #tpu.pipeline_mode<synchronous>, transform_indices = @transform_11, window_bounds = array<i64: 32, 32>}, {pipeline_mode = #tpu.pipeline_mode<synchronous>, transform_indices = @transform_12, window_bounds = array<i64: 1, 32>}, {transform_indices = @transform_13, window_bounds = array<i64: 1, 128, 32>}]} {
    %c0 = arith.constant 0 : index
    %c0_0 = arith.constant 0 : index
    %c0_1 = arith.constant 0 : index
    %0 = vector.load %arg1[%c0, %c0_0, %c0_1] : memref<1x128x32xf32, #tpu.memory_space<vmem>>, vector<1x128x32xf32>
    %1 = vector.shape_cast %0 : vector<1x128x32xf32> to vector<128x32xf32>
    %c0_2 = arith.constant 0 : index
    %c0_3 = arith.constant 0 : index
    %2 = vector.load %arg4[%c0_2, %c0_3] : memref<32x32xf32, #tpu.memory_space<vmem>>, vector<32x32xf32>
    %cst = arith.constant dense<0.000000e+00> : vector<128x32xf32>
    %3 = tpu.matmul %1, %2, %cst {dimension_numbers = #tpu.dot_dimension_numbers<[1], [0], [0], [1], [0, 0, 1, 1], [], []>} : vector<128x32xf32>, vector<32x32xf32>, vector<128x32xf32> -> vector<128x32xf32>
    %c0_4 = arith.constant 0 : index
    %c0_5 = arith.constant 0 : index
    %4 = vector.load %arg5[%c0_4, %c0_5] : memref<1x32xf32, #tpu.memory_space<vmem>>, vector<1x32xf32>
    %5 = vector.broadcast %4 : vector<1x32xf32> to vector<128x32xf32>
    %6 = arith.addf %3, %5 : vector<128x32xf32>
    %cst_6 = arith.constant 0.000000e+00 : f32
    %7 = vector.broadcast %cst_6 : f32 to vector<128x32xf32>
    %8 = arith.maximumf %6, %7 : vector<128x32xf32>
    %c0_7 = arith.constant 0 : index
    %c0_8 = arith.constant 0 : index
    %c0_9 = arith.constant 0 : index
    %9 = vector.load %arg2[%c0_7, %c0_8, %c0_9] : memref<1x128x32xf32, #tpu.memory_space<vmem>>, vector<1x128x32xf32>
    %10 = vector.shape_cast %9 : vector<1x128x32xf32> to vector<128x32xf32>
    %c0_10 = arith.constant 0 : index
    %c0_11 = arith.constant 0 : index
    %11 = vector.load %arg6[%c0_10, %c0_11] : memref<32x32xf32, #tpu.memory_space<vmem>>, vector<32x32xf32>
    %cst_12 = arith.constant dense<0.000000e+00> : vector<128x32xf32>
    %12 = tpu.matmul %10, %11, %cst_12 {dimension_numbers = #tpu.dot_dimension_numbers<[1], [0], [0], [1], [0, 0, 1, 1], [], []>} : vector<128x32xf32>, vector<32x32xf32>, vector<128x32xf32> -> vector<128x32xf32>
    %c0_13 = arith.constant 0 : index
    %c0_14 = arith.constant 0 : index
    %13 = vector.load %arg7[%c0_13, %c0_14] : memref<1x32xf32, #tpu.memory_space<vmem>>, vector<1x32xf32>
    %14 = vector.broadcast %13 : vector<1x32xf32> to vector<128x32xf32>
    %15 = arith.addf %12, %14 : vector<128x32xf32>
    %cst_15 = arith.constant 0.000000e+00 : f32
    %16 = vector.broadcast %cst_15 : f32 to vector<128x32xf32>
    %17 = arith.maximumf %15, %16 : vector<128x32xf32>
    %c0_16 = arith.constant 0 : index
    %c0_17 = arith.constant 0 : index
    %c0_18 = arith.constant 0 : index
    %18 = vector.load %arg3[%c0_16, %c0_17, %c0_18] : memref<1x128x32xf32, #tpu.memory_space<vmem>>, vector<1x128x32xf32>
    %19 = vector.shape_cast %18 : vector<1x128x32xf32> to vector<128x32xf32>
    %c0_19 = arith.constant 0 : index
    %c0_20 = arith.constant 0 : index
    %20 = vector.load %arg8[%c0_19, %c0_20] : memref<32x32xf32, #tpu.memory_space<vmem>>, vector<32x32xf32>
    %cst_21 = arith.constant dense<0.000000e+00> : vector<128x32xf32>
    %21 = tpu.matmul %19, %20, %cst_21 {dimension_numbers = #tpu.dot_dimension_numbers<[1], [0], [0], [1], [0, 0, 1, 1], [], []>} : vector<128x32xf32>, vector<32x32xf32>, vector<128x32xf32> -> vector<128x32xf32>
    %c0_22 = arith.constant 0 : index
    %c0_23 = arith.constant 0 : index
    %22 = vector.load %arg9[%c0_22, %c0_23] : memref<1x32xf32, #tpu.memory_space<vmem>>, vector<1x32xf32>
    %23 = vector.broadcast %22 : vector<1x32xf32> to vector<128x32xf32>
    %24 = arith.addf %21, %23 : vector<128x32xf32>
    %cst_24 = arith.constant 0.000000e+00 : f32
    %25 = vector.broadcast %cst_24 : f32 to vector<128x32xf32>
    %26 = arith.maximumf %24, %25 : vector<128x32xf32>
    %27 = tpu.iota {dimensions = array<i32: 0>} : vector<128x128xi32>
    %28 = tpu.iota {dimensions = array<i32: 1>} : vector<128x128xi32>
    %c15_i32 = arith.constant 15 : i32
    %29 = vector.broadcast %c15_i32 : i32 to vector<128x128xi32>
    %30 = arith.andi %27, %29 : vector<128x128xi32>
    %c15_i32_25 = arith.constant 15 : i32
    %31 = vector.broadcast %c15_i32_25 : i32 to vector<128x128xi32>
    %32 = arith.andi %28, %31 : vector<128x128xi32>
    %33 = arith.cmpi eq, %30, %32 : vector<128x128xi32>
    %cst_26 = arith.constant 0.000000e+00 : f32
    %cst_27 = arith.constant -1.000000e+30 : f32
    %34 = vector.broadcast %cst_26 : f32 to vector<128x128xf32>
    %35 = vector.broadcast %cst_27 : f32 to vector<128x128xf32>
    %36 = arith.select %33, %34, %35 : vector<128x128xi1>, vector<128x128xf32>
    %37 = vector.extract_strided_slice %8 {offsets = [0, 0], sizes = [128, 8], strides = [1, 1]} : vector<128x32xf32> to vector<128x8xf32>
    %38 = vector.extract_strided_slice %17 {offsets = [0, 0], sizes = [128, 8], strides = [1, 1]} : vector<128x32xf32> to vector<128x8xf32>
    %39 = vector.extract_strided_slice %26 {offsets = [0, 0], sizes = [128, 8], strides = [1, 1]} : vector<128x32xf32> to vector<128x8xf32>
    %cst_28 = arith.constant dense<0.000000e+00> : vector<128x128xf32>
    %40 = tpu.matmul %37, %38, %cst_28 {dimension_numbers = #tpu.dot_dimension_numbers<[1], [1], [0], [0], [0, 0, 1, 0], [], []>} : vector<128x8xf32>, vector<128x8xf32>, vector<128x128xf32> -> vector<128x128xf32>
    %41 = arith.addf %40, %36 : vector<128x128xf32>
    %cst_29 = arith.constant dense<0xFF800000> : vector<128xf32>
    %42 = vector.multi_reduction <maximumf>, %41, %cst_29 [1] : vector<128x128xf32> to vector<128xf32>
    %43 = vector.shape_cast %42 : vector<128xf32> to vector<128x1xf32>
    %44 = vector.broadcast %43 : vector<128x1xf32> to vector<128x128xf32>
    %45 = arith.subf %41, %44 : vector<128x128xf32>
    %46 = math.exp %45 : vector<128x128xf32>
    %cst_30 = arith.constant dense<0.000000e+00> : vector<128xf32>
    %47 = vector.multi_reduction <add>, %46, %cst_30 [1] : vector<128x128xf32> to vector<128xf32>
    %48 = vector.shape_cast %47 : vector<128xf32> to vector<128x1xf32>
    %49 = tpu.reciprocal %48 : vector<128x1xf32> -> vector<128x1xf32>
    %50 = vector.broadcast %49 : vector<128x1xf32> to vector<128x128xf32>
    %51 = arith.mulf %46, %50 : vector<128x128xf32>
    %cst_31 = arith.constant dense<0.000000e+00> : vector<128x8xf32>
    %52 = tpu.matmul %51, %39, %cst_31 {dimension_numbers = #tpu.dot_dimension_numbers<[1], [0], [0], [1], [0, 0, 1, 1], [], []>} : vector<128x128xf32>, vector<128x8xf32>, vector<128x8xf32> -> vector<128x8xf32>
    %53 = vector.extract_strided_slice %8 {offsets = [0, 8], sizes = [128, 8], strides = [1, 1]} : vector<128x32xf32> to vector<128x8xf32>
    %54 = vector.extract_strided_slice %17 {offsets = [0, 8], sizes = [128, 8], strides = [1, 1]} : vector<128x32xf32> to vector<128x8xf32>
    %55 = vector.extract_strided_slice %26 {offsets = [0, 8], sizes = [128, 8], strides = [1, 1]} : vector<128x32xf32> to vector<128x8xf32>
    %cst_32 = arith.constant dense<0.000000e+00> : vector<128x128xf32>
    %56 = tpu.matmul %53, %54, %cst_32 {dimension_numbers = #tpu.dot_dimension_numbers<[1], [1], [0], [0], [0, 0, 1, 0], [], []>} : vector<128x8xf32>, vector<128x8xf32>, vector<128x128xf32> -> vector<128x128xf32>
    %57 = arith.addf %56, %36 : vector<128x128xf32>
    %cst_33 = arith.constant dense<0xFF800000> : vector<128xf32>
    %58 = vector.multi_reduction <maximumf>, %57, %cst_33 [1] : vector<128x128xf32> to vector<128xf32>
    %59 = vector.shape_cast %58 : vector<128xf32> to vector<128x1xf32>
    %60 = vector.broadcast %59 : vector<128x1xf32> to vector<128x128xf32>
    %61 = arith.subf %57, %60 : vector<128x128xf32>
    %62 = math.exp %61 : vector<128x128xf32>
    %cst_34 = arith.constant dense<0.000000e+00> : vector<128xf32>
    %63 = vector.multi_reduction <add>, %62, %cst_34 [1] : vector<128x128xf32> to vector<128xf32>
    %64 = vector.shape_cast %63 : vector<128xf32> to vector<128x1xf32>
    %65 = tpu.reciprocal %64 : vector<128x1xf32> -> vector<128x1xf32>
    %66 = vector.broadcast %65 : vector<128x1xf32> to vector<128x128xf32>
    %67 = arith.mulf %62, %66 : vector<128x128xf32>
    %cst_35 = arith.constant dense<0.000000e+00> : vector<128x8xf32>
    %68 = tpu.matmul %67, %55, %cst_35 {dimension_numbers = #tpu.dot_dimension_numbers<[1], [0], [0], [1], [0, 0, 1, 1], [], []>} : vector<128x128xf32>, vector<128x8xf32>, vector<128x8xf32> -> vector<128x8xf32>
    %69 = vector.extract_strided_slice %8 {offsets = [0, 16], sizes = [128, 8], strides = [1, 1]} : vector<128x32xf32> to vector<128x8xf32>
    %70 = vector.extract_strided_slice %17 {offsets = [0, 16], sizes = [128, 8], strides = [1, 1]} : vector<128x32xf32> to vector<128x8xf32>
    %71 = vector.extract_strided_slice %26 {offsets = [0, 16], sizes = [128, 8], strides = [1, 1]} : vector<128x32xf32> to vector<128x8xf32>
    %cst_36 = arith.constant dense<0.000000e+00> : vector<128x128xf32>
    %72 = tpu.matmul %69, %70, %cst_36 {dimension_numbers = #tpu.dot_dimension_numbers<[1], [1], [0], [0], [0, 0, 1, 0], [], []>} : vector<128x8xf32>, vector<128x8xf32>, vector<128x128xf32> -> vector<128x128xf32>
    %73 = arith.addf %72, %36 : vector<128x128xf32>
    %cst_37 = arith.constant dense<0xFF800000> : vector<128xf32>
    %74 = vector.multi_reduction <maximumf>, %73, %cst_37 [1] : vector<128x128xf32> to vector<128xf32>
    %75 = vector.shape_cast %74 : vector<128xf32> to vector<128x1xf32>
    %76 = vector.broadcast %75 : vector<128x1xf32> to vector<128x128xf32>
    %77 = arith.subf %73, %76 : vector<128x128xf32>
    %78 = math.exp %77 : vector<128x128xf32>
    %cst_38 = arith.constant dense<0.000000e+00> : vector<128xf32>
    %79 = vector.multi_reduction <add>, %78, %cst_38 [1] : vector<128x128xf32> to vector<128xf32>
    %80 = vector.shape_cast %79 : vector<128xf32> to vector<128x1xf32>
    %81 = tpu.reciprocal %80 : vector<128x1xf32> -> vector<128x1xf32>
    %82 = vector.broadcast %81 : vector<128x1xf32> to vector<128x128xf32>
    %83 = arith.mulf %78, %82 : vector<128x128xf32>
    %cst_39 = arith.constant dense<0.000000e+00> : vector<128x8xf32>
    %84 = tpu.matmul %83, %71, %cst_39 {dimension_numbers = #tpu.dot_dimension_numbers<[1], [0], [0], [1], [0, 0, 1, 1], [], []>} : vector<128x128xf32>, vector<128x8xf32>, vector<128x8xf32> -> vector<128x8xf32>
    %85 = vector.extract_strided_slice %8 {offsets = [0, 24], sizes = [128, 8], strides = [1, 1]} : vector<128x32xf32> to vector<128x8xf32>
    %86 = vector.extract_strided_slice %17 {offsets = [0, 24], sizes = [128, 8], strides = [1, 1]} : vector<128x32xf32> to vector<128x8xf32>
    %87 = vector.extract_strided_slice %26 {offsets = [0, 24], sizes = [128, 8], strides = [1, 1]} : vector<128x32xf32> to vector<128x8xf32>
    %cst_40 = arith.constant dense<0.000000e+00> : vector<128x128xf32>
    %88 = tpu.matmul %85, %86, %cst_40 {dimension_numbers = #tpu.dot_dimension_numbers<[1], [1], [0], [0], [0, 0, 1, 0], [], []>} : vector<128x8xf32>, vector<128x8xf32>, vector<128x128xf32> -> vector<128x128xf32>
    %89 = arith.addf %88, %36 : vector<128x128xf32>
    %cst_41 = arith.constant dense<0xFF800000> : vector<128xf32>
    %90 = vector.multi_reduction <maximumf>, %89, %cst_41 [1] : vector<128x128xf32> to vector<128xf32>
    %91 = vector.shape_cast %90 : vector<128xf32> to vector<128x1xf32>
    %92 = vector.broadcast %91 : vector<128x1xf32> to vector<128x128xf32>
    %93 = arith.subf %89, %92 : vector<128x128xf32>
    %94 = math.exp %93 : vector<128x128xf32>
    %cst_42 = arith.constant dense<0.000000e+00> : vector<128xf32>
    %95 = vector.multi_reduction <add>, %94, %cst_42 [1] : vector<128x128xf32> to vector<128xf32>
    %96 = vector.shape_cast %95 : vector<128xf32> to vector<128x1xf32>
    %97 = tpu.reciprocal %96 : vector<128x1xf32> -> vector<128x1xf32>
    %98 = vector.broadcast %97 : vector<128x1xf32> to vector<128x128xf32>
    %99 = arith.mulf %94, %98 : vector<128x128xf32>
    %cst_43 = arith.constant dense<0.000000e+00> : vector<128x8xf32>
    %100 = tpu.matmul %99, %87, %cst_43 {dimension_numbers = #tpu.dot_dimension_numbers<[1], [0], [0], [1], [0, 0, 1, 1], [], []>} : vector<128x128xf32>, vector<128x8xf32>, vector<128x8xf32> -> vector<128x8xf32>
    %101 = tpu.concatenate %52, %68, %84, %100 in 1 : vector<128x8xf32>, vector<128x8xf32>, vector<128x8xf32>, vector<128x8xf32> -> vector<128x32xf32>
    %c0_44 = arith.constant 0 : index
    %c0_45 = arith.constant 0 : index
    %102 = vector.load %arg10[%c0_44, %c0_45] : memref<32x32xf32, #tpu.memory_space<vmem>>, vector<32x32xf32>
    %cst_46 = arith.constant dense<0.000000e+00> : vector<128x32xf32>
    %103 = tpu.matmul %101, %102, %cst_46 {dimension_numbers = #tpu.dot_dimension_numbers<[1], [0], [0], [1], [0, 0, 1, 1], [], []>} : vector<128x32xf32>, vector<32x32xf32>, vector<128x32xf32> -> vector<128x32xf32>
    %c0_47 = arith.constant 0 : index
    %c0_48 = arith.constant 0 : index
    %104 = vector.load %arg11[%c0_47, %c0_48] : memref<1x32xf32, #tpu.memory_space<vmem>>, vector<1x32xf32>
    %105 = vector.broadcast %104 : vector<1x32xf32> to vector<128x32xf32>
    %106 = arith.addf %103, %105 : vector<128x32xf32>
    %cst_49 = arith.constant 0.000000e+00 : f32
    %107 = vector.broadcast %cst_49 : f32 to vector<128x32xf32>
    %108 = arith.maximumf %106, %107 : vector<128x32xf32>
    %c0_50 = arith.constant 0 : index
    %c0_51 = arith.constant 0 : index
    %109 = vector.load %arg12[%c0_50, %c0_51] : memref<32x32xf32, #tpu.memory_space<vmem>>, vector<32x32xf32>
    %cst_52 = arith.constant dense<0.000000e+00> : vector<128x32xf32>
    %110 = tpu.matmul %108, %109, %cst_52 {dimension_numbers = #tpu.dot_dimension_numbers<[1], [0], [0], [1], [0, 0, 1, 1], [], []>} : vector<128x32xf32>, vector<32x32xf32>, vector<128x32xf32> -> vector<128x32xf32>
    %c0_53 = arith.constant 0 : index
    %c0_54 = arith.constant 0 : index
    %111 = vector.load %arg13[%c0_53, %c0_54] : memref<1x32xf32, #tpu.memory_space<vmem>>, vector<1x32xf32>
    %112 = vector.broadcast %111 : vector<1x32xf32> to vector<128x32xf32>
    %113 = arith.addf %110, %112 : vector<128x32xf32>
    %c0_55 = arith.constant 0 : index
    %c0_56 = arith.constant 0 : index
    %c0_57 = arith.constant 0 : index
    %114 = vector.load %arg14[%c0_55, %c0_56, %c0_57] : memref<1x128x32xf32, #tpu.memory_space<vmem>>, vector<1x128x32xf32>
    %115 = vector.shape_cast %114 : vector<1x128x32xf32> to vector<128x32xf32>
    %116 = vector.shape_cast %113 : vector<128x32xf32> to vector<1x128x32xf32>
    tpu.vector_store %arg14[%c0_55, %c0_56, %c0_57], %116 {strides = array<i32>} : memref<1x128x32xf32, #tpu.memory_space<vmem>>, vector<1x128x32xf32>,
    return
  }
  func.func @transform_0(%arg0: i32) -> (i32, i32, i32) {
    %c0_i32 = arith.constant 0 : i32
    %c0_i32_0 = arith.constant 0 : i32
    %c0_i32_1 = arith.constant 0 : i32
    return %arg0, %c0_i32, %c0_i32_0 : i32, i32, i32
  }
  func.func @transform_1(%arg0: i32) -> (i32, i32, i32) {
    %c0_i32 = arith.constant 0 : i32
    %c0_i32_0 = arith.constant 0 : i32
    %c0_i32_1 = arith.constant 0 : i32
    return %arg0, %c0_i32, %c0_i32_0 : i32, i32, i32
  }
  func.func @transform_2(%arg0: i32) -> (i32, i32, i32) {
    %c0_i32 = arith.constant 0 : i32
    %c0_i32_0 = arith.constant 0 : i32
    %c0_i32_1 = arith.constant 0 : i32
    return %arg0, %c0_i32, %c0_i32_0 : i32, i32, i32
  }
  func.func @transform_3(%arg0: i32) -> (i32, i32) {
    %c0_i32 = arith.constant 0 : i32
    %c0_i32_0 = arith.constant 0 : i32
    %c0_i32_1 = arith.constant 0 : i32
    return %c0_i32, %c0_i32_0 : i32, i32
  }
  func.func @transform_4(%arg0: i32) -> (i32, i32) {
    %c0_i32 = arith.constant 0 : i32
    %c0_i32_0 = arith.constant 0 : i32
    %c0_i32_1 = arith.constant 0 : i32
    return %c0_i32, %c0_i32_0 : i32, i32
  }
  func.func @transform_5(%arg0: i32) -> (i32, i32) {
    %c0_i32 = arith.constant 0 : i32
    %c0_i32_0 = arith.constant 0 : i32
    %c0_i32_1 = arith.constant 0 : i32
    return %c0_i32, %c0_i32_0 : i32, i32
  }
  func.func @transform_6(%arg0: i32) -> (i32, i32) {
    %c0_i32 = arith.constant 0 : i32
    %c0_i32_0 = arith.constant 0 : i32
    %c0_i32_1 = arith.constant 0 : i32
    return %c0_i32, %c0_i32_0 : i32, i32
  }
  func.func @transform_7(%arg0: i32) -> (i32, i32) {
    %c0_i32 = arith.constant 0 : i32
    %c0_i32_0 = arith.constant 0 : i32
    %c0_i32_1 = arith.constant 0 : i32
    return %c0_i32, %c0_i32_0 : i32, i32
  }
  func.func @transform_8(%arg0: i32) -> (i32, i32) {
    %c0_i32 = arith.constant 0 : i32
    %c0_i32_0 = arith.constant 0 : i32
    %c0_i32_1 = arith.constant 0 : i32
    return %c0_i32, %c0_i32_0 : i32, i32
  }
  func.func @transform_9(%arg0: i32) -> (i32, i32) {
    %c0_i32 = arith.constant 0 : i32
    %c0_i32_0 = arith.constant 0 : i32
    %c0_i32_1 = arith.constant 0 : i32
    return %c0_i32, %c0_i32_0 : i32, i32
  }
  func.func @transform_10(%arg0: i32) -> (i32, i32) {
    %c0_i32 = arith.constant 0 : i32
    %c0_i32_0 = arith.constant 0 : i32
    %c0_i32_1 = arith.constant 0 : i32
    return %c0_i32, %c0_i32_0 : i32, i32
  }
  func.func @transform_11(%arg0: i32) -> (i32, i32) {
    %c0_i32 = arith.constant 0 : i32
    %c0_i32_0 = arith.constant 0 : i32
    %c0_i32_1 = arith.constant 0 : i32
    return %c0_i32, %c0_i32_0 : i32, i32
  }
  func.func @transform_12(%arg0: i32) -> (i32, i32) {
    %c0_i32 = arith.constant 0 : i32
    %c0_i32_0 = arith.constant 0 : i32
    %c0_i32_1 = arith.constant 0 : i32
    return %c0_i32, %c0_i32_0 : i32, i32
  }
  func.func @transform_13(%arg0: i32) -> (i32, i32, i32) {
    %c0_i32 = arith.constant 0 : i32
    %c0_i32_0 = arith.constant 0 : i32
    %c0_i32_1 = arith.constant 0 : i32
    return %arg0, %c0_i32, %c0_i32_0 : i32, i32, i32
  }
}

</mosaic_0001>

<llo_original>
// kernel: tpu_custom_call.1
$region0: #{tpu_custom_call.1}
  #allocation0 [shape = 'u32[]', space=smem, size = 0x4, offset = 0x4, fixed_abs, tag = 'smem constant byte address 0x4 - core index']
  #allocation1 [shape = 'u32[144,128]{1,0:T(1,128)}', space=vmem, size = 0x12000, scoped, tag = 'internal scratch']
  %s0 = inlined_call_operand.vmem [shape: f32[2,128,32], index: 0, kind: input, shape index: {}]
  %s1 = inlined_call_operand.vmem [shape: f32[2,128,32], index: 1, kind: input, shape index: {}]
  %s2 = inlined_call_operand.vmem [shape: f32[2,128,32], index: 2, kind: input, shape index: {}]
  %s3 = inlined_call_operand.vmem [shape: f32[32,32], index: 3, kind: input, shape index: {}]
  %s4 = inlined_call_operand.vmem [shape: f32[1,32], index: 4, kind: input, shape index: {}]
  %s5 = inlined_call_operand.vmem [shape: f32[32,32], index: 5, kind: input, shape index: {}]
  %s6 = inlined_call_operand.vmem [shape: f32[1,32], index: 6, kind: input, shape index: {}]
  %s7 = inlined_call_operand.vmem [shape: f32[32,32], index: 7, kind: input, shape index: {}]
  %s8 = inlined_call_operand.vmem [shape: f32[1,32], index: 8, kind: input, shape index: {}]
  %s9 = inlined_call_operand.vmem [shape: f32[32,32], index: 9, kind: input, shape index: {}]
  %s10 = inlined_call_operand.vmem [shape: f32[1,32], index: 10, kind: input, shape index: {}]
  %s11 = inlined_call_operand.vmem [shape: f32[32,32], index: 11, kind: input, shape index: {}]
  %s12 = inlined_call_operand.vmem [shape: f32[1,32], index: 12, kind: input, shape index: {}]
  %s13 = inlined_call_operand.vmem [shape: f32[2,128,32], index: 13, kind: output, shape index: {}]
  %s14 = sld [smem:[#allocation0]]
  $region85: #{tpu_custom_call.1} parent=0
    _
  %s16 = ssub.s32 1, %s14
  %s17 = scalar_select 0, %s16, %s14
  loop: start=0, step=1, limit=4
  $region2: #{tpu_custom_call.1} parent=0 // loop_pre_header
    _
  $region3: #{tpu_custom_call.1} parent=0 // loop_header
    %s19 = sphi 0, %s23
    %p20 = scmp.ge.s32.totalorder %s19, 4
    %s29 = sphi 0, %s31
    %s32 = sphi 0, %s29
    %s33 = sphi 0, %s32
    %s49 = sphi 0, %s33
    %s55 = sphi 0, %s57
    %s58 = sphi 0, %s55
    %s59 = sphi 0, %s58
    %s75 = sphi 0, %s59
    %s81 = sphi 0, %s83
    %s84 = sphi 0, %s81
    %s85 = sphi 0, %s84
    %s101 = sphi 0, %s85
    %s105 = sphi 0, %s105
    %s107 = sphi 0, %s105
    %s108 = sphi 0, %s107
    %s122 = sphi 0, %s108
    %s126 = sphi 0, %s126
    %s128 = sphi 0, %s126
    %s129 = sphi 0, %s128
    %s143 = sphi 0, %s129
    %s147 = sphi 0, %s147
    %s149 = sphi 0, %s147
    %s150 = sphi 0, %s149
    %s164 = sphi 0, %s150
    %s168 = sphi 0, %s168
    %s170 = sphi 0, %s168
    %s171 = sphi 0, %s170
    %s185 = sphi 0, %s171
    %s189 = sphi 0, %s189
    %s191 = sphi 0, %s189
    %s192 = sphi 0, %s191
    %s206 = sphi 0, %s192
    %s210 = sphi 0, %s210
    %s212 = sphi 0, %s210
    %s213 = sphi 0, %s212
    %s227 = sphi 0, %s213
    %s231 = sphi 0, %s231
    %s233 = sphi 0, %s231
    %s234 = sphi 0, %s233
    %s248 = sphi 0, %s234
    %s252 = sphi 0, %s252
    %s254 = sphi 0, %s252
    %s255 = sphi 0, %s254
    %s269 = sphi 0, %s255
    %s273 = sphi 0, %s273
    %s275 = sphi 0, %s273
    %s276 = sphi 0, %s275
    %s290 = sphi 0, %s276
    %s294 = sphi 0, %s294
    %s296 = sphi 0, %s294
    %s297 = sphi 0, %s296
    %s311 = sphi 0, %s297
    %s317 = sphi 0, %s319
    %s320 = sphi 0, %s317
    %s321 = sphi 0, %s320
    %s337 = sphi 0, %s321
  $region4: #{tpu_custom_call.1} parent=0 // loop_header_branch
    %22 = sbr.rel (%p20) target = $region8
  $region5: #{tpu_custom_call.1} parent=0 // loop_body
    %s24 = ssub.s32 %s19, 1
    %s25 = ssub.s32 %s19, 2
    %s26 = sadd.s32 %s19, 1
    %s27 = ssub.s32 %s19, %s26
    %p28 = scmp.eq.s32.totalorder %s27, 0
    %s30 = sadd.s32 %s29, 1
    %s31 = scalar_select %p28, %s29, %s30
    %p34 = pneg %p28
    %p35 = scmp.eq.s32.totalorder %s19, 1
    %p36 = por %p34, %p35
    %p37 = scmp.ne.s32.totalorder %s29, %s32
    %p38 = scmp.eq.s32.totalorder %s19, 0
    %p39 = por %p37, %p38
    %p40 = scmp.ne.s32.totalorder %s29, %s32
    %p41 = scmp.eq.s32.totalorder %s24, 1
    %p42 = por %p40, %p41
    %p43 = scmp.ne.s32.totalorder %s32, %s33
    %p44 = scmp.eq.s32.totalorder %s24, 0
    %p45 = por %p43, %p44
    %p46 = scmp.ne.s32.totalorder %s32, %s33
    %p47 = scmp.eq.s32.totalorder %s25, 1
    %p48 = por %p46, %p47
    %p50 = scmp.ne.s32.totalorder %s33, %s49
    %p51 = scmp.eq.s32.totalorder %s25, 0
    %p52 = por %p50, %p51
    %s53 = ssub.s32 %s19, %s26
    %p54 = scmp.eq.s32.totalorder %s53, 0
    %s56 = sadd.s32 %s55, 1
    %s57 = scalar_select %p54, %s55, %s56
    %p60 = pneg %p54
    %p61 = scmp.eq.s32.totalorder %s19, 1
    %p62 = por %p60, %p61
    %p63 = scmp.ne.s32.totalorder %s55, %s58
    %p64 = scmp.eq.s32.totalorder %s19, 0
    %p65 = por %p63, %p64
    %p66 = scmp.ne.s32.totalorder %s55, %s58
    %p67 = scmp.eq.s32.totalorder %s24, 1
    %p68 = por %p66, %p67
    %p69 = scmp.ne.s32.totalorder %s58, %s59
    %p70 = scmp.eq.s32.totalorder %s24, 0
    %p71 = por %p69, %p70
    %p72 = scmp.ne.s32.totalorder %s58, %s59
    %p73 = scmp.eq.s32.totalorder %s25, 1
    %p74 = por %p72, %p73
    %p76 = scmp.ne.s32.totalorder %s59, %s75
    %p77 = scmp.eq.s32.totalorder %s25, 0
    %p78 = por %p76, %p77
    %s79 = ssub.s32 %s19, %s26
    %p80 = scmp.eq.s32.totalorder %s79, 0
    %s82 = sadd.s32 %s81, 1
    %s83 = scalar_select %p80, %s81, %s82
    %p86 = pneg %p80
    %p87 = scmp.eq.s32.totalorder %s19, 1
    %p88 = por %p86, %p87
    %p89 = scmp.ne.s32.totalorder %s81, %s84
    %p90 = scmp.eq.s32.totalorder %s19, 0
    %p91 = por %p89, %p90
    %p92 = scmp.ne.s32.totalorder %s81, %s84
    %p93 = scmp.eq.s32.totalorder %s24, 1
    %p94 = por %p92, %p93
    %p95 = scmp.ne.s32.totalorder %s84, %s85
    %p96 = scmp.eq.s32.totalorder %s24, 0
    %p97 = por %p95, %p96
    %p98 = scmp.ne.s32.totalorder %s84, %s85
    %p99 = scmp.eq.s32.totalorder %s25, 1
    %p100 = por %p98, %p99
    %p102 = scmp.ne.s32.totalorder %s85, %s101
    %p103 = scmp.eq.s32.totalorder %s25, 0
    %p104 = por %p102, %p103
    %s106 = sadd.s32 %s105, 1
    %p109 = scmp.eq.s32.totalorder %s19, 1
    %p110 = scmp.ne.s32.totalorder %s105, %s107
    %p111 = scmp.eq.s32.totalorder %s19, 0
    %p112 = por %p110, %p111
    %p113 = scmp.ne.s32.totalorder %s105, %s107
    %p114 = scmp.eq.s32.totalorder %s24, 1
    %p115 = por %p113, %p114
    %p116 = scmp.ne.s32.totalorder %s107, %s108
    %p117 = scmp.eq.s32.totalorder %s24, 0
    %p118 = por %p116, %p117
    %p119 = scmp.ne.s32.totalorder %s107, %s108
    %p120 = scmp.eq.s32.totalorder %s25, 1
    %p121 = por %p119, %p120
    %p123 = scmp.ne.s32.totalorder %s108, %s122
    %p124 = scmp.eq.s32.totalorder %s25, 0
    %p125 = por %p123, %p124
    %s127 = sadd.s32 %s126, 1
    %p130 = scmp.eq.s32.totalorder %s19, 1
    %p131 = scmp.ne.s32.totalorder %s126, %s128
    %p132 = scmp.eq.s32.totalorder %s19, 0
    %p133 = por %p131, %p132
    %p134 = scmp.ne.s32.totalorder %s126, %s128
    %p135 = scmp.eq.s32.totalorder %s24, 1
    %p136 = por %p134, %p135
    %p137 = scmp.ne.s32.totalorder %s128, %s129
    %p138 = scmp.eq.s32.totalorder %s24, 0
    %p139 = por %p137, %p138
    %p140 = scmp.ne.s32.totalorder %s128, %s129
    %p141 = scmp.eq.s32.totalorder %s25, 1
    %p142 = por %p140, %p141
    %p144 = scmp.ne.s32.totalorder %s129, %s143
    %p145 = scmp.eq.s32.totalorder %s25, 0
    %p146 = por %p144, %p145
    %s148 = sadd.s32 %s147, 1
    %p151 = scmp.eq.s32.totalorder %s19, 1
    %p152 = scmp.ne.s32.totalorder %s147, %s149
    %p153 = scmp.eq.s32.totalorder %s19, 0
    %p154 = por %p152, %p153
    %p155 = scmp.ne.s32.totalorder %s147, %s149
    %p156 = scmp.eq.s32.totalorder %s24, 1
    %p157 = por %p155, %p156
    %p158 = scmp.ne.s32.totalorder %s149, %s150
    %p159 = scmp.eq.s32.totalorder %s24, 0
    %p160 = por %p158, %p159
    %p161 = scmp.ne.s32.totalorder %s149, %s150
    %p162 = scmp.eq.s32.totalorder %s25, 1
    %p163 = por %p161, %p162
    %p165 = scmp.ne.s32.totalorder %s150, %s164
    %p166 = scmp.eq.s32.totalorder %s25, 0
    %p167 = por %p165, %p166
    %s169 = sadd.s32 %s168, 1
    %p172 = scmp.eq.s32.totalorder %s19, 1
    %p173 = scmp.ne.s32.totalorder %s168, %s170
    %p174 = scmp.eq.s32.totalorder %s19, 0
    %p175 = por %p173, %p174
    %p176 = scmp.ne.s32.totalorder %s168, %s170
    %p177 = scmp.eq.s32.totalorder %s24, 1
    %p178 = por %p176, %p177
    %p179 = scmp.ne.s32.totalorder %s170, %s171
    %p180 = scmp.eq.s32.totalorder %s24, 0
    %p181 = por %p179, %p180
    %p182 = scmp.ne.s32.totalorder %s170, %s171
    %p183 = scmp.eq.s32.totalorder %s25, 1
    %p184 = por %p182, %p183
    %p186 = scmp.ne.s32.totalorder %s171, %s185
    %p187 = scmp.eq.s32.totalorder %s25, 0
    %p188 = por %p186, %p187
    %s190 = sadd.s32 %s189, 1
    %p193 = scmp.eq.s32.totalorder %s19, 1
    %p194 = scmp.ne.s32.totalorder %s189, %s191
    %p195 = scmp.eq.s32.totalorder %s19, 0
    %p196 = por %p194, %p195
    %p197 = scmp.ne.s32.totalorder %s189, %s191
    %p198 = scmp.eq.s32.totalorder %s24, 1
    %p199 = por %p197, %p198
    %p200 = scmp.ne.s32.totalorder %s191, %s192
    %p201 = scmp.eq.s32.totalorder %s24, 0
    %p202 = por %p200, %p201
    %p203 = scmp.ne.s32.totalorder %s191, %s192
    %p204 = scmp.eq.s32.totalorder %s25, 1
    %p205 = por %p203, %p204
    %p207 = scmp.ne.s32.totalorder %s192, %s206
    %p208 = scmp.eq.s32.totalorder %s25, 0
    %p209 = por %p207, %p208
    %s211 = sadd.s32 %s210, 1
    %p214 = scmp.eq.s32.totalorder %s19, 1
    %p215 = scmp.ne.s32.totalorder %s210, %s212
    %p216 = scmp.eq.s32.totalorder %s19, 0
    %p217 = por %p215, %p216
    %p218 = scmp.ne.s32.totalorder %s210, %s212
    %p219 = scmp.eq.s32.totalorder %s24, 1
    %p220 = por %p218, %p219
    %p221 = scmp.ne.s32.totalorder %s212, %s213
    %p222 = scmp.eq.s32.totalorder %s24, 0
    %p223 = por %p221, %p222
    %p224 = scmp.ne.s32.totalorder %s212, %s213
    %p225 = scmp.eq.s32.totalorder %s25, 1
    %p226 = por %p224, %p225
    %p228 = scmp.ne.s32.totalorder %s213, %s227
    %p229 = scmp.eq.s32.totalorder %s25, 0
    %p230 = por %p228, %p229
    %s232 = sadd.s32 %s231, 1
    %p235 = scmp.eq.s32.totalorder %s19, 1
    %p236 = scmp.ne.s32.totalorder %s231, %s233
    %p237 = scmp.eq.s32.totalorder %s19, 0
    %p238 = por %p236, %p237
    %p239 = scmp.ne.s32.totalorder %s231, %s233
    %p240 = scmp.eq.s32.totalorder %s24, 1
    %p241 = por %p239, %p240
    %p242 = scmp.ne.s32.totalorder %s233, %s234
    %p243 = scmp.eq.s32.totalorder %s24, 0
    %p244 = por %p242, %p243
    %p245 = scmp.ne.s32.totalorder %s233, %s234
    %p246 = scmp.eq.s32.totalorder %s25, 1
    %p247 = por %p245, %p246
    %p249 = scmp.ne.s32.totalorder %s234, %s248
    %p250 = scmp.eq.s32.totalorder %s25, 0
    %p251 = por %p249, %p250
    %s253 = sadd.s32 %s252, 1
    %p256 = scmp.eq.s32.totalorder %s19, 1
    %p257 = scmp.ne.s32.totalorder %s252, %s254
    %p258 = scmp.eq.s32.totalorder %s19, 0
    %p259 = por %p257, %p258
    %p260 = scmp.ne.s32.totalorder %s252, %s254
    %p261 = scmp.eq.s32.totalorder %s24, 1
    %p262 = por %p260, %p261
    %p263 = scmp.ne.s32.totalorder %s254, %s255
    %p264 = scmp.eq.s32.totalorder %s24, 0
    %p265 = por %p263, %p264
    %p266 = scmp.ne.s32.totalorder %s254, %s255
    %p267 = scmp.eq.s32.totalorder %s25, 1
    %p268 = por %p266, %p267
    %p270 = scmp.ne.s32.totalorder %s255, %s269
    %p271 = scmp.eq.s32.totalorder %s25, 0
    %p272 = por %p270, %p271
    %s274 = sadd.s32 %s273, 1
    %p277 = scmp.eq.s32.totalorder %s19, 1
    %p278 = scmp.ne.s32.totalorder %s273, %s275
    %p279 = scmp.eq.s32.totalorder %s19, 0
    %p280 = por %p278, %p279
    %p281 = scmp.ne.s32.totalorder %s273, %s275
    %p282 = scmp.eq.s32.totalorder %s24, 1
    %p283 = por %p281, %p282
    %p284 = scmp.ne.s32.totalorder %s275, %s276
    %p285 = scmp.eq.s32.totalorder %s24, 0
    %p286 = por %p284, %p285
    %p287 = scmp.ne.s32.totalorder %s275, %s276
    %p288 = scmp.eq.s32.totalorder %s25, 1
    %p289 = por %p287, %p288
    %p291 = scmp.ne.s32.totalorder %s276, %s290
    %p292 = scmp.eq.s32.totalorder %s25, 0
    %p293 = por %p291, %p292
    %s295 = sadd.s32 %s294, 1
    %p298 = scmp.eq.s32.totalorder %s19, 1
    %p299 = scmp.ne.s32.totalorder %s294, %s296
    %p300 = scmp.eq.s32.totalorder %s19, 0
    %p301 = por %p299, %p300
    %p302 = scmp.ne.s32.totalorder %s294, %s296
    %p303 = scmp.eq.s32.totalorder %s24, 1
    %p304 = por %p302, %p303
    %p305 = scmp.ne.s32.totalorder %s296, %s297
    %p306 = scmp.eq.s32.totalorder %s24, 0
    %p307 = por %p305, %p306
    %p308 = scmp.ne.s32.totalorder %s296, %s297
    %p309 = scmp.eq.s32.totalorder %s25, 1
    %p310 = por %p308, %p309
    %p312 = scmp.ne.s32.totalorder %s297, %s311
    %p313 = scmp.eq.s32.totalorder %s25, 0
    %p314 = por %p312, %p313
    %s315 = ssub.s32 %s19, %s26
    %p316 = scmp.eq.s32.totalorder %s315, 0
    %s318 = sadd.s32 %s317, 1
    %s319 = scalar_select %p316, %s317, %s318
    %p322 = pneg %p316
    %p323 = scmp.eq.s32.totalorder %s19, 1
    %p324 = por %p322, %p323
    %p325 = scmp.ne.s32.totalorder %s317, %s320
    %p326 = scmp.eq.s32.totalorder %s19, 0
    %p327 = por %p325, %p326
    %p328 = scmp.ne.s32.totalorder %s317, %s320
    %p329 = scmp.eq.s32.totalorder %s24, 1
    %p330 = por %p328, %p329
    %p331 = scmp.ne.s32.totalorder %s320, %s321
    %p332 = scmp.eq.s32.totalorder %s24, 0
    %p333 = por %p331, %p332
    %p334 = scmp.ne.s32.totalorder %s320, %s321
    %p335 = scmp.eq.s32.totalorder %s25, 1
    %p336 = por %p334, %p335
    %p338 = scmp.ne.s32.totalorder %s321, %s337
    %p339 = scmp.eq.s32.totalorder %s25, 0
    %p340 = por %p338, %p339
    %p341 = scmp.le.s32.totalorder 1, %s19
    %p342 = scmp.lt.s32.totalorder %s19, 3
    %p343 = pnand %p341, %p342
    %p344 = pneg %p343
    // Predicated region
    $region9: #{tpu_custom_call.1} parent=5 // pred_check
      _
    $region10: #{tpu_custom_call.1} parent=5 // pred_check_branch
      %346 = sbr.rel (%p343) target = $region12
    $region11: #{tpu_custom_call.1} parent=5 // pred_region
      %s347 = ssub.s32 %s19, 1
      // Predicated region
      $region13: #{tpu_custom_call.1} parent=11 // pred_check
        %p348 = pneg %p118
      $region14: #{tpu_custom_call.1} parent=11 // pred_check_branch
        %350 = sbr.rel (%p348) target = $region16
      $region15: #{tpu_custom_call.1} parent=11 // pred_region
        _
      $region16: #{tpu_custom_call.1} parent=11 // pred_fallthru
        _
      // Predicated region
      $region17: #{tpu_custom_call.1} parent=11 // pred_check
        %p351 = pneg %p139
      $region18: #{tpu_custom_call.1} parent=11 // pred_check_branch
        %353 = sbr.rel (%p351) target = $region20
      $region19: #{tpu_custom_call.1} parent=11 // pred_region
        _
      $region20: #{tpu_custom_call.1} parent=11 // pred_fallthru
        _
      // Predicated region
      $region21: #{tpu_custom_call.1} parent=11 // pred_check
        %p354 = pneg %p160
      $region22: #{tpu_custom_call.1} parent=11 // pred_check_branch
        %356 = sbr.rel (%p354) target = $region24
      $region23: #{tpu_custom_call.1} parent=11 // pred_region
        _
      $region24: #{tpu_custom_call.1} parent=11 // pred_fallthru
        _
      // Predicated region
      $region25: #{tpu_custom_call.1} parent=11 // pred_check
        %p357 = pneg %p181
      $region26: #{tpu_custom_call.1} parent=11 // pred_check_branch
        %359 = sbr.rel (%p357) target = $region28
      $region27: #{tpu_custom_call.1} parent=11 // pred_region
        _
      $region28: #{tpu_custom_call.1} parent=11 // pred_fallthru
        _
      // Predicated region
      $region29: #{tpu_custom_call.1} parent=11 // pred_check
        %p360 = pneg %p202
      $region30: #{tpu_custom_call.1} parent=11 // pred_check_branch
        %362 = sbr.rel (%p360) target = $region32
      $region31: #{tpu_custom_call.1} parent=11 // pred_region
        _
      $region32: #{tpu_custom_call.1} parent=11 // pred_fallthru
        _
      // Predicated region
      $region33: #{tpu_custom_call.1} parent=11 // pred_check
        %p363 = pneg %p223
      $region34: #{tpu_custom_call.1} parent=11 // pred_check_branch
        %365 = sbr.rel (%p363) target = $region36
      $region35: #{tpu_custom_call.1} parent=11 // pred_region
        _
      $region36: #{tpu_custom_call.1} parent=11 // pred_fallthru
        _
      // Predicated region
      $region37: #{tpu_custom_call.1} parent=11 // pred_check
        %p366 = pneg %p244
      $region38: #{tpu_custom_call.1} parent=11 // pred_check_branch
        %368 = sbr.rel (%p366) target = $region40
      $region39: #{tpu_custom_call.1} parent=11 // pred_region
        _
      $region40: #{tpu_custom_call.1} parent=11 // pred_fallthru
        _
      // Predicated region
      $region41: #{tpu_custom_call.1} parent=11 // pred_check
        %p369 = pneg %p265
      $region42: #{tpu_custom_call.1} parent=11 // pred_check_branch
        %371 = sbr.rel (%p369) target = $region44
      $region43: #{tpu_custom_call.1} parent=11 // pred_region
        _
      $region44: #{tpu_custom_call.1} parent=11 // pred_fallthru
        _
      // Predicated region
      $region45: #{tpu_custom_call.1} parent=11 // pred_check
        %p372 = pneg %p286
      $region46: #{tpu_custom_call.1} parent=11 // pred_check_branch
        %374 = sbr.rel (%p372) target = $region48
      $region47: #{tpu_custom_call.1} parent=11 // pred_region
        _
      $region48: #{tpu_custom_call.1} parent=11 // pred_fallthru
        _
      // Predicated region
      $region49: #{tpu_custom_call.1} parent=11 // pred_check
        %p375 = pneg %p307
      $region50: #{tpu_custom_call.1} parent=11 // pred_check_branch
        %377 = sbr.rel (%p375) target = $region52
      $region51: #{tpu_custom_call.1} parent=11 // pred_region
        _
      $region52: #{tpu_custom_call.1} parent=11 // pred_fallthru
        _
    $region12: #{tpu_custom_call.1} parent=5 // pred_fallthru
      _
    %p378 = scmp.lt.s32.totalorder %s19, 2
    // Predicated region
    $region53: #{tpu_custom_call.1} parent=5 // pred_check
      %p379 = pneg %p378
    $region54: #{tpu_custom_call.1} parent=5 // pred_check_branch
      %381 = sbr.rel (%p379) target = $region56
    $region55: #{tpu_custom_call.1} parent=5 // pred_region
      // Predicated region
      $region57: #{tpu_custom_call.1} parent=55 // pred_check
        %p382 = pneg %p39
      $region58: #{tpu_custom_call.1} parent=55 // pred_check_branch
        %384 = sbr.rel (%p382) target = $region60
      $region59: #{tpu_custom_call.1} parent=55 // pred_region
        %p385 = scmp.lt.s32.totalorder %s19, 1
        %s386 = scalar_select %p385, %s19, 1
        %s387 = smul.addr %s386, 16
        %s388 = smul.addr %s387, 8
        %s389 = scalar_lea.vmem %s0, %s388
      $region60: #{tpu_custom_call.1} parent=55 // pred_fallthru
        _
      // Predicated region
      $region61: #{tpu_custom_call.1} parent=55 // pred_check
        %p390 = pneg %p65
      $region62: #{tpu_custom_call.1} parent=55 // pred_check_branch
        %392 = sbr.rel (%p390) target = $region64
      $region63: #{tpu_custom_call.1} parent=55 // pred_region
        %p393 = scmp.lt.s32.totalorder %s19, 1
        %s394 = scalar_select %p393, %s19, 1
        %s395 = smul.addr %s394, 16
        %s396 = smul.addr %s395, 8
        %s397 = scalar_lea.vmem %s1, %s396
      $region64: #{tpu_custom_call.1} parent=55 // pred_fallthru
        _
      // Predicated region
      $region65: #{tpu_custom_call.1} parent=55 // pred_check
        %p398 = pneg %p91
      $region66: #{tpu_custom_call.1} parent=55 // pred_check_branch
        %400 = sbr.rel (%p398) target = $region68
      $region67: #{tpu_custom_call.1} parent=55 // pred_region
        %p401 = scmp.lt.s32.totalorder %s19, 1
        %s402 = scalar_select %p401, %s19, 1
        %s403 = smul.addr %s402, 16
        %s404 = smul.addr %s403, 8
        %s405 = scalar_lea.vmem %s2, %s404
      $region68: #{tpu_custom_call.1} parent=55 // pred_fallthru
        _
    $region56: #{tpu_custom_call.1} parent=5 // pred_fallthru
      _
    %p406 = scmp.le.s32.totalorder 1, %s19
    %p407 = scmp.lt.s32.totalorder %s19, 3
    %p408 = pnand %p406, %p407
    %p409 = pneg %p408
    // Predicated region
    $region69: #{tpu_custom_call.1} parent=5 // pred_check
      _
    $region70: #{tpu_custom_call.1} parent=5 // pred_check_branch
      %411 = sbr.rel (%p408) target = $region72
    $region71: #{tpu_custom_call.1} parent=5 // pred_region
      %s412 = ssub.s32 %s19, 1
      %p413 = scmp.lt.s32.totalorder %s24, 1
      %s414 = scalar_select %p413, %s24, 1
      %s415 = smul.addr %s414, 16
      %s416 = smul.addr %s415, 8
      %s417 = scalar_lea.vmem %s0, %s416
      %p418 = pneg %p45
      %p419 = pneg %p42
      %p420 = scmp.lt.s32.totalorder %s24, 1
      %s421 = scalar_select %p420, %s24, 1
      %s422 = smul.addr %s421, 16
      %s423 = smul.addr %s422, 8
      %s424 = scalar_lea.vmem %s1, %s423
      %p425 = pneg %p71
      %p426 = pneg %p68
      %p427 = scmp.lt.s32.totalorder %s24, 1
      %s428 = scalar_select %p427, %s24, 1
      %s429 = smul.addr %s428, 16
      %s430 = smul.addr %s429, 8
      %s431 = scalar_lea.vmem %s2, %s430
      %p432 = pneg %p97
      %p433 = pneg %p94
      %p434 = pneg %p118
      %p435 = pneg %p115
      %p436 = pneg %p139
      %p437 = pneg %p136
      %p438 = pneg %p160
      %p439 = pneg %p157
      %p440 = pneg %p181
      %p441 = pneg %p178
      %p442 = pneg %p202
      %p443 = pneg %p199
      %p444 = pneg %p223
      %p445 = pneg %p220
      %p446 = pneg %p244
      %p447 = pneg %p241
      %p448 = pneg %p265
      %p449 = pneg %p262
      %p450 = pneg %p286
      %p451 = pneg %p283
      %p452 = pneg %p307
      %p453 = pneg %p304
      %p454 = pneg %p333
      %p455 = pneg %p330
      %p456 = scmp.lt.s32.totalorder %s24, 1
      %s457 = scalar_select %p456, %s24, 1
      %s458 = smul.addr %s457, 16
      %s459 = smul.addr %s458, 8
      %s460 = scalar_lea.vmem %s13, %s459
      %p461 = scmp.lt.s32.totalorder %s24, 1
      %s462 = scalar_select %p461, %s24, 1
      %s463 = smul.addr %s462, 16
      %s464 = smul.addr %s463, 8
      %s465 = scalar_lea.vmem %s0, %s464
      %p466 = scmp.lt.s32.totalorder %s24, 1
      %s467 = scalar_select %p466, %s24, 1
      %s468 = smul.addr %s467, 16
      %s469 = smul.addr %s468, 8
      %s470 = scalar_lea.vmem %s1, %s469
      %p471 = scmp.lt.s32.totalorder %s24, 1
      %s472 = scalar_select %p471, %s24, 1
      %s473 = smul.addr %s472, 16
      %s474 = smul.addr %s473, 8
      %s475 = scalar_lea.vmem %s2, %s474
      %p476 = scmp.lt.s32.totalorder %s24, 1
      %s477 = scalar_select %p476, %s24, 1
      %s478 = smul.addr %s477, 16
      %s479 = smul.addr %s478, 8
      %s480 = scalar_lea.vmem %s13, %s479
      %v481 = vld [vmem:[%s465] sm:$0xff]
      %v482 = vld [vmem:[%s465 + $0x8] sm:$0xff]
      %v483 = vld [vmem:[%s465 + $0x10] sm:$0xff]
      %v484 = vld [vmem:[%s465 + $0x18] sm:$0xff]
      %v485 = vld [vmem:[%s465 + $0x20] sm:$0xff]
      %v486 = vld [vmem:[%s465 + $0x28] sm:$0xff]
      %v487 = vld [vmem:[%s465 + $0x30] sm:$0xff]
      %v488 = vld [vmem:[%s465 + $0x38] sm:$0xff]
      %v489 = vld [vmem:[%s465 + $0x40] sm:$0xff]
      %v490 = vld [vmem:[%s465 + $0x48] sm:$0xff]
      %v491 = vld [vmem:[%s465 + $0x50] sm:$0xff]
      %v492 = vld [vmem:[%s465 + $0x58] sm:$0xff]
      %v493 = vld [vmem:[%s465 + $0x60] sm:$0xff]
      %v494 = vld [vmem:[%s465 + $0x68] sm:$0xff]
      %v495 = vld [vmem:[%s465 + $0x70] sm:$0xff]
      %v496 = vld [vmem:[%s465 + $0x78] sm:$0xff]
      %v497 = vld [vmem:[%s3] sm:$0xff]
      %v498 = vld [vmem:[%s3 + $0x8] sm:$0xff]
      %v499 = vld [vmem:[%s3 + $0x10] sm:$0xff]
      %v500 = vld [vmem:[%s3 + $0x18] sm:$0xff]
      %v501 = vld [vmem:[%s4] sm:$0x1]
      %v503 = vlaneseq
      %v504 = vshrl.u32 %v503, 7
      %v505 = vsub.s32 0, %v504
      %v506 = vrot.slane %v501, %v505
      %vm508 = vcmask 261120
      %v510 = vsel %vm508, %v481, 0
      %v513 = vsel %vm508, %v482, 0
      %v516 = vsel %vm508, %v483, 0
      %v519 = vsel %vm508, %v484, 0
      %v522 = vsel %vm508, %v485, 0
      %v525 = vsel %vm508, %v486, 0
      %v528 = vsel %vm508, %v487, 0
      %v531 = vsel %vm508, %v488, 0
      %v534 = vsel %vm508, %v489, 0
      %v537 = vsel %vm508, %v490, 0
      %v540 = vsel %vm508, %v491, 0
      %v543 = vsel %vm508, %v492, 0
      %v546 = vsel %vm508, %v493, 0
      %v549 = vsel %vm508, %v494, 0
      %v552 = vsel %vm508, %v495, 0
      %v555 = vsel %vm508, %v496, 0
      %557 = vmatprep.subr.mxu0 0.0
      %558 = vmatpush1.msra.mxu0 %v497
      %559 = vmatprep.subr.mxu0 0.0
      %560 = vmatpush1.msra.mxu0 %v498
      %561 = vmatprep.subr.mxu0 0.0
      %562 = vmatpush1.msra.mxu0 %v499
      %563 = vmatprep.subr.mxu0 0.0
      %564 = vmatpush1.msra.mxu0 %v500
      %565 = vmatprep.subr.mxu0 0.0
      %566 = vmatpush1.msra.mxu0 0.0
      %567 = vmatprep.subr.mxu0 0.0
      %568 = vmatpush1.msra.mxu0 0.0
      %569 = vmatprep.subr.mxu0 0.0
      %570 = vmatpush1.msra.mxu0 0.0
      %571 = vmatprep.subr.mxu0 0.0
      %572 = vmatpush1.msra.mxu0 0.0
      %573 = vmatprep.subr.mxu0 0.0
      %574 = vmatpush1.msra.mxu0 0.0
      %575 = vmatprep.subr.mxu0 0.0
      %576 = vmatpush1.msra.mxu0 0.0
      %577 = vmatprep.subr.mxu0 0.0
      %578 = vmatpush1.msra.mxu0 0.0
      %579 = vmatprep.subr.mxu0 0.0
      %580 = vmatpush1.msra.mxu0 0.0
      %581 = vmatprep.subr.mxu0 0.0
      %582 = vmatpush1.msra.mxu0 0.0
      %583 = vmatprep.subr.mxu0 0.0
      %584 = vmatpush1.msra.mxu0 0.0
      %585 = vmatprep.subr.mxu0 0.0
      %586 = vmatpush1.msra.mxu0 0.0
      %587 = vmatprep.subr.mxu0 0.0
      %588 = vmatpush1.msra.mxu0 0.0
      %589 = vmatprep.subr.mxu0 0.0
      %590 = vmatpush1.msra.mxu0 0.0
      %591 = vmatprep.subr.mxu0 0.0
      %592 = vmatpush1.msra.mxu0 0.0
      %593 = vmatprep.subr.mxu0 0.0
      %594 = vmatpush1.msra.mxu0 0.0
      %595 = vmatprep.subr.mxu0 0.0
      %596 = vmatpush1.msra.mxu0 0.0
      %597 = vmatprep.subr.mxu0 0.0
      %598 = vmatpush1.msra.mxu0 0.0
      %599 = vmatprep.subr.mxu0 0.0
      %600 = vmatpush1.msra.mxu0 0.0
      %601 = vmatprep.subr.mxu0 0.0
      %602 = vmatpush1.msra.mxu0 0.0
      %603 = vmatprep.subr.mxu0 0.0
      %604 = vmatpush1.msra.mxu0 0.0
      %605 = vmatprep.subr.mxu0 0.0
      %606 = vmatpush1.msra.mxu0 0.0
      %607 = vmatprep.subr.mxu0 0.0
      %608 = vmatpush1.msra.mxu0 0.0
      %609 = vmatprep.subr.mxu0 0.0
      %610 = vmatpush1.msra.mxu0 0.0
      %611 = vmatprep.subr.mxu0 0.0
      %612 = vmatpush1.msra.mxu0 0.0
      %613 = vmatprep.subr.mxu0 0.0
      %614 = vmatpush1.msra.mxu0 0.0
      %615 = vmatprep.subr.mxu0 0.0
      %616 = vmatpush1.msra.mxu0 0.0
      %617 = vmatprep.subr.mxu0 0.0
      %618 = vmatpush1.msra.mxu0 0.0
      %619 = vmatprep.subr.mxu0 0.0
      %620 = vmatpush1.msra.mxu0 0.0
      %621 = vmatprep.mubr.f32.mxu0 0.0
      %622 = vmatmul.mubr.f32.gmra.mrb[0].mxu0 %v510
      %v623 = vpop.f32.mrb[0].mxu0
      %v624 = vadd.f32 %v506, %v623
      %v625 = vpop.f32.mrb[0].mxu0
      %626 = vmatprep.mubr.f32.mxu0 0.0
      %627 = vmatmul.mubr.f32.gmra.mrb[0].mxu0 %v513
      %v628 = vpop.f32.mrb[0].mxu0
      %v629 = vadd.f32 %v506, %v628
      %v630 = vpop.f32.mrb[0].mxu0
      %631 = vmatprep.mubr.f32.mxu0 0.0
      %632 = vmatmul.mubr.f32.gmra.mrb[0].mxu0 %v516
      %v633 = vpop.f32.mrb[0].mxu0
      %v634 = vadd.f32 %v506, %v633
      %v635 = vpop.f32.mrb[0].mxu0
      %636 = vmatprep.mubr.f32.mxu0 0.0
      %637 = vmatmul.mubr.f32.gmra.mrb[0].mxu0 %v519
      %v638 = vpop.f32.mrb[0].mxu0
      %v639 = vadd.f32 %v506, %v638
      %v640 = vpop.f32.mrb[0].mxu0
      %641 = vmatprep.mubr.f32.mxu0 0.0
      %642 = vmatmul.mubr.f32.gmra.mrb[0].mxu0 %v522
      %v643 = vpop.f32.mrb[0].mxu0
      %v644 = vadd.f32 %v506, %v643
      %v645 = vpop.f32.mrb[0].mxu0
      %646 = vmatprep.mubr.f32.mxu0 0.0
      %647 = vmatmul.mubr.f32.gmra.mrb[0].mxu0 %v525
      %v648 = vpop.f32.mrb[0].mxu0
      %v649 = vadd.f32 %v506, %v648
      %v650 = vpop.f32.mrb[0].mxu0
      %651 = vmatprep.mubr.f32.mxu0 0.0
      %652 = vmatmul.mubr.f32.gmra.mrb[0].mxu0 %v528
      %v653 = vpop.f32.mrb[0].mxu0
      %v654 = vadd.f32 %v506, %v653
      %v655 = vpop.f32.mrb[0].mxu0
      %656 = vmatprep.mubr.f32.mxu0 0.0
      %657 = vmatmul.mubr.f32.gmra.mrb[0].mxu0 %v531
      %v658 = vpop.f32.mrb[0].mxu0
      %v659 = vadd.f32 %v506, %v658
      %v660 = vpop.f32.mrb[0].mxu0
      %661 = vmatprep.mubr.f32.mxu0 0.0
      %662 = vmatmul.mubr.f32.gmra.mrb[0].mxu0 %v534
      %v663 = vpop.f32.mrb[0].mxu0
      %v664 = vadd.f32 %v506, %v663
      %v665 = vpop.f32.mrb[0].mxu0
      %666 = vmatprep.mubr.f32.mxu0 0.0
      %667 = vmatmul.mubr.f32.gmra.mrb[0].mxu0 %v537
      %v668 = vpop.f32.mrb[0].mxu0
      %v669 = vadd.f32 %v506, %v668
      %v670 = vpop.f32.mrb[0].mxu0
      %671 = vmatprep.mubr.f32.mxu0 0.0
      %672 = vmatmul.mubr.f32.gmra.mrb[0].mxu0 %v540
      %v673 = vpop.f32.mrb[0].mxu0
      %v674 = vadd.f32 %v506, %v673
      %v675 = vpop.f32.mrb[0].mxu0
      %676 = vmatprep.mubr.f32.mxu0 0.0
      %677 = vmatmul.mubr.f32.gmra.mrb[0].mxu0 %v543
      %v678 = vpop.f32.mrb[0].mxu0
      %v679 = vadd.f32 %v506, %v678
      %v680 = vpop.f32.mrb[0].mxu0
      %681 = vmatprep.mubr.f32.mxu0 0.0
      %682 = vmatmul.mubr.f32.gmra.mrb[0].mxu0 %v546
      %v683 = vpop.f32.mrb[0].mxu0
      %v684 = vadd.f32 %v506, %v683
      %v685 = vpop.f32.mrb[0].mxu0
      %686 = vmatprep.mubr.f32.mxu0 0.0
      %687 = vmatmul.mubr.f32.gmra.mrb[0].mxu0 %v549
      %v688 = vpop.f32.mrb[0].mxu0
      %v689 = vadd.f32 %v506, %v688
      %v690 = vpop.f32.mrb[0].mxu0
      %691 = vmatprep.mubr.f32.mxu0 0.0
      %692 = vmatmul.mubr.f32.gmra.mrb[0].mxu0 %v552
      %v693 = vpop.f32.mrb[0].mxu0
      %v694 = vadd.f32 %v506, %v693
      %v695 = vpop.f32.mrb[0].mxu0
      %696 = vmatprep.mubr.f32.mxu0 0.0
      %697 = vmatmul.mubr.f32.gmra.mrb[0].mxu0 %v555
      %v698 = vpop.f32.mrb[0].mxu0
      %v699 = vadd.f32 %v506, %v698
      %v700 = vpop.f32.mrb[0].mxu0
      %701 = vdwg.mxu0
      %v702 = vmax.f32 %v624, 0.0
      %v703 = vmax.f32 %v629, 0.0
      %v704 = vmax.f32 %v634, 0.0
      %v705 = vmax.f32 %v639, 0.0
      %v706 = vmax.f32 %v644, 0.0
      %v707 = vmax.f32 %v649, 0.0
      %v708 = vmax.f32 %v654, 0.0
      %v709 = vmax.f32 %v659, 0.0
      %v710 = vmax.f32 %v664, 0.0
      %v711 = vmax.f32 %v669, 0.0
      %v712 = vmax.f32 %v674, 0.0
      %v713 = vmax.f32 %v679, 0.0
      %v714 = vmax.f32 %v684, 0.0
      %v715 = vmax.f32 %v689, 0.0
      %v716 = vmax.f32 %v694, 0.0
      %v717 = vmax.f32 %v699, 0.0
      %v718 = vld [vmem:[%s470] sm:$0xff]
      %v719 = vld [vmem:[%s470 + $0x8] sm:$0xff]
      %v720 = vld [vmem:[%s470 + $0x10] sm:$0xff]
      %v721 = vld [vmem:[%s470 + $0x18] sm:$0xff]
      %v722 = vld [vmem:[%s470 + $0x20] sm:$0xff]
      %v723 = vld [vmem:[%s470 + $0x28] sm:$0xff]
      %v724 = vld [vmem:[%s470 + $0x30] sm:$0xff]
      %v725 = vld [vmem:[%s470 + $0x38] sm:$0xff]
      %v726 = vld [vmem:[%s470 + $0x40] sm:$0xff]
      %v727 = vld [vmem:[%s470 + $0x48] sm:$0xff]
      %v728 = vld [vmem:[%s470 + $0x50] sm:$0xff]
      %v729 = vld [vmem:[%s470 + $0x58] sm:$0xff]
      %v730 = vld [vmem:[%s470 + $0x60] sm:$0xff]
      %v731 = vld [vmem:[%s470 + $0x68] sm:$0xff]
      %v732 = vld [vmem:[%s470 + $0x70] sm:$0xff]
      %v733 = vld [vmem:[%s470 + $0x78] sm:$0xff]
      %v734 = vld [vmem:[%s5] sm:$0xff]
      %v735 = vld [vmem:[%s5 + $0x8] sm:$0xff]
      %v736 = vld [vmem:[%s5 + $0x10] sm:$0xff]
      %v737 = vld [vmem:[%s5 + $0x18] sm:$0xff]
      %v738 = vld [vmem:[%s6] sm:$0x1]
      %v740 = vlaneseq
      %v741 = vshrl.u32 %v740, 7
      %v742 = vsub.s32 0, %v741
      %v743 = vrot.slane %v738, %v742
      %v746 = vsel %vm508, %v718, 0
      %v749 = vsel %vm508, %v719, 0
      %v752 = vsel %vm508, %v720, 0
      %v755 = vsel %vm508, %v721, 0
      %v758 = vsel %vm508, %v722, 0
      %v761 = vsel %vm508, %v723, 0
      %v764 = vsel %vm508, %v724, 0
      %v767 = vsel %vm508, %v725, 0
      %v770 = vsel %vm508, %v726, 0
      %v773 = vsel %vm508, %v727, 0
      %v776 = vsel %vm508, %v728, 0
      %v779 = vsel %vm508, %v729, 0
      %v782 = vsel %vm508, %v730, 0
      %v785 = vsel %vm508, %v731, 0
      %v788 = vsel %vm508, %v732, 0
      %v791 = vsel %vm508, %v733, 0
      %793 = vmatprep.subr.mxu0 0.0
      %794 = vmatpush1.msra.mxu0 %v734
      %795 = vmatprep.subr.mxu0 0.0
      %796 = vmatpush1.msra.mxu0 %v735
      %797 = vmatprep.subr.mxu0 0.0
      %798 = vmatpush1.msra.mxu0 %v736
      %799 = vmatprep.subr.mxu0 0.0
      %800 = vmatpush1.msra.mxu0 %v737
      %801 = vmatprep.subr.mxu0 0.0
      %802 = vmatpush1.msra.mxu0 0.0
      %803 = vmatprep.subr.mxu0 0.0
      %804 = vmatpush1.msra.mxu0 0.0
      %805 = vmatprep.subr.mxu0 0.0
      %806 = vmatpush1.msra.mxu0 0.0
      %807 = vmatprep.subr.mxu0 0.0
      %808 = vmatpush1.msra.mxu0 0.0
      %809 = vmatprep.subr.mxu0 0.0
      %810 = vmatpush1.msra.mxu0 0.0
      %811 = vmatprep.subr.mxu0 0.0
      %812 = vmatpush1.msra.mxu0 0.0
      %813 = vmatprep.subr.mxu0 0.0
      %814 = vmatpush1.msra.mxu0 0.0
      %815 = vmatprep.subr.mxu0 0.0
      %816 = vmatpush1.msra.mxu0 0.0
      %817 = vmatprep.subr.mxu0 0.0
      %818 = vmatpush1.msra.mxu0 0.0
      %819 = vmatprep.subr.mxu0 0.0
      %820 = vmatpush1.msra.mxu0 0.0
      %821 = vmatprep.subr.mxu0 0.0
      %822 = vmatpush1.msra.mxu0 0.0
      %823 = vmatprep.subr.mxu0 0.0
      %824 = vmatpush1.msra.mxu0 0.0
      %825 = vmatprep.subr.mxu0 0.0
      %826 = vmatpush1.msra.mxu0 0.0
      %827 = vmatprep.subr.mxu0 0.0
      %828 = vmatpush1.msra.mxu0 0.0
      %829 = vmatprep.subr.mxu0 0.0
      %830 = vmatpush1.msra.mxu0 0.0
      %831 = vmatprep.subr.mxu0 0.0
      %832 = vmatpush1.msra.mxu0 0.0
      %833 = vmatprep.subr.mxu0 0.0
      %834 = vmatpush1.msra.mxu0 0.0
      %835 = vmatprep.subr.mxu0 0.0
      %836 = vmatpush1.msra.mxu0 0.0
      %837 = vmatprep.subr.mxu0 0.0
      %838 = vmatpush1.msra.mxu0 0.0
      %839 = vmatprep.subr.mxu0 0.0
      %840 = vmatpush1.msra.mxu0 0.0
      %841 = vmatprep.subr.mxu0 0.0
      %842 = vmatpush1.msra.mxu0 0.0
      %843 = vmatprep.subr.mxu0 0.0
      %844 = vmatpush1.msra.mxu0 0.0
      %845 = vmatprep.subr.mxu0 0.0
      %846 = vmatpush1.msra.mxu0 0.0
      %847 = vmatprep.subr.mxu0 0.0
      %848 = vmatpush1.msra.mxu0 0.0
      %849 = vmatprep.subr.mxu0 0.0
      %850 = vmatpush1.msra.mxu0 0.0
      %851 = vmatprep.subr.mxu0 0.0
      %852 = vmatpush1.msra.mxu0 0.0
      %853 = vmatprep.subr.mxu0 0.0
      %854 = vmatpush1.msra.mxu0 0.0
      %855 = vmatprep.subr.mxu0 0.0
      %856 = vmatpush1.msra.mxu0 0.0
      %857 = vmatprep.mubr.f32.mxu0 0.0
      %858 = vmatmul.mubr.f32.gmra.mrb[0].mxu0 %v746
      %v859 = vpop.f32.mrb[0].mxu0
      %v860 = vadd.f32 %v743, %v859
      %v861 = vpop.f32.mrb[0].mxu0
      %862 = vmatprep.mubr.f32.mxu0 0.0
      %863 = vmatmul.mubr.f32.gmra.mrb[0].mxu0 %v749
      %v864 = vpop.f32.mrb[0].mxu0
      %v865 = vadd.f32 %v743, %v864
      %v866 = vpop.f32.mrb[0].mxu0
      %867 = vmatprep.mubr.f32.mxu0 0.0
      %868 = vmatmul.mubr.f32.gmra.mrb[0].mxu0 %v752
      %v869 = vpop.f32.mrb[0].mxu0
      %v870 = vadd.f32 %v743, %v869
      %v871 = vpop.f32.mrb[0].mxu0
      %872 = vmatprep.mubr.f32.mxu0 0.0
      %873 = vmatmul.mubr.f32.gmra.mrb[0].mxu0 %v755
      %v874 = vpop.f32.mrb[0].mxu0
      %v875 = vadd.f32 %v743, %v874
      %v876 = vpop.f32.mrb[0].mxu0
      %877 = vmatprep.mubr.f32.mxu0 0.0
      %878 = vmatmul.mubr.f32.gmra.mrb[0].mxu0 %v758
      %v879 = vpop.f32.mrb[0].mxu0
      %v880 = vadd.f32 %v743, %v879
      %v881 = vpop.f32.mrb[0].mxu0
      %882 = vmatprep.mubr.f32.mxu0 0.0
      %883 = vmatmul.mubr.f32.gmra.mrb[0].mxu0 %v761
      %v884 = vpop.f32.mrb[0].mxu0
      %v885 = vadd.f32 %v743, %v884
      %v886 = vpop.f32.mrb[0].mxu0
      %887 = vmatprep.mubr.f32.mxu0 0.0
      %888 = vmatmul.mubr.f32.gmra.mrb[0].mxu0 %v764
      %v889 = vpop.f32.mrb[0].mxu0
      %v890 = vadd.f32 %v743, %v889
      %v891 = vpop.f32.mrb[0].mxu0
      %892 = vmatprep.mubr.f32.mxu0 0.0
      %893 = vmatmul.mubr.f32.gmra.mrb[0].mxu0 %v767
      %v894 = vpop.f32.mrb[0].mxu0
      %v895 = vadd.f32 %v743, %v894
      %v896 = vpop.f32.mrb[0].mxu0
      %897 = vmatprep.mubr.f32.mxu0 0.0
      %898 = vmatmul.mubr.f32.gmra.mrb[0].mxu0 %v770
      %v899 = vpop.f32.mrb[0].mxu0
      %v900 = vadd.f32 %v743, %v899
      %v901 = vpop.f32.mrb[0].mxu0
      %902 = vmatprep.mubr.f32.mxu0 0.0
      %903 = vmatmul.mubr.f32.gmra.mrb[0].mxu0 %v773
      %v904 = vpop.f32.mrb[0].mxu0
      %v905 = vadd.f32 %v743, %v904
      %v906 = vpop.f32.mrb[0].mxu0
      %907 = vmatprep.mubr.f32.mxu0 0.0
      %908 = vmatmul.mubr.f32.gmra.mrb[0].mxu0 %v776
      %v909 = vpop.f32.mrb[0].mxu0
      %v910 = vadd.f32 %v743, %v909
      %v911 = vpop.f32.mrb[0].mxu0
      %912 = vmatprep.mubr.f32.mxu0 0.0
      %913 = vmatmul.mubr.f32.gmra.mrb[0].mxu0 %v779
      %v914 = vpop.f32.mrb[0].mxu0
      %v915 = vadd.f32 %v743, %v914
      %v916 = vpop.f32.mrb[0].mxu0
      %917 = vmatprep.mubr.f32.mxu0 0.0
      %918 = vmatmul.mubr.f32.gmra.mrb[0].mxu0 %v782
      %v919 = vpop.f32.mrb[0].mxu0
      %v920 = vadd.f32 %v743, %v919
      %v921 = vpop.f32.mrb[0].mxu0
      %922 = vmatprep.mubr.f32.mxu0 0.0
      %923 = vmatmul.mubr.f32.gmra.mrb[0].mxu0 %v785
      %v924 = vpop.f32.mrb[0].mxu0
      %v925 = vadd.f32 %v743, %v924
      %v926 = vpop.f32.mrb[0].mxu0
      %927 = vmatprep.mubr.f32.mxu0 0.0
      %928 = vmatmul.mubr.f32.gmra.mrb[0].mxu0 %v788
      %v929 = vpop.f32.mrb[0].mxu0
      %v930 = vadd.f32 %v743, %v929
      %v931 = vpop.f32.mrb[0].mxu0
      %932 = vmatprep.mubr.f32.mxu0 0.0
      %933 = vmatmul.mubr.f32.gmra.mrb[0].mxu0 %v791
      %v934 = vpop.f32.mrb[0].mxu0
      %v935 = vadd.f32 %v743, %v934
      %v936 = vpop.f32.mrb[0].mxu0
      %937 = vdwg.mxu0
      %v938 = vmax.f32 %v860, 0.0
      %v939 = vmax.f32 %v865, 0.0
      %v940 = vmax.f32 %v870, 0.0
      %v941 = vmax.f32 %v875, 0.0
      %v942 = vmax.f32 %v880, 0.0
      %v943 = vmax.f32 %v885, 0.0
      %v944 = vmax.f32 %v890, 0.0
      %v945 = vmax.f32 %v895, 0.0
      %v946 = vmax.f32 %v900, 0.0
      %v947 = vmax.f32 %v905, 0.0
      %v948 = vmax.f32 %v910, 0.0
      %v949 = vmax.f32 %v915, 0.0
      %v950 = vmax.f32 %v920, 0.0
      %v951 = vmax.f32 %v925, 0.0
      %v952 = vmax.f32 %v930, 0.0
      %v953 = vmax.f32 %v935, 0.0
      %v954 = vld [vmem:[%s475] sm:$0xff]
      %v955 = vld [vmem:[%s475 + $0x8] sm:$0xff]
      %v956 = vld [vmem:[%s475 + $0x10] sm:$0xff]
      %v957 = vld [vmem:[%s475 + $0x18] sm:$0xff]
      %v958 = vld [vmem:[%s475 + $0x20] sm:$0xff]
      %v959 = vld [vmem:[%s475 + $0x28] sm:$0xff]
      %v960 = vld [vmem:[%s475 + $0x30] sm:$0xff]
      %v961 = vld [vmem:[%s475 + $0x38] sm:$0xff]
      %v962 = vld [vmem:[%s475 + $0x40] sm:$0xff]
      %v963 = vld [vmem:[%s475 + $0x48] sm:$0xff]
      %v964 = vld [vmem:[%s475 + $0x50] sm:$0xff]
      %v965 = vld [vmem:[%s475 + $0x58] sm:$0xff]
      %v966 = vld [vmem:[%s475 + $0x60] sm:$0xff]
      %v967 = vld [vmem:[%s475 + $0x68] sm:$0xff]
      %v968 = vld [vmem:[%s475 + $0x70] sm:$0xff]
      %v969 = vld [vmem:[%s475 + $0x78] sm:$0xff]
      %v970 = vld [vmem:[%s7] sm:$0xff]
      %v971 = vld [vmem:[%s7 + $0x8] sm:$0xff]
      %v972 = vld [vmem:[%s7 + $0x10] sm:$0xff]
      %v973 = vld [vmem:[%s7 + $0x18] sm:$0xff]
      %v974 = vld [vmem:[%s8] sm:$0x1]
      %v976 = vlaneseq
      %v977 = vshrl.u32 %v976, 7
      %v978 = vsub.s32 0, %v977
      %v979 = vrot.slane %v974, %v978
      %v982 = vsel %vm508, %v954, 0
      %v985 = vsel %vm508, %v955, 0
      %v988 = vsel %vm508, %v956, 0
      %v991 = vsel %vm508, %v957, 0
      %v994 = vsel %vm508, %v958, 0
      %v997 = vsel %vm508, %v959, 0
      %v1000 = vsel %vm508, %v960, 0
      %v1003 = vsel %vm508, %v961, 0
      %v1006 = vsel %vm508, %v962, 0
      %v1009 = vsel %vm508, %v963, 0
      %v1012 = vsel %vm508, %v964, 0
      %v1015 = vsel %vm508, %v965, 0
      %v1018 = vsel %vm508, %v966, 0
      %v1021 = vsel %vm508, %v967, 0
      %v1024 = vsel %vm508, %v968, 0
      %v1027 = vsel %vm508, %v969, 0
      %1029 = vmatprep.subr.mxu0 0.0
      %1030 = vmatpush1.msra.mxu0 %v970
      %1031 = vmatprep.subr.mxu0 0.0
      %1032 = vmatpush1.msra.mxu0 %v971
      %1033 = vmatprep.subr.mxu0 0.0
      %1034 = vmatpush1.msra.mxu0 %v972
      %1035 = vmatprep.subr.mxu0 0.0
      %1036 = vmatpush1.msra.mxu0 %v973
      %1037 = vmatprep.subr.mxu0 0.0
      %1038 = vmatpush1.msra.mxu0 0.0
      %1039 = vmatprep.subr.mxu0 0.0
      %1040 = vmatpush1.msra.mxu0 0.0
      %1041 = vmatprep.subr.mxu0 0.0
      %1042 = vmatpush1.msra.mxu0 0.0
      %1043 = vmatprep.subr.mxu0 0.0
      %1044 = vmatpush1.msra.mxu0 0.0
      %1045 = vmatprep.subr.mxu0 0.0
      %1046 = vmatpush1.msra.mxu0 0.0
      %1047 = vmatprep.subr.mxu0 0.0
      %1048 = vmatpush1.msra.mxu0 0.0
      %1049 = vmatprep.subr.mxu0 0.0
      %1050 = vmatpush1.msra.mxu0 0.0
      %1051 = vmatprep.subr.mxu0 0.0
      %1052 = vmatpush1.msra.mxu0 0.0
      %1053 = vmatprep.subr.mxu0 0.0
      %1054 = vmatpush1.msra.mxu0 0.0
      %1055 = vmatprep.subr.mxu0 0.0
      %1056 = vmatpush1.msra.mxu0 0.0
      %1057 = vmatprep.subr.mxu0 0.0
      %1058 = vmatpush1.msra.mxu0 0.0
      %1059 = vmatprep.subr.mxu0 0.0
      %1060 = vmatpush1.msra.mxu0 0.0
      %1061 = vmatprep.subr.mxu0 0.0
      %1062 = vmatpush1.msra.mxu0 0.0
      %1063 = vmatprep.subr.mxu0 0.0
      %1064 = vmatpush1.msra.mxu0 0.0
      %1065 = vmatprep.subr.mxu0 0.0
      %1066 = vmatpush1.msra.mxu0 0.0
      %1067 = vmatprep.subr.mxu0 0.0
      %1068 = vmatpush1.msra.mxu0 0.0
      %1069 = vmatprep.subr.mxu0 0.0
      %1070 = vmatpush1.msra.mxu0 0.0
      %1071 = vmatprep.subr.mxu0 0.0
      %1072 = vmatpush1.msra.mxu0 0.0
      %1073 = vmatprep.subr.mxu0 0.0
      %1074 = vmatpush1.msra.mxu0 0.0
      %1075 = vmatprep.subr.mxu0 0.0
      %1076 = vmatpush1.msra.mxu0 0.0
      %1077 = vmatprep.subr.mxu0 0.0
      %1078 = vmatpush1.msra.mxu0 0.0
      %1079 = vmatprep.subr.mxu0 0.0
      %1080 = vmatpush1.msra.mxu0 0.0
      %1081 = vmatprep.subr.mxu0 0.0
      %1082 = vmatpush1.msra.mxu0 0.0
      %1083 = vmatprep.subr.mxu0 0.0
      %1084 = vmatpush1.msra.mxu0 0.0
      %1085 = vmatprep.subr.mxu0 0.0
      %1086 = vmatpush1.msra.mxu0 0.0
      %1087 = vmatprep.subr.mxu0 0.0
      %1088 = vmatpush1.msra.mxu0 0.0
      %1089 = vmatprep.subr.mxu0 0.0
      %1090 = vmatpush1.msra.mxu0 0.0
      %1091 = vmatprep.subr.mxu0 0.0
      %1092 = vmatpush1.msra.mxu0 0.0
      %1093 = vmatprep.mubr.f32.mxu0 0.0
      %1094 = vmatmul.mubr.f32.gmra.mrb[0].mxu0 %v982
      %v1095 = vpop.f32.mrb[0].mxu0
      %v1096 = vadd.f32 %v979, %v1095
      %v1097 = vpop.f32.mrb[0].mxu0
      %1098 = vmatprep.mubr.f32.mxu0 0.0
      %1099 = vmatmul.mubr.f32.gmra.mrb[0].mxu0 %v985
      %v1100 = vpop.f32.mrb[0].mxu0
      %v1101 = vadd.f32 %v979, %v1100
      %v1102 = vpop.f32.mrb[0].mxu0
      %1103 = vmatprep.mubr.f32.mxu0 0.0
      %1104 = vmatmul.mubr.f32.gmra.mrb[0].mxu0 %v988
      %v1105 = vpop.f32.mrb[0].mxu0
      %v1106 = vadd.f32 %v979, %v1105
      %v1107 = vpop.f32.mrb[0].mxu0
      %1108 = vmatprep.mubr.f32.mxu0 0.0
      %1109 = vmatmul.mubr.f32.gmra.mrb[0].mxu0 %v991
      %v1110 = vpop.f32.mrb[0].mxu0
      %v1111 = vadd.f32 %v979, %v1110
      %v1112 = vpop.f32.mrb[0].mxu0
      %1113 = vmatprep.mubr.f32.mxu0 0.0
      %1114 = vmatmul.mubr.f32.gmra.mrb[0].mxu0 %v994
      %v1115 = vpop.f32.mrb[0].mxu0
      %v1116 = vadd.f32 %v979, %v1115
      %v1117 = vpop.f32.mrb[0].mxu0
      %1118 = vmatprep.mubr.f32.mxu0 0.0
      %1119 = vmatmul.mubr.f32.gmra.mrb[0].mxu0 %v997
      %v1120 = vpop.f32.mrb[0].mxu0
      %v1121 = vadd.f32 %v979, %v1120
      %v1122 = vpop.f32.mrb[0].mxu0
      %1123 = vmatprep.mubr.f32.mxu0 0.0
      %1124 = vmatmul.mubr.f32.gmra.mrb[0].mxu0 %v1000
      %v1125 = vpop.f32.mrb[0].mxu0
      %v1126 = vadd.f32 %v979, %v1125
      %v1127 = vpop.f32.mrb[0].mxu0
      %1128 = vmatprep.mubr.f32.mxu0 0.0
      %1129 = vmatmul.mubr.f32.gmra.mrb[0].mxu0 %v1003
      %v1130 = vpop.f32.mrb[0].mxu0
      %v1131 = vadd.f32 %v979, %v1130
      %v1132 = vpop.f32.mrb[0].mxu0
      %1133 = vmatprep.mubr.f32.mxu0 0.0
      %1134 = vmatmul.mubr.f32.gmra.mrb[0].mxu0 %v1006
      %v1135 = vpop.f32.mrb[0].mxu0
      %v1136 = vadd.f32 %v979, %v1135
      %v1137 = vpop.f32.mrb[0].mxu0
      %1138 = vmatprep.mubr.f32.mxu0 0.0
      %1139 = vmatmul.mubr.f32.gmra.mrb[0].mxu0 %v1009
      %v1140 = vpop.f32.mrb[0].mxu0
      %v1141 = vadd.f32 %v979, %v1140
      %v1142 = vpop.f32.mrb[0].mxu0
      %1143 = vmatprep.mubr.f32.mxu0 0.0
      %1144 = vmatmul.mubr.f32.gmra.mrb[0].mxu0 %v1012
      %v1145 = vpop.f32.mrb[0].mxu0
      %v1146 = vadd.f32 %v979, %v1145
      %v1147 = vpop.f32.mrb[0].mxu0
      %1148 = vmatprep.mubr.f32.mxu0 0.0
      %1149 = vmatmul.mubr.f32.gmra.mrb[0].mxu0 %v1015
      %v1150 = vpop.f32.mrb[0].mxu0
      %v1151 = vadd.f32 %v979, %v1150
      %v1152 = vpop.f32.mrb[0].mxu0
      %1153 = vmatprep.mubr.f32.mxu0 0.0
      %1154 = vmatmul.mubr.f32.gmra.mrb[0].mxu0 %v1018
      %v1155 = vpop.f32.mrb[0].mxu0
      %v1156 = vadd.f32 %v979, %v1155
      %v1157 = vpop.f32.mrb[0].mxu0
      %1158 = vmatprep.mubr.f32.mxu0 0.0
      %1159 = vmatmul.mubr.f32.gmra.mrb[0].mxu0 %v1021
      %v1160 = vpop.f32.mrb[0].mxu0
      %v1161 = vadd.f32 %v979, %v1160
      %v1162 = vpop.f32.mrb[0].mxu0
      %1163 = vmatprep.mubr.f32.mxu0 0.0
      %1164 = vmatmul.mubr.f32.gmra.mrb[0].mxu0 %v1024
      %v1165 = vpop.f32.mrb[0].mxu0
      %v1166 = vadd.f32 %v979, %v1165
      %v1167 = vpop.f32.mrb[0].mxu0
      %1168 = vmatprep.mubr.f32.mxu0 0.0
      %1169 = vmatmul.mubr.f32.gmra.mrb[0].mxu0 %v1027
      %v1170 = vpop.f32.mrb[0].mxu0
      %v1171 = vadd.f32 %v979, %v1170
      %v1172 = vpop.f32.mrb[0].mxu0
      %1173 = vdwg.mxu0
      %v1174 = vmax.f32 %v1096, 0.0
      %v1175 = vmax.f32 %v1101, 0.0
      %v1176 = vmax.f32 %v1106, 0.0
      %v1177 = vmax.f32 %v1111, 0.0
      %v1178 = vmax.f32 %v1116, 0.0
      %v1179 = vmax.f32 %v1121, 0.0
      %v1180 = vmax.f32 %v1126, 0.0
      %v1181 = vmax.f32 %v1131, 0.0
      %v1182 = vmax.f32 %v1136, 0.0
      %v1183 = vmax.f32 %v1141, 0.0
      %v1184 = vmax.f32 %v1146, 0.0
      %v1185 = vmax.f32 %v1151, 0.0
      %v1186 = vmax.f32 %v1156, 0.0
      %v1187 = vmax.f32 %v1161, 0.0
      %v1188 = vmax.f32 %v1166, 0.0
      %v1189 = vmax.f32 %v1171, 0.0
      %v1190 = vlaneseq
      %v1191 = vshrl.u32 %v1190, 7
      %v1192 = vadd.s32 %v1191, 8
      %v1193 = vadd.s32 %v1191, 16
      %v1194 = vadd.s32 %v1191, 24
      %v1195 = vadd.s32 %v1191, 32
      %v1196 = vadd.s32 %v1191, 40
      %v1197 = vadd.s32 %v1191, 48
      %v1198 = vadd.s32 %v1191, 56
      %v1199 = vadd.s32 %v1191, 64
      %v1200 = vadd.s32 %v1191, 72
      %v1201 = vadd.s32 %v1191, 80
      %v1202 = vadd.s32 %v1191, 88
      %v1203 = vadd.s32 %v1191, 96
      %v1204 = vadd.s32 %v1191, 104
      %v1205 = vadd.s32 %v1191, 112
      %v1206 = vadd.s32 %v1191, 120
      %v1207 = vlaneseq
      %v1208 = vand.u32 %v1207, 127
      %v1209 = vand.u32 %v1191, 15
      %v1210 = vand.u32 %v1192, 15
      %v1211 = vand.u32 %v1193, 15
      %v1212 = vand.u32 %v1194, 15
      %v1213 = vand.u32 %v1195, 15
      %v1214 = vand.u32 %v1196, 15
      %v1215 = vand.u32 %v1197, 15
      %v1216 = vand.u32 %v1198, 15
      %v1217 = vand.u32 %v1199, 15
      %v1218 = vand.u32 %v1200, 15
      %v1219 = vand.u32 %v1201, 15
      %v1220 = vand.u32 %v1202, 15
      %v1221 = vand.u32 %v1203, 15
      %v1222 = vand.u32 %v1204, 15
      %v1223 = vand.u32 %v1205, 15
      %v1224 = vand.u32 %v1206, 15
      %v1225 = vand.u32 %v1208, 15
      %vm1226 = vcmp.eq.s32.totalorder %v1209, %v1225
      %vm1227 = vcmp.eq.s32.totalorder %v1210, %v1225
      %vm1228 = vcmp.eq.s32.totalorder %v1211, %v1225
      %vm1229 = vcmp.eq.s32.totalorder %v1212, %v1225
      %vm1230 = vcmp.eq.s32.totalorder %v1213, %v1225
      %vm1231 = vcmp.eq.s32.totalorder %v1214, %v1225
      %vm1232 = vcmp.eq.s32.totalorder %v1215, %v1225
      %vm1233 = vcmp.eq.s32.totalorder %v1216, %v1225
      %vm1234 = vcmp.eq.s32.totalorder %v1217, %v1225
      %vm1235 = vcmp.eq.s32.totalorder %v1218, %v1225
      %vm1236 = vcmp.eq.s32.totalorder %v1219, %v1225
      %vm1237 = vcmp.eq.s32.totalorder %v1220, %v1225
      %vm1238 = vcmp.eq.s32.totalorder %v1221, %v1225
      %vm1239 = vcmp.eq.s32.totalorder %v1222, %v1225
      %vm1240 = vcmp.eq.s32.totalorder %v1223, %v1225
      %vm1241 = vcmp.eq.s32.totalorder %v1224, %v1225
      %v1242 = vsel %vm1226, 0.0, -1e+30
      %v1243 = vsel %vm1227, 0.0, -1e+30
      %v1244 = vsel %vm1228, 0.0, -1e+30
      %v1245 = vsel %vm1229, 0.0, -1e+30
      %v1246 = vsel %vm1230, 0.0, -1e+30
      %v1247 = vsel %vm1231, 0.0, -1e+30
      %v1248 = vsel %vm1232, 0.0, -1e+30
      %v1249 = vsel %vm1233, 0.0, -1e+30
      %v1250 = vsel %vm1234, 0.0, -1e+30
      %v1251 = vsel %vm1235, 0.0, -1e+30
      %v1252 = vsel %vm1236, 0.0, -1e+30
      %v1253 = vsel %vm1237, 0.0, -1e+30
      %v1254 = vsel %vm1238, 0.0, -1e+30
      %v1255 = vsel %vm1239, 0.0, -1e+30
      %v1256 = vsel %vm1240, 0.0, -1e+30
      %v1257 = vsel %vm1241, 0.0, -1e+30
      %vm1258 = vcmask 64512
      %v1260 = vsel %vm1258, %v702, 0
      %v1263 = vsel %vm1258, %v703, 0
      %v1266 = vsel %vm1258, %v704, 0
      %v1269 = vsel %vm1258, %v705, 0
      %v1272 = vsel %vm1258, %v706, 0
      %v1275 = vsel %vm1258, %v707, 0
      %v1278 = vsel %vm1258, %v708, 0
      %v1281 = vsel %vm1258, %v709, 0
      %v1284 = vsel %vm1258, %v710, 0
      %v1287 = vsel %vm1258, %v711, 0
      %v1290 = vsel %vm1258, %v712, 0
      %v1293 = vsel %vm1258, %v713, 0
      %v1296 = vsel %vm1258, %v714, 0
      %v1299 = vsel %vm1258, %v715, 0
      %v1302 = vsel %vm1258, %v716, 0
      %v1305 = vsel %vm1258, %v717, 0
      %v1308 = vsel %vm1258, %v938, 0
      %v1311 = vsel %vm1258, %v939, 0
      %v1314 = vsel %vm1258, %v940, 0
      %v1317 = vsel %vm1258, %v941, 0
      %v1320 = vsel %vm1258, %v942, 0
      %v1323 = vsel %vm1258, %v943, 0
      %v1326 = vsel %vm1258, %v944, 0
      %v1329 = vsel %vm1258, %v945, 0
      %v1332 = vsel %vm1258, %v946, 0
      %v1335 = vsel %vm1258, %v947, 0
      %v1338 = vsel %vm1258, %v948, 0
      %v1341 = vsel %vm1258, %v949, 0
      %v1344 = vsel %vm1258, %v950, 0
      %v1347 = vsel %vm1258, %v951, 0
      %v1350 = vsel %vm1258, %v952, 0
      %v1353 = vsel %vm1258, %v953, 0
      %1355 = vmatprep.subr.mxu0 0.0
      %1356 = vmatpush1.xpose.msra.mxu0 %v1308
      %1357 = vmatprep.subr.mxu0 0.0
      %1358 = vmatpush1.xpose.msra.mxu0 %v1311
      %1359 = vmatprep.subr.mxu0 0.0
      %1360 = vmatpush1.xpose.msra.mxu0 %v1314
      %1361 = vmatprep.subr.mxu0 0.0
      %1362 = vmatpush1.xpose.msra.mxu0 %v1317
      %1363 = vmatprep.subr.mxu0 0.0
      %1364 = vmatpush1.xpose.msra.mxu0 %v1320
      %1365 = vmatprep.subr.mxu0 0.0
      %1366 = vmatpush1.xpose.msra.mxu0 %v1323
      %1367 = vmatprep.subr.mxu0 0.0
      %1368 = vmatpush1.xpose.msra.mxu0 %v1326
      %1369 = vmatprep.subr.mxu0 0.0
      %1370 = vmatpush1.xpose.msra.mxu0 %v1329
      %1371 = vmatprep.subr.mxu0 0.0
      %1372 = vmatpush1.xpose.msra.mxu0 %v1332
      %1373 = vmatprep.subr.mxu0 0.0
      %1374 = vmatpush1.xpose.msra.mxu0 %v1335
      %1375 = vmatprep.subr.mxu0 0.0
      %1376 = vmatpush1.xpose.msra.mxu0 %v1338
      %1377 = vmatprep.subr.mxu0 0.0
      %1378 = vmatpush1.xpose.msra.mxu0 %v1341
      %1379 = vmatprep.subr.mxu0 0.0
      %1380 = vmatpush1.xpose.msra.mxu0 %v1344
      %1381 = vmatprep.subr.mxu0 0.0
      %1382 = vmatpush1.xpose.msra.mxu0 %v1347
      %1383 = vmatprep.subr.mxu0 0.0
      %1384 = vmatpush1.xpose.msra.mxu0 %v1350
      %1385 = vmatprep.subr.mxu0 0.0
      %1386 = vmatpush1.xpose.msra.mxu0 %v1353
      %1387 = vmatprep.subr.mxu0 0.0
      %1388 = vmatpush1.xpose.msra.mxu0 0.0
      %1389 = vmatprep.subr.mxu0 0.0
      %1390 = vmatpush1.xpose.msra.mxu0 0.0
      %1391 = vmatprep.subr.mxu0 0.0
      %1392 = vmatpush1.xpose.msra.mxu0 0.0
      %1393 = vmatprep.subr.mxu0 0.0
      %1394 = vmatpush1.xpose.msra.mxu0 0.0
      %1395 = vmatprep.subr.mxu0 0.0
      %1396 = vmatpush1.xpose.msra.mxu0 0.0
      %1397 = vmatprep.subr.mxu0 0.0
      %1398 = vmatpush1.xpose.msra.mxu0 0.0
      %1399 = vmatprep.subr.mxu0 0.0
      %1400 = vmatpush1.xpose.msra.mxu0 0.0
      %1401 = vmatprep.subr.mxu0 0.0
      %1402 = vmatpush1.xpose.msra.mxu0 0.0
      %1403 = vmatprep.subr.mxu0 0.0
      %1404 = vmatpush1.xpose.msra.mxu0 0.0
      %1405 = vmatprep.subr.mxu0 0.0
      %1406 = vmatpush1.xpose.msra.mxu0 0.0
      %1407 = vmatprep.subr.mxu0 0.0
      %1408 = vmatpush1.xpose.msra.mxu0 0.0
      %1409 = vmatprep.subr.mxu0 0.0
      %1410 = vmatpush1.xpose.msra.mxu0 0.0
      %1411 = vmatprep.subr.mxu0 0.0
      %1412 = vmatpush1.xpose.msra.mxu0 0.0
      %1413 = vmatprep.subr.mxu0 0.0
      %1414 = vmatpush1.xpose.msra.mxu0 0.0
      %1415 = vmatprep.subr.mxu0 0.0
      %1416 = vmatpush1.xpose.msra.mxu0 0.0
      %1417 = vmatprep.subr.mxu0 0.0
      %1418 = vmatpush1.xpose.msra.mxu0 0.0
      %1419 = vmatprep.mubr.f32.mxu0 0.0
      %1420 = vmatmul.mubr.f32.gmra.mrb[0].mxu0 %v1260
      %v1421 = vpop.f32.mrb[0].mxu0
      %v1422 = vadd.f32 %v1242, %v1421
      %v1423 = vpop.f32.mrb[0].mxu0
      %1424 = vmatprep.mubr.f32.mxu0 0.0
      %1425 = vmatmul.mubr.f32.gmra.mrb[0].mxu0 %v1263
      %v1426 = vpop.f32.mrb[0].mxu0
      %v1427 = vadd.f32 %v1243, %v1426
      %v1428 = vpop.f32.mrb[0].mxu0
      %1429 = vmatprep.mubr.f32.mxu0 0.0
      %1430 = vmatmul.mubr.f32.gmra.mrb[0].mxu0 %v1266
      %v1431 = vpop.f32.mrb[0].mxu0
      %v1432 = vadd.f32 %v1244, %v1431
      %v1433 = vpop.f32.mrb[0].mxu0
      %1434 = vmatprep.mubr.f32.mxu0 0.0
      %1435 = vmatmul.mubr.f32.gmra.mrb[0].mxu0 %v1269
      %v1436 = vpop.f32.mrb[0].mxu0
      %v1437 = vadd.f32 %v1245, %v1436
      %v1438 = vpop.f32.mrb[0].mxu0
      %1439 = vmatprep.mubr.f32.mxu0 0.0
      %1440 = vmatmul.mubr.f32.gmra.mrb[0].mxu0 %v1272
      %v1441 = vpop.f32.mrb[0].mxu0
      %v1442 = vadd.f32 %v1246, %v1441
      %v1443 = vpop.f32.mrb[0].mxu0
      %1444 = vmatprep.mubr.f32.mxu0 0.0
      %1445 = vmatmul.mubr.f32.gmra.mrb[0].mxu0 %v1275
      %v1446 = vpop.f32.mrb[0].mxu0
      %v1447 = vadd.f32 %v1247, %v1446
      %v1448 = vpop.f32.mrb[0].mxu0
      %1449 = vmatprep.mubr.f32.mxu0 0.0
      %1450 = vmatmul.mubr.f32.gmra.mrb[0].mxu0 %v1278
      %v1451 = vpop.f32.mrb[0].mxu0
      %v1452 = vadd.f32 %v1248, %v1451
      %v1453 = vpop.f32.mrb[0].mxu0
      %1454 = vmatprep.mubr.f32.mxu0 0.0
      %1455 = vmatmul.mubr.f32.gmra.mrb[0].mxu0 %v1281
      %v1456 = vpop.f32.mrb[0].mxu0
      %v1457 = vadd.f32 %v1249, %v1456
      %v1458 = vpop.f32.mrb[0].mxu0
      %1459 = vmatprep.mubr.f32.mxu0 0.0
      %1460 = vmatmul.mubr.f32.gmra.mrb[0].mxu0 %v1284
      %v1461 = vpop.f32.mrb[0].mxu0
      %v1462 = vadd.f32 %v1250, %v1461
      %v1463 = vpop.f32.mrb[0].mxu0
      %1464 = vmatprep.mubr.f32.mxu0 0.0
      %1465 = vmatmul.mubr.f32.gmra.mrb[0].mxu0 %v1287
      %v1466 = vpop.f32.mrb[0].mxu0
      %v1467 = vadd.f32 %v1251, %v1466
      %v1468 = vpop.f32.mrb[0].mxu0
      %1469 = vmatprep.mubr.f32.mxu0 0.0
      %1470 = vmatmul.mubr.f32.gmra.mrb[0].mxu0 %v1290
      %v1471 = vpop.f32.mrb[0].mxu0
      %v1472 = vadd.f32 %v1252, %v1471
      %v1473 = vpop.f32.mrb[0].mxu0
      %1474 = vmatprep.mubr.f32.mxu0 0.0
      %1475 = vmatmul.mubr.f32.gmra.mrb[0].mxu0 %v1293
      %v1476 = vpop.f32.mrb[0].mxu0
      %v1477 = vadd.f32 %v1253, %v1476
      %v1478 = vpop.f32.mrb[0].mxu0
      %1479 = vmatprep.mubr.f32.mxu0 0.0
      %1480 = vmatmul.mubr.f32.gmra.mrb[0].mxu0 %v1296
      %v1481 = vpop.f32.mrb[0].mxu0
      %v1482 = vadd.f32 %v1254, %v1481
      %v1483 = vpop.f32.mrb[0].mxu0
      %1484 = vmatprep.mubr.f32.mxu0 0.0
      %1485 = vmatmul.mubr.f32.gmra.mrb[0].mxu0 %v1299
      %v1486 = vpop.f32.mrb[0].mxu0
      %v1487 = vadd.f32 %v1255, %v1486
      %v1488 = vpop.f32.mrb[0].mxu0
      %1489 = vmatprep.mubr.f32.mxu0 0.0
      %1490 = vmatmul.mubr.f32.gmra.mrb[0].mxu0 %v1302
      %v1491 = vpop.f32.mrb[0].mxu0
      %v1492 = vadd.f32 %v1256, %v1491
      %v1493 = vpop.f32.mrb[0].mxu0
      %1494 = vmatprep.mubr.f32.mxu0 0.0
      %1495 = vmatmul.mubr.f32.gmra.mrb[0].mxu0 %v1305
      %v1496 = vpop.f32.mrb[0].mxu0
      %v1497 = vadd.f32 %v1257, %v1496
      %v1498 = vpop.f32.mrb[0].mxu0
      %1499 = vdwg.mxu0
      %1500 = vmax.xlane.f32.xlu0 %v1422
      %v1501 = vpop.xlane.xlu0 %1500
      %1502 = vmax.xlane.f32.xlu0 %v1427
      %v1503 = vpop.xlane.xlu0 %1502
      %1504 = vmax.xlane.f32.xlu0 %v1432
      %v1505 = vpop.xlane.xlu0 %1504
      %1506 = vmax.xlane.f32.xlu0 %v1437
      %v1507 = vpop.xlane.xlu0 %1506
      %1508 = vmax.xlane.f32.xlu0 %v1442
      %v1509 = vpop.xlane.xlu0 %1508
      %1510 = vmax.xlane.f32.xlu0 %v1447
      %v1511 = vpop.xlane.xlu0 %1510
      %1512 = vmax.xlane.f32.xlu0 %v1452
      %v1513 = vpop.xlane.xlu0 %1512
      %1514 = vmax.xlane.f32.xlu0 %v1457
      %v1515 = vpop.xlane.xlu0 %1514
      %1516 = vmax.xlane.f32.xlu0 %v1462
      %v1517 = vpop.xlane.xlu0 %1516
      %1518 = vmax.xlane.f32.xlu0 %v1467
      %v1519 = vpop.xlane.xlu0 %1518
      %1520 = vmax.xlane.f32.xlu0 %v1472
      %v1521 = vpop.xlane.xlu0 %1520
      %1522 = vmax.xlane.f32.xlu0 %v1477
      %v1523 = vpop.xlane.xlu0 %1522
      %1524 = vmax.xlane.f32.xlu0 %v1482
      %v1525 = vpop.xlane.xlu0 %1524
      %1526 = vmax.xlane.f32.xlu0 %v1487
      %v1527 = vpop.xlane.xlu0 %1526
      %1528 = vmax.xlane.f32.xlu0 %v1492
      %v1529 = vpop.xlane.xlu0 %1528
      %1530 = vmax.xlane.f32.xlu0 %v1497
      %v1531 = vpop.xlane.xlu0 %1530
      %v1532 = vsub.f32 %v1422, %v1501
      %v1533 = vsub.f32 %v1427, %v1503
      %v1534 = vsub.f32 %v1432, %v1505
      %v1535 = vsub.f32 %v1437, %v1507
      %v1536 = vsub.f32 %v1442, %v1509
      %v1537 = vsub.f32 %v1447, %v1511
      %v1538 = vsub.f32 %v1452, %v1513
      %v1539 = vsub.f32 %v1457, %v1515
      %v1540 = vsub.f32 %v1462, %v1517
      %v1541 = vsub.f32 %v1467, %v1519
      %v1542 = vsub.f32 %v1472, %v1521
      %v1543 = vsub.f32 %v1477, %v1523
      %v1544 = vsub.f32 %v1482, %v1525
      %v1545 = vsub.f32 %v1487, %v1527
      %v1546 = vsub.f32 %v1492, %v1529
      %v1547 = vsub.f32 %v1497, %v1531
      %v1548 = vmul.f32 %v1532, 1.442695
      %v1549 = vpow.pop %v1548
      %v1550 = vmul.f32 %v1533, 1.442695
      %v1551 = vpow.pop %v1550
      %v1552 = vmul.f32 %v1534, 1.442695
      %v1553 = vpow.pop %v1552
      %v1554 = vmul.f32 %v1535, 1.442695
      %v1555 = vpow.pop %v1554
      %v1556 = vmul.f32 %v1536, 1.442695
      %v1557 = vpow.pop %v1556
      %v1558 = vmul.f32 %v1537, 1.442695
      %v1559 = vpow.pop %v1558
      %v1560 = vmul.f32 %v1538, 1.442695
      %v1561 = vpow.pop %v1560
      %v1562 = vmul.f32 %v1539, 1.442695
      %v1563 = vpow.pop %v1562
      %v1564 = vmul.f32 %v1540, 1.442695
      %v1565 = vpow.pop %v1564
      %v1566 = vmul.f32 %v1541, 1.442695
      %v1567 = vpow.pop %v1566
      %v1568 = vmul.f32 %v1542, 1.442695
      %v1569 = vpow.pop %v1568
      %v1570 = vmul.f32 %v1543, 1.442695
      %v1571 = vpow.pop %v1570
      %v1572 = vmul.f32 %v1544, 1.442695
      %v1573 = vpow.pop %v1572
      %v1574 = vmul.f32 %v1545, 1.442695
      %v1575 = vpow.pop %v1574
      %v1576 = vmul.f32 %v1546, 1.442695
      %v1577 = vpow.pop %v1576
      %v1578 = vmul.f32 %v1547, 1.442695
      %v1579 = vpow.pop %v1578
      %1580 = vadd.xlane.f32.xlu0 %v1549
      %v1581 = vpop.xlane.xlu0 %1580
      %1582 = vadd.xlane.f32.xlu0 %v1551
      %v1583 = vpop.xlane.xlu0 %1582
      %1584 = vadd.xlane.f32.xlu0 %v1553
      %v1585 = vpop.xlane.xlu0 %1584
      %1586 = vadd.xlane.f32.xlu0 %v1555
      %v1587 = vpop.xlane.xlu0 %1586
      %1588 = vadd.xlane.f32.xlu0 %v1557
      %v1589 = vpop.xlane.xlu0 %1588
      %1590 = vadd.xlane.f32.xlu0 %v1559
      %v1591 = vpop.xlane.xlu0 %1590
      %1592 = vadd.xlane.f32.xlu0 %v1561
      %v1593 = vpop.xlane.xlu0 %1592
      %1594 = vadd.xlane.f32.xlu0 %v1563
      %v1595 = vpop.xlane.xlu0 %1594
      %1596 = vadd.xlane.f32.xlu0 %v1565
      %v1597 = vpop.xlane.xlu0 %1596
      %1598 = vadd.xlane.f32.xlu0 %v1567
      %v1599 = vpop.xlane.xlu0 %1598
      %1600 = vadd.xlane.f32.xlu0 %v1569
      %v1601 = vpop.xlane.xlu0 %1600
      %1602 = vadd.xlane.f32.xlu0 %v1571
      %v1603 = vpop.xlane.xlu0 %1602
      %1604 = vadd.xlane.f32.xlu0 %v1573
      %v1605 = vpop.xlane.xlu0 %1604
      %1606 = vadd.xlane.f32.xlu0 %v1575
      %v1607 = vpop.xlane.xlu0 %1606
      %1608 = vadd.xlane.f32.xlu0 %v1577
      %v1609 = vpop.xlane.xlu0 %1608
      %1610 = vadd.xlane.f32.xlu0 %v1579
      %v1611 = vpop.xlane.xlu0 %1610
      %v1612 = vrcp.pop %v1581
      %v1613 = vrcp.pop %v1583
      %v1614 = vrcp.pop %v1585
      %v1615 = vrcp.pop %v1587
      %v1616 = vrcp.pop %v1589
      %v1617 = vrcp.pop %v1591
      %v1618 = vrcp.pop %v1593
      %v1619 = vrcp.pop %v1595
      %v1620 = vrcp.pop %v1597
      %v1621 = vrcp.pop %v1599
      %v1622 = vrcp.pop %v1601
      %v1623 = vrcp.pop %v1603
      %v1624 = vrcp.pop %v1605
      %v1625 = vrcp.pop %v1607
      %v1626 = vrcp.pop %v1609
      %v1627 = vrcp.pop %v1611
      %v1628 = vmul.f32 %v1549, %v1612
      %v1629 = vmul.f32 %v1551, %v1613
      %v1630 = vmul.f32 %v1553, %v1614
      %v1631 = vmul.f32 %v1555, %v1615
      %v1632 = vmul.f32 %v1557, %v1616
      %v1633 = vmul.f32 %v1559, %v1617
      %v1634 = vmul.f32 %v1561, %v1618
      %v1635 = vmul.f32 %v1563, %v1619
      %v1636 = vmul.f32 %v1565, %v1620
      %v1637 = vmul.f32 %v1567, %v1621
      %v1638 = vmul.f32 %v1569, %v1622
      %v1639 = vmul.f32 %v1571, %v1623
      %v1640 = vmul.f32 %v1573, %v1624
      %v1641 = vmul.f32 %v1575, %v1625
      %v1642 = vmul.f32 %v1577, %v1626
      %v1643 = vmul.f32 %v1579, %v1627
      %1644 = vmatprep.subr.mxu0 0.0
      %1645 = vmatpush1.msra.mxu0 %v1174
      %1646 = vmatprep.subr.mxu0 0.0
      %1647 = vmatpush1.msra.mxu0 %v1175
      %1648 = vmatprep.subr.mxu0 0.0
      %1649 = vmatpush1.msra.mxu0 %v1176
      %1650 = vmatprep.subr.mxu0 0.0
      %1651 = vmatpush1.msra.mxu0 %v1177
      %1652 = vmatprep.subr.mxu0 0.0
      %1653 = vmatpush1.msra.mxu0 %v1178
      %1654 = vmatprep.subr.mxu0 0.0
      %1655 = vmatpush1.msra.mxu0 %v1179
      %1656 = vmatprep.subr.mxu0 0.0
      %1657 = vmatpush1.msra.mxu0 %v1180
      %1658 = vmatprep.subr.mxu0 0.0
      %1659 = vmatpush1.msra.mxu0 %v1181
      %1660 = vmatprep.subr.mxu0 0.0
      %1661 = vmatpush1.msra.mxu0 %v1182
      %1662 = vmatprep.subr.mxu0 0.0
      %1663 = vmatpush1.msra.mxu0 %v1183
      %1664 = vmatprep.subr.mxu0 0.0
      %1665 = vmatpush1.msra.mxu0 %v1184
      %1666 = vmatprep.subr.mxu0 0.0
      %1667 = vmatpush1.msra.mxu0 %v1185
      %1668 = vmatprep.subr.mxu0 0.0
      %1669 = vmatpush1.msra.mxu0 %v1186
      %1670 = vmatprep.subr.mxu0 0.0
      %1671 = vmatpush1.msra.mxu0 %v1187
      %1672 = vmatprep.subr.mxu0 0.0
      %1673 = vmatpush1.msra.mxu0 %v1188
      %1674 = vmatprep.subr.mxu0 0.0
      %1675 = vmatpush1.msra.mxu0 %v1189
      %1676 = vmatprep.subr.mxu0 0.0
      %1677 = vmatpush1.msra.mxu0 0.0
      %1678 = vmatprep.subr.mxu0 0.0
      %1679 = vmatpush1.msra.mxu0 0.0
      %1680 = vmatprep.subr.mxu0 0.0
      %1681 = vmatpush1.msra.mxu0 0.0
      %1682 = vmatprep.subr.mxu0 0.0
      %1683 = vmatpush1.msra.mxu0 0.0
      %1684 = vmatprep.subr.mxu0 0.0
      %1685 = vmatpush1.msra.mxu0 0.0
      %1686 = vmatprep.subr.mxu0 0.0
      %1687 = vmatpush1.msra.mxu0 0.0
      %1688 = vmatprep.subr.mxu0 0.0
      %1689 = vmatpush1.msra.mxu0 0.0
      %1690 = vmatprep.subr.mxu0 0.0
      %1691 = vmatpush1.msra.mxu0 0.0
      %1692 = vmatprep.subr.mxu0 0.0
      %1693 = vmatpush1.msra.mxu0 0.0
      %1694 = vmatprep.subr.mxu0 0.0
      %1695 = vmatpush1.msra.mxu0 0.0
      %1696 = vmatprep.subr.mxu0 0.0
      %1697 = vmatpush1.msra.mxu0 0.0
      %1698 = vmatprep.subr.mxu0 0.0
      %1699 = vmatpush1.msra.mxu0 0.0
      %1700 = vmatprep.subr.mxu0 0.0
      %1701 = vmatpush1.msra.mxu0 0.0
      %1702 = vmatprep.subr.mxu0 0.0
      %1703 = vmatpush1.msra.mxu0 0.0
      %1704 = vmatprep.subr.mxu0 0.0
      %1705 = vmatpush1.msra.mxu0 0.0
      %1706 = vmatprep.subr.mxu0 0.0
      %1707 = vmatpush1.msra.mxu0 0.0
      %1708 = vmatprep.mubr.f32.mxu0 0.0
      %1709 = vmatmul.mubr.f32.gmra.mrb[0].mxu0 %v1628
      %v1710 = vpop.f32.mrb[0].mxu0
      %v1711 = vadd.f32 0.0, %v1710
      %v1712 = vpop.f32.mrb[0].mxu0
      %1713 = vmatprep.mubr.f32.mxu0 0.0
      %1714 = vmatmul.mubr.f32.gmra.mrb[0].mxu0 %v1629
      %v1715 = vpop.f32.mrb[0].mxu0
      %v1716 = vadd.f32 0.0, %v1715
      %v1717 = vpop.f32.mrb[0].mxu0
      %1718 = vmatprep.mubr.f32.mxu0 0.0
      %1719 = vmatmul.mubr.f32.gmra.mrb[0].mxu0 %v1630
      %v1720 = vpop.f32.mrb[0].mxu0
      %v1721 = vadd.f32 0.0, %v1720
      %v1722 = vpop.f32.mrb[0].mxu0
      %1723 = vmatprep.mubr.f32.mxu0 0.0
      %1724 = vmatmul.mubr.f32.gmra.mrb[0].mxu0 %v1631
      %v1725 = vpop.f32.mrb[0].mxu0
      %v1726 = vadd.f32 0.0, %v1725
      %v1727 = vpop.f32.mrb[0].mxu0
      %1728 = vmatprep.mubr.f32.mxu0 0.0
      %1729 = vmatmul.mubr.f32.gmra.mrb[0].mxu0 %v1632
      %v1730 = vpop.f32.mrb[0].mxu0
      %v1731 = vadd.f32 0.0, %v1730
      %v1732 = vpop.f32.mrb[0].mxu0
      %1733 = vmatprep.mubr.f32.mxu0 0.0
      %1734 = vmatmul.mubr.f32.gmra.mrb[0].mxu0 %v1633
      %v1735 = vpop.f32.mrb[0].mxu0
      %v1736 = vadd.f32 0.0, %v1735
      %v1737 = vpop.f32.mrb[0].mxu0
      %1738 = vmatprep.mubr.f32.mxu0 0.0
      %1739 = vmatmul.mubr.f32.gmra.mrb[0].mxu0 %v1634
      %v1740 = vpop.f32.mrb[0].mxu0
      %v1741 = vadd.f32 0.0, %v1740
      %v1742 = vpop.f32.mrb[0].mxu0
      %1743 = vmatprep.mubr.f32.mxu0 0.0
      %1744 = vmatmul.mubr.f32.gmra.mrb[0].mxu0 %v1635
      %v1745 = vpop.f32.mrb[0].mxu0
      %v1746 = vadd.f32 0.0, %v1745
      %v1747 = vpop.f32.mrb[0].mxu0
      %1748 = vmatprep.mubr.f32.mxu0 0.0
      %1749 = vmatmul.mubr.f32.gmra.mrb[0].mxu0 %v1636
      %v1750 = vpop.f32.mrb[0].mxu0
      %v1751 = vadd.f32 0.0, %v1750
      %v1752 = vpop.f32.mrb[0].mxu0
      %1753 = vmatprep.mubr.f32.mxu0 0.0
      %1754 = vmatmul.mubr.f32.gmra.mrb[0].mxu0 %v1637
      %v1755 = vpop.f32.mrb[0].mxu0
      %v1756 = vadd.f32 0.0, %v1755
      %v1757 = vpop.f32.mrb[0].mxu0
      %1758 = vmatprep.mubr.f32.mxu0 0.0
      %1759 = vmatmul.mubr.f32.gmra.mrb[0].mxu0 %v1638
      %v1760 = vpop.f32.mrb[0].mxu0
      %v1761 = vadd.f32 0.0, %v1760
      %v1762 = vpop.f32.mrb[0].mxu0
      %1763 = vmatprep.mubr.f32.mxu0 0.0
      %1764 = vmatmul.mubr.f32.gmra.mrb[0].mxu0 %v1639
      %v1765 = vpop.f32.mrb[0].mxu0
      %v1766 = vadd.f32 0.0, %v1765
      %v1767 = vpop.f32.mrb[0].mxu0
      %1768 = vmatprep.mubr.f32.mxu0 0.0
      %1769 = vmatmul.mubr.f32.gmra.mrb[0].mxu0 %v1640
      %v1770 = vpop.f32.mrb[0].mxu0
      %v1771 = vadd.f32 0.0, %v1770
      %v1772 = vpop.f32.mrb[0].mxu0
      %1773 = vmatprep.mubr.f32.mxu0 0.0
      %1774 = vmatmul.mubr.f32.gmra.mrb[0].mxu0 %v1641
      %v1775 = vpop.f32.mrb[0].mxu0
      %v1776 = vadd.f32 0.0, %v1775
      %v1777 = vpop.f32.mrb[0].mxu0
      %1778 = vmatprep.mubr.f32.mxu0 0.0
      %1779 = vmatmul.mubr.f32.gmra.mrb[0].mxu0 %v1642
      %v1780 = vpop.f32.mrb[0].mxu0
      %v1781 = vadd.f32 0.0, %v1780
      %v1782 = vpop.f32.mrb[0].mxu0
      %1783 = vmatprep.mubr.f32.mxu0 0.0
      %1784 = vmatmul.mubr.f32.gmra.mrb[0].mxu0 %v1643
      %v1785 = vpop.f32.mrb[0].mxu0
      %v1786 = vadd.f32 0.0, %v1785
      %v1787 = vpop.f32.mrb[0].mxu0
      %1788 = vdwg.mxu0
      %1789 = vrot.lane.b32.xlu0 %v702, 120
      %v1790 = vpop.permute.xlu0 %1789
      %1791 = vrot.lane.b32.xlu0 %v703, 120
      %v1792 = vpop.permute.xlu0 %1791
      %1793 = vrot.lane.b32.xlu0 %v704, 120
      %v1794 = vpop.permute.xlu0 %1793
      %1795 = vrot.lane.b32.xlu0 %v705, 120
      %v1796 = vpop.permute.xlu0 %1795
      %1797 = vrot.lane.b32.xlu0 %v706, 120
      %v1798 = vpop.permute.xlu0 %1797
      %1799 = vrot.lane.b32.xlu0 %v707, 120
      %v1800 = vpop.permute.xlu0 %1799
      %1801 = vrot.lane.b32.xlu0 %v708, 120
      %v1802 = vpop.permute.xlu0 %1801
      %1803 = vrot.lane.b32.xlu0 %v709, 120
      %v1804 = vpop.permute.xlu0 %1803
      %1805 = vrot.lane.b32.xlu0 %v710, 120
      %v1806 = vpop.permute.xlu0 %1805
      %1807 = vrot.lane.b32.xlu0 %v711, 120
      %v1808 = vpop.permute.xlu0 %1807
      %1809 = vrot.lane.b32.xlu0 %v712, 120
      %v1810 = vpop.permute.xlu0 %1809
      %1811 = vrot.lane.b32.xlu0 %v713, 120
      %v1812 = vpop.permute.xlu0 %1811
      %1813 = vrot.lane.b32.xlu0 %v714, 120
      %v1814 = vpop.permute.xlu0 %1813
      %1815 = vrot.lane.b32.xlu0 %v715, 120
      %v1816 = vpop.permute.xlu0 %1815
      %1817 = vrot.lane.b32.xlu0 %v716, 120
      %v1818 = vpop.permute.xlu0 %1817
      %1819 = vrot.lane.b32.xlu0 %v717, 120
      %v1820 = vpop.permute.xlu0 %1819
      %1821 = vrot.lane.b32.xlu0 %v938, 120
      %v1822 = vpop.permute.xlu0 %1821
      %1823 = vrot.lane.b32.xlu0 %v939, 120
      %v1824 = vpop.permute.xlu0 %1823
      %1825 = vrot.lane.b32.xlu0 %v940, 120
      %v1826 = vpop.permute.xlu0 %1825
      %1827 = vrot.lane.b32.xlu0 %v941, 120
      %v1828 = vpop.permute.xlu0 %1827
      %1829 = vrot.lane.b32.xlu0 %v942, 120
      %v1830 = vpop.permute.xlu0 %1829
      %1831 = vrot.lane.b32.xlu0 %v943, 120
      %v1832 = vpop.permute.xlu0 %1831
      %1833 = vrot.lane.b32.xlu0 %v944, 120
      %v1834 = vpop.permute.xlu0 %1833
      %1835 = vrot.lane.b32.xlu0 %v945, 120
      %v1836 = vpop.permute.xlu0 %1835
      %1837 = vrot.lane.b32.xlu0 %v946, 120
      %v1838 = vpop.permute.xlu0 %1837
      %1839 = vrot.lane.b32.xlu0 %v947, 120
      %v1840 = vpop.permute.xlu0 %1839
      %1841 = vrot.lane.b32.xlu0 %v948, 120
      %v1842 = vpop.permute.xlu0 %1841
      %1843 = vrot.lane.b32.xlu0 %v949, 120
      %v1844 = vpop.permute.xlu0 %1843
      %1845 = vrot.lane.b32.xlu0 %v950, 120
      %v1846 = vpop.permute.xlu0 %1845
      %1847 = vrot.lane.b32.xlu0 %v951, 120
      %v1848 = vpop.permute.xlu0 %1847
      %1849 = vrot.lane.b32.xlu0 %v952, 120
      %v1850 = vpop.permute.xlu0 %1849
      %1851 = vrot.lane.b32.xlu0 %v953, 120
      %v1852 = vpop.permute.xlu0 %1851
      %v1853 = vsel %vm1258, %v1790, 0
      %v1855 = vsel %vm1258, %v1792, 0
      %v1857 = vsel %vm1258, %v1794, 0
      %v1859 = vsel %vm1258, %v1796, 0
      %v1861 = vsel %vm1258, %v1798, 0
      %v1863 = vsel %vm1258, %v1800, 0
      %v1865 = vsel %vm1258, %v1802, 0
      %v1867 = vsel %vm1258, %v1804, 0
      %v1869 = vsel %vm1258, %v1806, 0
      %v1871 = vsel %vm1258, %v1808, 0
      %v1873 = vsel %vm1258, %v1810, 0
      %v1875 = vsel %vm1258, %v1812, 0
      %v1877 = vsel %vm1258, %v1814, 0
      %v1879 = vsel %vm1258, %v1816, 0
      %v1881 = vsel %vm1258, %v1818, 0
      %v1883 = vsel %vm1258, %v1820, 0
      %v1885 = vsel %vm1258, %v1822, 0
      %v1887 = vsel %vm1258, %v1824, 0
      %v1889 = vsel %vm1258, %v1826, 0
      %v1891 = vsel %vm1258, %v1828, 0
      %v1893 = vsel %vm1258, %v1830, 0
      %v1895 = vsel %vm1258, %v1832, 0
      %v1897 = vsel %vm1258, %v1834, 0
      %v1899 = vsel %vm1258, %v1836, 0
      %v1901 = vsel %vm1258, %v1838, 0
      %v1903 = vsel %vm1258, %v1840, 0
      %v1905 = vsel %vm1258, %v1842, 0
      %v1907 = vsel %vm1258, %v1844, 0
      %v1909 = vsel %vm1258, %v1846, 0
      %v1911 = vsel %vm1258, %v1848, 0
      %v1913 = vsel %vm1258, %v1850, 0
      %v1915 = vsel %vm1258, %v1852, 0
      %1917 = vmatprep.subr.mxu0 0.0
      %1918 = vmatpush1.xpose.msra.mxu0 %v1885
      %1919 = vmatprep.subr.mxu0 0.0
      %1920 = vmatpush1.xpose.msra.mxu0 %v1887
      %1921 = vmatprep.subr.mxu0 0.0
      %1922 = vmatpush1.xpose.msra.mxu0 %v1889
      %1923 = vmatprep.subr.mxu0 0.0
      %1924 = vmatpush1.xpose.msra.mxu0 %v1891
      %1925 = vmatprep.subr.mxu0 0.0
      %1926 = vmatpush1.xpose.msra.mxu0 %v1893
      %1927 = vmatprep.subr.mxu0 0.0
      %1928 = vmatpush1.xpose.msra.mxu0 %v1895
      %1929 = vmatprep.subr.mxu0 0.0
      %1930 = vmatpush1.xpose.msra.mxu0 %v1897
      %1931 = vmatprep.subr.mxu0 0.0
      %1932 = vmatpush1.xpose.msra.mxu0 %v1899
      %1933 = vmatprep.subr.mxu0 0.0
      %1934 = vmatpush1.xpose.msra.mxu0 %v1901
      %1935 = vmatprep.subr.mxu0 0.0
      %1936 = vmatpush1.xpose.msra.mxu0 %v1903
      %1937 = vmatprep.subr.mxu0 0.0
      %1938 = vmatpush1.xpose.msra.mxu0 %v1905
      %1939 = vmatprep.subr.mxu0 0.0
      %1940 = vmatpush1.xpose.msra.mxu0 %v1907
      %1941 = vmatprep.subr.mxu0 0.0
      %1942 = vmatpush1.xpose.msra.mxu0 %v1909
      %1943 = vmatprep.subr.mxu0 0.0
      %1944 = vmatpush1.xpose.msra.mxu0 %v1911
      %1945 = vmatprep.subr.mxu0 0.0
      %1946 = vmatpush1.xpose.msra.mxu0 %v1913
      %1947 = vmatprep.subr.mxu0 0.0
      %1948 = vmatpush1.xpose.msra.mxu0 %v1915
      %1949 = vmatprep.subr.mxu0 0.0
      %1950 = vmatpush1.xpose.msra.mxu0 0.0
      %1951 = vmatprep.subr.mxu0 0.0
      %1952 = vmatpush1.xpose.msra.mxu0 0.0
      %1953 = vmatprep.subr.mxu0 0.0
      %1954 = vmatpush1.xpose.msra.mxu0 0.0
      %1955 = vmatprep.subr.mxu0 0.0
      %1956 = vmatpush1.xpose.msra.mxu0 0.0
      %1957 = vmatprep.subr.mxu0 0.0
      %1958 = vmatpush1.xpose.msra.mxu0 0.0
      %1959 = vmatprep.subr.mxu0 0.0
      %1960 = vmatpush1.xpose.msra.mxu0 0.0
      %1961 = vmatprep.subr.mxu0 0.0
      %1962 = vmatpush1.xpose.msra.mxu0 0.0
      %1963 = vmatprep.subr.mxu0 0.0
      %1964 = vmatpush1.xpose.msra.mxu0 0.0
      %1965 = vmatprep.subr.mxu0 0.0
      %1966 = vmatpush1.xpose.msra.mxu0 0.0
      %1967 = vmatprep.subr.mxu0 0.0
      %1968 = vmatpush1.xpose.msra.mxu0 0.0
      %1969 = vmatprep.subr.mxu0 0.0
      %1970 = vmatpush1.xpose.msra.mxu0 0.0
      %1971 = vmatprep.subr.mxu0 0.0
      %1972 = vmatpush1.xpose.msra.mxu0 0.0
      %1973 = vmatprep.subr.mxu0 0.0
      %1974 = vmatpush1.xpose.msra.mxu0 0.0
      %1975 = vmatprep.subr.mxu0 0.0
      %1976 = vmatpush1.xpose.msra.mxu0 0.0
      %1977 = vmatprep.subr.mxu0 0.0
      %1978 = vmatpush1.xpose.msra.mxu0 0.0
      %1979 = vmatprep.subr.mxu0 0.0
      %1980 = vmatpush1.xpose.msra.mxu0 0.0
      %1981 = vmatprep.mubr.f32.mxu0 0.0
      %1982 = vmatmul.mubr.f32.gmra.mrb[0].mxu0 %v1853
      %v1983 = vpop.f32.mrb[0].mxu0
      %v1984 = vadd.f32 %v1242, %v1983
      %v1985 = vpop.f32.mrb[0].mxu0
      %1986 = vmatprep.mubr.f32.mxu0 0.0
      %1987 = vmatmul.mubr.f32.gmra.mrb[0].mxu0 %v1855
      %v1988 = vpop.f32.mrb[0].mxu0
      %v1989 = vadd.f32 %v1243, %v1988
      %v1990 = vpop.f32.mrb[0].mxu0
      %1991 = vmatprep.mubr.f32.mxu0 0.0
      %1992 = vmatmul.mubr.f32.gmra.mrb[0].mxu0 %v1857
      %v1993 = vpop.f32.mrb[0].mxu0
      %v1994 = vadd.f32 %v1244, %v1993
      %v1995 = vpop.f32.mrb[0].mxu0
      %1996 = vmatprep.mubr.f32.mxu0 0.0
      %1997 = vmatmul.mubr.f32.gmra.mrb[0].mxu0 %v1859
      %v1998 = vpop.f32.mrb[0].mxu0
      %v1999 = vadd.f32 %v1245, %v1998
      %v2000 = vpop.f32.mrb[0].mxu0
      %2001 = vmatprep.mubr.f32.mxu0 0.0
      %2002 = vmatmul.mubr.f32.gmra.mrb[0].mxu0 %v1861
      %v2003 = vpop.f32.mrb[0].mxu0
      %v2004 = vadd.f32 %v1246, %v2003
      %v2005 = vpop.f32.mrb[0].mxu0
      %2006 = vmatprep.mubr.f32.mxu0 0.0
      %2007 = vmatmul.mubr.f32.gmra.mrb[0].mxu0 %v1863
      %v2008 = vpop.f32.mrb[0].mxu0
      %v2009 = vadd.f32 %v1247, %v2008
      %v2010 = vpop.f32.mrb[0].mxu0
      %2011 = vmatprep.mubr.f32.mxu0 0.0
      %2012 = vmatmul.mubr.f32.gmra.mrb[0].mxu0 %v1865
      %v2013 = vpop.f32.mrb[0].mxu0
      %v2014 = vadd.f32 %v1248, %v2013
      %v2015 = vpop.f32.mrb[0].mxu0
      %2016 = vmatprep.mubr.f32.mxu0 0.0
      %2017 = vmatmul.mubr.f32.gmra.mrb[0].mxu0 %v1867
      %v2018 = vpop.f32.mrb[0].mxu0
      %v2019 = vadd.f32 %v1249, %v2018
      %v2020 = vpop.f32.mrb[0].mxu0
      %2021 = vmatprep.mubr.f32.mxu0 0.0
      %2022 = vmatmul.mubr.f32.gmra.mrb[0].mxu0 %v1869
      %v2023 = vpop.f32.mrb[0].mxu0
      %v2024 = vadd.f32 %v1250, %v2023
      %v2025 = vpop.f32.mrb[0].mxu0
      %2026 = vmatprep.mubr.f32.mxu0 0.0
      %2027 = vmatmul.mubr.f32.gmra.mrb[0].mxu0 %v1871
      %v2028 = vpop.f32.mrb[0].mxu0
      %v2029 = vadd.f32 %v1251, %v2028
      %v2030 = vpop.f32.mrb[0].mxu0
      %2031 = vmatprep.mubr.f32.mxu0 0.0
      %2032 = vmatmul.mubr.f32.gmra.mrb[0].mxu0 %v1873
      %v2033 = vpop.f32.mrb[0].mxu0
      %v2034 = vadd.f32 %v1252, %v2033
      %v2035 = vpop.f32.mrb[0].mxu0
      %2036 = vmatprep.mubr.f32.mxu0 0.0
      %2037 = vmatmul.mubr.f32.gmra.mrb[0].mxu0 %v1875
      %v2038 = vpop.f32.mrb[0].mxu0
      %v2039 = vadd.f32 %v1253, %v2038
      %v2040 = vpop.f32.mrb[0].mxu0
      %2041 = vmatprep.mubr.f32.mxu0 0.0
      %2042 = vmatmul.mubr.f32.gmra.mrb[0].mxu0 %v1877
      %v2043 = vpop.f32.mrb[0].mxu0
      %v2044 = vadd.f32 %v1254, %v2043
      %v2045 = vpop.f32.mrb[0].mxu0
      %2046 = vmatprep.mubr.f32.mxu0 0.0
      %2047 = vmatmul.mubr.f32.gmra.mrb[0].mxu0 %v1879
      %v2048 = vpop.f32.mrb[0].mxu0
      %v2049 = vadd.f32 %v1255, %v2048
      %v2050 = vpop.f32.mrb[0].mxu0
      %2051 = vmatprep.mubr.f32.mxu0 0.0
      %2052 = vmatmul.mubr.f32.gmra.mrb[0].mxu0 %v1881
      %v2053 = vpop.f32.mrb[0].mxu0
      %v2054 = vadd.f32 %v1256, %v2053
      %v2055 = vpop.f32.mrb[0].mxu0
      %2056 = vmatprep.mubr.f32.mxu0 0.0
      %2057 = vmatmul.mubr.f32.gmra.mrb[0].mxu0 %v1883
      %v2058 = vpop.f32.mrb[0].mxu0
      %v2059 = vadd.f32 %v1257, %v2058
      %v2060 = vpop.f32.mrb[0].mxu0
      %2061 = vdwg.mxu0
      %2062 = vmax.xlane.f32.xlu0 %v1984
      %v2063 = vpop.xlane.xlu0 %2062
      %2064 = vmax.xlane.f32.xlu0 %v1989
      %v2065 = vpop.xlane.xlu0 %2064
      %2066 = vmax.xlane.f32.xlu0 %v1994
      %v2067 = vpop.xlane.xlu0 %2066
      %2068 = vmax.xlane.f32.xlu0 %v1999
      %v2069 = vpop.xlane.xlu0 %2068
      %2070 = vmax.xlane.f32.xlu0 %v2004
      %v2071 = vpop.xlane.xlu0 %2070
      %2072 = vmax.xlane.f32.xlu0 %v2009
      %v2073 = vpop.xlane.xlu0 %2072
      %2074 = vmax.xlane.f32.xlu0 %v2014
      %v2075 = vpop.xlane.xlu0 %2074
      %2076 = vmax.xlane.f32.xlu0 %v2019
      %v2077 = vpop.xlane.xlu0 %2076
      %2078 = vmax.xlane.f32.xlu0 %v2024
      %v2079 = vpop.xlane.xlu0 %2078
      %2080 = vmax.xlane.f32.xlu0 %v2029
      %v2081 = vpop.xlane.xlu0 %2080
      %2082 = vmax.xlane.f32.xlu0 %v2034
      %v2083 = vpop.xlane.xlu0 %2082
      %2084 = vmax.xlane.f32.xlu0 %v2039
      %v2085 = vpop.xlane.xlu0 %2084
      %2086 = vmax.xlane.f32.xlu0 %v2044
      %v2087 = vpop.xlane.xlu0 %2086
      %2088 = vmax.xlane.f32.xlu0 %v2049
      %v2089 = vpop.xlane.xlu0 %2088
      %2090 = vmax.xlane.f32.xlu0 %v2054
      %v2091 = vpop.xlane.xlu0 %2090
      %2092 = vmax.xlane.f32.xlu0 %v2059
      %v2093 = vpop.xlane.xlu0 %2092
      %v2094 = vsub.f32 %v1984, %v2063
      %v2095 = vsub.f32 %v1989, %v2065
      %v2096 = vsub.f32 %v1994, %v2067
      %v2097 = vsub.f32 %v1999, %v2069
      %v2098 = vsub.f32 %v2004, %v2071
      %v2099 = vsub.f32 %v2009, %v2073
      %v2100 = vsub.f32 %v2014, %v2075
      %v2101 = vsub.f32 %v2019, %v2077
      %v2102 = vsub.f32 %v2024, %v2079
      %v2103 = vsub.f32 %v2029, %v2081
      %v2104 = vsub.f32 %v2034, %v2083
      %v2105 = vsub.f32 %v2039, %v2085
      %v2106 = vsub.f32 %v2044, %v2087
      %v2107 = vsub.f32 %v2049, %v2089
      %v2108 = vsub.f32 %v2054, %v2091
      %v2109 = vsub.f32 %v2059, %v2093
      %v2110 = vmul.f32 %v2094, 1.442695
      %v2111 = vpow.pop %v2110
      %v2112 = vmul.f32 %v2095, 1.442695
      %v2113 = vpow.pop %v2112
      %v2114 = vmul.f32 %v2096, 1.442695
      %v2115 = vpow.pop %v2114
      %v2116 = vmul.f32 %v2097, 1.442695
      %v2117 = vpow.pop %v2116
      %v2118 = vmul.f32 %v2098, 1.442695
      %v2119 = vpow.pop %v2118
      %v2120 = vmul.f32 %v2099, 1.442695
      %v2121 = vpow.pop %v2120
      %v2122 = vmul.f32 %v2100, 1.442695
      %v2123 = vpow.pop %v2122
      %v2124 = vmul.f32 %v2101, 1.442695
      %v2125 = vpow.pop %v2124
      %v2126 = vmul.f32 %v2102, 1.442695
      %v2127 = vpow.pop %v2126
      %v2128 = vmul.f32 %v2103, 1.442695
      %v2129 = vpow.pop %v2128
      %v2130 = vmul.f32 %v2104, 1.442695
      %v2131 = vpow.pop %v2130
      %v2132 = vmul.f32 %v2105, 1.442695
      %v2133 = vpow.pop %v2132
      %v2134 = vmul.f32 %v2106, 1.442695
      %v2135 = vpow.pop %v2134
      %v2136 = vmul.f32 %v2107, 1.442695
      %v2137 = vpow.pop %v2136
      %v2138 = vmul.f32 %v2108, 1.442695
      %v2139 = vpow.pop %v2138
      %v2140 = vmul.f32 %v2109, 1.442695
      %v2141 = vpow.pop %v2140
      %2142 = vadd.xlane.f32.xlu0 %v2111
      %v2143 = vpop.xlane.xlu0 %2142
      %2144 = vadd.xlane.f32.xlu0 %v2113
      %v2145 = vpop.xlane.xlu0 %2144
      %2146 = vadd.xlane.f32.xlu0 %v2115
      %v2147 = vpop.xlane.xlu0 %2146
      %2148 = vadd.xlane.f32.xlu0 %v2117
      %v2149 = vpop.xlane.xlu0 %2148
      %2150 = vadd.xlane.f32.xlu0 %v2119
      %v2151 = vpop.xlane.xlu0 %2150
      %2152 = vadd.xlane.f32.xlu0 %v2121
      %v2153 = vpop.xlane.xlu0 %2152
      %2154 = vadd.xlane.f32.xlu0 %v2123
      %v2155 = vpop.xlane.xlu0 %2154
      %2156 = vadd.xlane.f32.xlu0 %v2125
      %v2157 = vpop.xlane.xlu0 %2156
      %2158 = vadd.xlane.f32.xlu0 %v2127
      %v2159 = vpop.xlane.xlu0 %2158
      %2160 = vadd.xlane.f32.xlu0 %v2129
      %v2161 = vpop.xlane.xlu0 %2160
      %2162 = vadd.xlane.f32.xlu0 %v2131
      %v2163 = vpop.xlane.xlu0 %2162
      %2164 = vadd.xlane.f32.xlu0 %v2133
      %v2165 = vpop.xlane.xlu0 %2164
      %2166 = vadd.xlane.f32.xlu0 %v2135
      %v2167 = vpop.xlane.xlu0 %2166
      %2168 = vadd.xlane.f32.xlu0 %v2137
      %v2169 = vpop.xlane.xlu0 %2168
      %2170 = vadd.xlane.f32.xlu0 %v2139
      %v2171 = vpop.xlane.xlu0 %2170
      %2172 = vadd.xlane.f32.xlu0 %v2141
      %v2173 = vpop.xlane.xlu0 %2172
      %v2174 = vrcp.pop %v2143
      %v2175 = vrcp.pop %v2145
      %v2176 = vrcp.pop %v2147
      %v2177 = vrcp.pop %v2149
      %v2178 = vrcp.pop %v2151
      %v2179 = vrcp.pop %v2153
      %v2180 = vrcp.pop %v2155
      %v2181 = vrcp.pop %v2157
      %v2182 = vrcp.pop %v2159
      %v2183 = vrcp.pop %v2161
      %v2184 = vrcp.pop %v2163
      %v2185 = vrcp.pop %v2165
      %v2186 = vrcp.pop %v2167
      %v2187 = vrcp.pop %v2169
      %v2188 = vrcp.pop %v2171
      %v2189 = vrcp.pop %v2173
      %v2190 = vmul.f32 %v2111, %v2174
      %v2191 = vmul.f32 %v2113, %v2175
      %v2192 = vmul.f32 %v2115, %v2176
      %v2193 = vmul.f32 %v2117, %v2177
      %v2194 = vmul.f32 %v2119, %v2178
      %v2195 = vmul.f32 %v2121, %v2179
      %v2196 = vmul.f32 %v2123, %v2180
      %v2197 = vmul.f32 %v2125, %v2181
      %v2198 = vmul.f32 %v2127, %v2182
      %v2199 = vmul.f32 %v2129, %v2183
      %v2200 = vmul.f32 %v2131, %v2184
      %v2201 = vmul.f32 %v2133, %v2185
      %v2202 = vmul.f32 %v2135, %v2186
      %v2203 = vmul.f32 %v2137, %v2187
      %v2204 = vmul.f32 %v2139, %v2188
      %v2205 = vmul.f32 %v2141, %v2189
      %2222 = vrot.lane.b32.xlu0 %v1174, 120
      %v2223 = vpop.permute.xlu0 %2222
      %2224 = vrot.lane.b32.xlu0 %v1175, 120
      %v2225 = vpop.permute.xlu0 %2224
      %2226 = vrot.lane.b32.xlu0 %v1176, 120
      %v2227 = vpop.permute.xlu0 %2226
      %2228 = vrot.lane.b32.xlu0 %v1177, 120
      %v2229 = vpop.permute.xlu0 %2228
      %2230 = vrot.lane.b32.xlu0 %v1178, 120
      %v2231 = vpop.permute.xlu0 %2230
      %2232 = vrot.lane.b32.xlu0 %v1179, 120
      %v2233 = vpop.permute.xlu0 %2232
      %2234 = vrot.lane.b32.xlu0 %v1180, 120
      %v2235 = vpop.permute.xlu0 %2234
      %2236 = vrot.lane.b32.xlu0 %v1181, 120
      %v2237 = vpop.permute.xlu0 %2236
      %2238 = vrot.lane.b32.xlu0 %v1182, 120
      %v2239 = vpop.permute.xlu0 %2238
      %2240 = vrot.lane.b32.xlu0 %v1183, 120
      %v2241 = vpop.permute.xlu0 %2240
      %2242 = vrot.lane.b32.xlu0 %v1184, 120
      %v2243 = vpop.permute.xlu0 %2242
      %2244 = vrot.lane.b32.xlu0 %v1185, 120
      %v2245 = vpop.permute.xlu0 %2244
      %2246 = vrot.lane.b32.xlu0 %v1186, 120
      %v2247 = vpop.permute.xlu0 %2246
      %2248 = vrot.lane.b32.xlu0 %v1187, 120
      %v2249 = vpop.permute.xlu0 %2248
      %2250 = vrot.lane.b32.xlu0 %v1188, 120
      %v2251 = vpop.permute.xlu0 %2250
      %2252 = vrot.lane.b32.xlu0 %v1189, 120
      %v2253 = vpop.permute.xlu0 %2252
      %2270 = vmatprep.subr.mxu0 0.0
      %2271 = vmatpush1.msra.mxu0 %v2223
      %2272 = vmatprep.subr.mxu0 0.0
      %2273 = vmatpush1.msra.mxu0 %v2225
      %2274 = vmatprep.subr.mxu0 0.0
      %2275 = vmatpush1.msra.mxu0 %v2227
      %2276 = vmatprep.subr.mxu0 0.0
      %2277 = vmatpush1.msra.mxu0 %v2229
      %2278 = vmatprep.subr.mxu0 0.0
      %2279 = vmatpush1.msra.mxu0 %v2231
      %2280 = vmatprep.subr.mxu0 0.0
      %2281 = vmatpush1.msra.mxu0 %v2233
      %2282 = vmatprep.subr.mxu0 0.0
      %2283 = vmatpush1.msra.mxu0 %v2235
      %2284 = vmatprep.subr.mxu0 0.0
      %2285 = vmatpush1.msra.mxu0 %v2237
      %2286 = vmatprep.subr.mxu0 0.0
      %2287 = vmatpush1.msra.mxu0 %v2239
      %2288 = vmatprep.subr.mxu0 0.0
      %2289 = vmatpush1.msra.mxu0 %v2241
      %2290 = vmatprep.subr.mxu0 0.0
      %2291 = vmatpush1.msra.mxu0 %v2243
      %2292 = vmatprep.subr.mxu0 0.0
      %2293 = vmatpush1.msra.mxu0 %v2245
      %2294 = vmatprep.subr.mxu0 0.0
      %2295 = vmatpush1.msra.mxu0 %v2247
      %2296 = vmatprep.subr.mxu0 0.0
      %2297 = vmatpush1.msra.mxu0 %v2249
      %2298 = vmatprep.subr.mxu0 0.0
      %2299 = vmatpush1.msra.mxu0 %v2251
      %2300 = vmatprep.subr.mxu0 0.0
      %2301 = vmatpush1.msra.mxu0 %v2253
      %2302 = vmatprep.subr.mxu0 0.0
      %2303 = vmatpush1.msra.mxu0 0.0
      %2304 = vmatprep.subr.mxu0 0.0
      %2305 = vmatpush1.msra.mxu0 0.0
      %2306 = vmatprep.subr.mxu0 0.0
      %2307 = vmatpush1.msra.mxu0 0.0
      %2308 = vmatprep.subr.mxu0 0.0
      %2309 = vmatpush1.msra.mxu0 0.0
      %2310 = vmatprep.subr.mxu0 0.0
      %2311 = vmatpush1.msra.mxu0 0.0
      %2312 = vmatprep.subr.mxu0 0.0
      %2313 = vmatpush1.msra.mxu0 0.0
      %2314 = vmatprep.subr.mxu0 0.0
      %2315 = vmatpush1.msra.mxu0 0.0
      %2316 = vmatprep.subr.mxu0 0.0
      %2317 = vmatpush1.msra.mxu0 0.0
      %2318 = vmatprep.subr.mxu0 0.0
      %2319 = vmatpush1.msra.mxu0 0.0
      %2320 = vmatprep.subr.mxu0 0.0
      %2321 = vmatpush1.msra.mxu0 0.0
      %2322 = vmatprep.subr.mxu0 0.0
      %2323 = vmatpush1.msra.mxu0 0.0
      %2324 = vmatprep.subr.mxu0 0.0
      %2325 = vmatpush1.msra.mxu0 0.0
      %2326 = vmatprep.subr.mxu0 0.0
      %2327 = vmatpush1.msra.mxu0 0.0
      %2328 = vmatprep.subr.mxu0 0.0
      %2329 = vmatpush1.msra.mxu0 0.0
      %2330 = vmatprep.subr.mxu0 0.0
      %2331 = vmatpush1.msra.mxu0 0.0
      %2332 = vmatprep.subr.mxu0 0.0
      %2333 = vmatpush1.msra.mxu0 0.0
      %2334 = vmatprep.mubr.f32.mxu0 0.0
      %2335 = vmatmul.mubr.f32.gmra.mrb[0].mxu0 %v2190
      %v2336 = vpop.f32.mrb[0].mxu0
      %v2337 = vadd.f32 0.0, %v2336
      %v2338 = vpop.f32.mrb[0].mxu0
      %2339 = vmatprep.mubr.f32.mxu0 0.0
      %2340 = vmatmul.mubr.f32.gmra.mrb[0].mxu0 %v2191
      %v2341 = vpop.f32.mrb[0].mxu0
      %v2342 = vadd.f32 0.0, %v2341
      %v2343 = vpop.f32.mrb[0].mxu0
      %2344 = vmatprep.mubr.f32.mxu0 0.0
      %2345 = vmatmul.mubr.f32.gmra.mrb[0].mxu0 %v2192
      %v2346 = vpop.f32.mrb[0].mxu0
      %v2347 = vadd.f32 0.0, %v2346
      %v2348 = vpop.f32.mrb[0].mxu0
      %2349 = vmatprep.mubr.f32.mxu0 0.0
      %2350 = vmatmul.mubr.f32.gmra.mrb[0].mxu0 %v2193
      %v2351 = vpop.f32.mrb[0].mxu0
      %v2352 = vadd.f32 0.0, %v2351
      %v2353 = vpop.f32.mrb[0].mxu0
      %2354 = vmatprep.mubr.f32.mxu0 0.0
      %2355 = vmatmul.mubr.f32.gmra.mrb[0].mxu0 %v2194
      %v2356 = vpop.f32.mrb[0].mxu0
      %v2357 = vadd.f32 0.0, %v2356
      %v2358 = vpop.f32.mrb[0].mxu0
      %2359 = vmatprep.mubr.f32.mxu0 0.0
      %2360 = vmatmul.mubr.f32.gmra.mrb[0].mxu0 %v2195
      %v2361 = vpop.f32.mrb[0].mxu0
      %v2362 = vadd.f32 0.0, %v2361
      %v2363 = vpop.f32.mrb[0].mxu0
      %2364 = vmatprep.mubr.f32.mxu0 0.0
      %2365 = vmatmul.mubr.f32.gmra.mrb[0].mxu0 %v2196
      %v2366 = vpop.f32.mrb[0].mxu0
      %v2367 = vadd.f32 0.0, %v2366
      %v2368 = vpop.f32.mrb[0].mxu0
      %2369 = vmatprep.mubr.f32.mxu0 0.0
      %2370 = vmatmul.mubr.f32.gmra.mrb[0].mxu0 %v2197
      %v2371 = vpop.f32.mrb[0].mxu0
      %v2372 = vadd.f32 0.0, %v2371
      %v2373 = vpop.f32.mrb[0].mxu0
      %2374 = vmatprep.mubr.f32.mxu0 0.0
      %2375 = vmatmul.mubr.f32.gmra.mrb[0].mxu0 %v2198
      %v2376 = vpop.f32.mrb[0].mxu0
      %v2377 = vadd.f32 0.0, %v2376
      %v2378 = vpop.f32.mrb[0].mxu0
      %2379 = vmatprep.mubr.f32.mxu0 0.0
      %2380 = vmatmul.mubr.f32.gmra.mrb[0].mxu0 %v2199
      %v2381 = vpop.f32.mrb[0].mxu0
      %v2382 = vadd.f32 0.0, %v2381
      %v2383 = vpop.f32.mrb[0].mxu0
      %2384 = vmatprep.mubr.f32.mxu0 0.0
      %2385 = vmatmul.mubr.f32.gmra.mrb[0].mxu0 %v2200
      %v2386 = vpop.f32.mrb[0].mxu0
      %v2387 = vadd.f32 0.0, %v2386
      %v2388 = vpop.f32.mrb[0].mxu0
      %2389 = vmatprep.mubr.f32.mxu0 0.0
      %2390 = vmatmul.mubr.f32.gmra.mrb[0].mxu0 %v2201
      %v2391 = vpop.f32.mrb[0].mxu0
      %v2392 = vadd.f32 0.0, %v2391
      %v2393 = vpop.f32.mrb[0].mxu0
      %2394 = vmatprep.mubr.f32.mxu0 0.0
      %2395 = vmatmul.mubr.f32.gmra.mrb[0].mxu0 %v2202
      %v2396 = vpop.f32.mrb[0].mxu0
      %v2397 = vadd.f32 0.0, %v2396
      %v2398 = vpop.f32.mrb[0].mxu0
      %2399 = vmatprep.mubr.f32.mxu0 0.0
      %2400 = vmatmul.mubr.f32.gmra.mrb[0].mxu0 %v2203
      %v2401 = vpop.f32.mrb[0].mxu0
      %v2402 = vadd.f32 0.0, %v2401
      %v2403 = vpop.f32.mrb[0].mxu0
      %2404 = vmatprep.mubr.f32.mxu0 0.0
      %2405 = vmatmul.mubr.f32.gmra.mrb[0].mxu0 %v2204
      %v2406 = vpop.f32.mrb[0].mxu0
      %v2407 = vadd.f32 0.0, %v2406
      %v2408 = vpop.f32.mrb[0].mxu0
      %2409 = vmatprep.mubr.f32.mxu0 0.0
      %2410 = vmatmul.mubr.f32.gmra.mrb[0].mxu0 %v2205
      %v2411 = vpop.f32.mrb[0].mxu0
      %v2412 = vadd.f32 0.0, %v2411
      %v2413 = vpop.f32.mrb[0].mxu0
      %2414 = vdwg.mxu0
      %2415 = vrot.lane.b32.xlu0 %v702, 112
      %v2416 = vpop.permute.xlu0 %2415
      %2417 = vrot.lane.b32.xlu0 %v703, 112
      %v2418 = vpop.permute.xlu0 %2417
      %2419 = vrot.lane.b32.xlu0 %v704, 112
      %v2420 = vpop.permute.xlu0 %2419
      %2421 = vrot.lane.b32.xlu0 %v705, 112
      %v2422 = vpop.permute.xlu0 %2421
      %2423 = vrot.lane.b32.xlu0 %v706, 112
      %v2424 = vpop.permute.xlu0 %2423
      %2425 = vrot.lane.b32.xlu0 %v707, 112
      %v2426 = vpop.permute.xlu0 %2425
      %2427 = vrot.lane.b32.xlu0 %v708, 112
      %v2428 = vpop.permute.xlu0 %2427
      %2429 = vrot.lane.b32.xlu0 %v709, 112
      %v2430 = vpop.permute.xlu0 %2429
      %2431 = vrot.lane.b32.xlu0 %v710, 112
      %v2432 = vpop.permute.xlu0 %2431
      %2433 = vrot.lane.b32.xlu0 %v711, 112
      %v2434 = vpop.permute.xlu0 %2433
      %2435 = vrot.lane.b32.xlu0 %v712, 112
      %v2436 = vpop.permute.xlu0 %2435
      %2437 = vrot.lane.b32.xlu0 %v713, 112
      %v2438 = vpop.permute.xlu0 %2437
      %2439 = vrot.lane.b32.xlu0 %v714, 112
      %v2440 = vpop.permute.xlu0 %2439
      %2441 = vrot.lane.b32.xlu0 %v715, 112
      %v2442 = vpop.permute.xlu0 %2441
      %2443 = vrot.lane.b32.xlu0 %v716, 112
      %v2444 = vpop.permute.xlu0 %2443
      %2445 = vrot.lane.b32.xlu0 %v717, 112
      %v2446 = vpop.permute.xlu0 %2445
      %2447 = vrot.lane.b32.xlu0 %v938, 112
      %v2448 = vpop.permute.xlu0 %2447
      %2449 = vrot.lane.b32.xlu0 %v939, 112
      %v2450 = vpop.permute.xlu0 %2449
      %2451 = vrot.lane.b32.xlu0 %v940, 112
      %v2452 = vpop.permute.xlu0 %2451
      %2453 = vrot.lane.b32.xlu0 %v941, 112
      %v2454 = vpop.permute.xlu0 %2453
      %2455 = vrot.lane.b32.xlu0 %v942, 112
      %v2456 = vpop.permute.xlu0 %2455
      %2457 = vrot.lane.b32.xlu0 %v943, 112
      %v2458 = vpop.permute.xlu0 %2457
      %2459 = vrot.lane.b32.xlu0 %v944, 112
      %v2460 = vpop.permute.xlu0 %2459
      %2461 = vrot.lane.b32.xlu0 %v945, 112
      %v2462 = vpop.permute.xlu0 %2461
      %2463 = vrot.lane.b32.xlu0 %v946, 112
      %v2464 = vpop.permute.xlu0 %2463
      %2465 = vrot.lane.b32.xlu0 %v947, 112
      %v2466 = vpop.permute.xlu0 %2465
      %2467 = vrot.lane.b32.xlu0 %v948, 112
      %v2468 = vpop.permute.xlu0 %2467
      %2469 = vrot.lane.b32.xlu0 %v949, 112
      %v2470 = vpop.permute.xlu0 %2469
      %2471 = vrot.lane.b32.xlu0 %v950, 112
      %v2472 = vpop.permute.xlu0 %2471
      %2473 = vrot.lane.b32.xlu0 %v951, 112
      %v2474 = vpop.permute.xlu0 %2473
      %2475 = vrot.lane.b32.xlu0 %v952, 112
      %v2476 = vpop.permute.xlu0 %2475
      %2477 = vrot.lane.b32.xlu0 %v953, 112
      %v2478 = vpop.permute.xlu0 %2477
      %v2479 = vsel %vm1258, %v2416, 0
      %v2481 = vsel %vm1258, %v2418, 0
      %v2483 = vsel %vm1258, %v2420, 0
      %v2485 = vsel %vm1258, %v2422, 0
      %v2487 = vsel %vm1258, %v2424, 0
      %v2489 = vsel %vm1258, %v2426, 0
      %v2491 = vsel %vm1258, %v2428, 0
      %v2493 = vsel %vm1258, %v2430, 0
      %v2495 = vsel %vm1258, %v2432, 0
      %v2497 = vsel %vm1258, %v2434, 0
      %v2499 = vsel %vm1258, %v2436, 0
      %v2501 = vsel %vm1258, %v2438, 0
      %v2503 = vsel %vm1258, %v2440, 0
      %v2505 = vsel %vm1258, %v2442, 0
      %v2507 = vsel %vm1258, %v2444, 0
      %v2509 = vsel %vm1258, %v2446, 0
      %v2511 = vsel %vm1258, %v2448, 0
      %v2513 = vsel %vm1258, %v2450, 0
      %v2515 = vsel %vm1258, %v2452, 0
      %v2517 = vsel %vm1258, %v2454, 0
      %v2519 = vsel %vm1258, %v2456, 0
      %v2521 = vsel %vm1258, %v2458, 0
      %v2523 = vsel %vm1258, %v2460, 0
      %v2525 = vsel %vm1258, %v2462, 0
      %v2527 = vsel %vm1258, %v2464, 0
      %v2529 = vsel %vm1258, %v2466, 0
      %v2531 = vsel %vm1258, %v2468, 0
      %v2533 = vsel %vm1258, %v2470, 0
      %v2535 = vsel %vm1258, %v2472, 0
      %v2537 = vsel %vm1258, %v2474, 0
      %v2539 = vsel %vm1258, %v2476, 0
      %v2541 = vsel %vm1258, %v2478, 0
      %2543 = vmatprep.subr.mxu0 0.0
      %2544 = vmatpush1.xpose.msra.mxu0 %v2511
      %2545 = vmatprep.subr.mxu0 0.0
      %2546 = vmatpush1.xpose.msra.mxu0 %v2513
      %2547 = vmatprep.subr.mxu0 0.0
      %2548 = vmatpush1.xpose.msra.mxu0 %v2515
      %2549 = vmatprep.subr.mxu0 0.0
      %2550 = vmatpush1.xpose.msra.mxu0 %v2517
      %2551 = vmatprep.subr.mxu0 0.0
      %2552 = vmatpush1.xpose.msra.mxu0 %v2519
      %2553 = vmatprep.subr.mxu0 0.0
      %2554 = vmatpush1.xpose.msra.mxu0 %v2521
      %2555 = vmatprep.subr.mxu0 0.0
      %2556 = vmatpush1.xpose.msra.mxu0 %v2523
      %2557 = vmatprep.subr.mxu0 0.0
      %2558 = vmatpush1.xpose.msra.mxu0 %v2525
      %2559 = vmatprep.subr.mxu0 0.0
      %2560 = vmatpush1.xpose.msra.mxu0 %v2527
      %2561 = vmatprep.subr.mxu0 0.0
      %2562 = vmatpush1.xpose.msra.mxu0 %v2529
      %2563 = vmatprep.subr.mxu0 0.0
      %2564 = vmatpush1.xpose.msra.mxu0 %v2531
      %2565 = vmatprep.subr.mxu0 0.0
      %2566 = vmatpush1.xpose.msra.mxu0 %v2533
      %2567 = vmatprep.subr.mxu0 0.0
      %2568 = vmatpush1.xpose.msra.mxu0 %v2535
      %2569 = vmatprep.subr.mxu0 0.0
      %2570 = vmatpush1.xpose.msra.mxu0 %v2537
      %2571 = vmatprep.subr.mxu0 0.0
      %2572 = vmatpush1.xpose.msra.mxu0 %v2539
      %2573 = vmatprep.subr.mxu0 0.0
      %2574 = vmatpush1.xpose.msra.mxu0 %v2541
      %2575 = vmatprep.subr.mxu0 0.0
      %2576 = vmatpush1.xpose.msra.mxu0 0.0
      %2577 = vmatprep.subr.mxu0 0.0
      %2578 = vmatpush1.xpose.msra.mxu0 0.0
      %2579 = vmatprep.subr.mxu0 0.0
      %2580 = vmatpush1.xpose.msra.mxu0 0.0
      %2581 = vmatprep.subr.mxu0 0.0
      %2582 = vmatpush1.xpose.msra.mxu0 0.0
      %2583 = vmatprep.subr.mxu0 0.0
      %2584 = vmatpush1.xpose.msra.mxu0 0.0
      %2585 = vmatprep.subr.mxu0 0.0
      %2586 = vmatpush1.xpose.msra.mxu0 0.0
      %2587 = vmatprep.subr.mxu0 0.0
      %2588 = vmatpush1.xpose.msra.mxu0 0.0
      %2589 = vmatprep.subr.mxu0 0.0
      %2590 = vmatpush1.xpose.msra.mxu0 0.0
      %2591 = vmatprep.subr.mxu0 0.0
      %2592 = vmatpush1.xpose.msra.mxu0 0.0
      %2593 = vmatprep.subr.mxu0 0.0
      %2594 = vmatpush1.xpose.msra.mxu0 0.0
      %2595 = vmatprep.subr.mxu0 0.0
      %2596 = vmatpush1.xpose.msra.mxu0 0.0
      %2597 = vmatprep.subr.mxu0 0.0
      %2598 = vmatpush1.xpose.msra.mxu0 0.0
      %2599 = vmatprep.subr.mxu0 0.0
      %2600 = vmatpush1.xpose.msra.mxu0 0.0
      %2601 = vmatprep.subr.mxu0 0.0
      %2602 = vmatpush1.xpose.msra.mxu0 0.0
      %2603 = vmatprep.subr.mxu0 0.0
      %2604 = vmatpush1.xpose.msra.mxu0 0.0
      %2605 = vmatprep.subr.mxu0 0.0
      %2606 = vmatpush1.xpose.msra.mxu0 0.0
      %2607 = vmatprep.mubr.f32.mxu0 0.0
      %2608 = vmatmul.mubr.f32.gmra.mrb[0].mxu0 %v2479
      %v2609 = vpop.f32.mrb[0].mxu0
      %v2610 = vadd.f32 %v1242, %v2609
      %v2611 = vpop.f32.mrb[0].mxu0
      %2612 = vmatprep.mubr.f32.mxu0 0.0
      %2613 = vmatmul.mubr.f32.gmra.mrb[0].mxu0 %v2481
      %v2614 = vpop.f32.mrb[0].mxu0
      %v2615 = vadd.f32 %v1243, %v2614
      %v2616 = vpop.f32.mrb[0].mxu0
      %2617 = vmatprep.mubr.f32.mxu0 0.0
      %2618 = vmatmul.mubr.f32.gmra.mrb[0].mxu0 %v2483
      %v2619 = vpop.f32.mrb[0].mxu0
      %v2620 = vadd.f32 %v1244, %v2619
      %v2621 = vpop.f32.mrb[0].mxu0
      %2622 = vmatprep.mubr.f32.mxu0 0.0
      %2623 = vmatmul.mubr.f32.gmra.mrb[0].mxu0 %v2485
      %v2624 = vpop.f32.mrb[0].mxu0
      %v2625 = vadd.f32 %v1245, %v2624
      %v2626 = vpop.f32.mrb[0].mxu0
      %2627 = vmatprep.mubr.f32.mxu0 0.0
      %2628 = vmatmul.mubr.f32.gmra.mrb[0].mxu0 %v2487
      %v2629 = vpop.f32.mrb[0].mxu0
      %v2630 = vadd.f32 %v1246, %v2629
      %v2631 = vpop.f32.mrb[0].mxu0
      %2632 = vmatprep.mubr.f32.mxu0 0.0
      %2633 = vmatmul.mubr.f32.gmra.mrb[0].mxu0 %v2489
      %v2634 = vpop.f32.mrb[0].mxu0
      %v2635 = vadd.f32 %v1247, %v2634
      %v2636 = vpop.f32.mrb[0].mxu0
      %2637 = vmatprep.mubr.f32.mxu0 0.0
      %2638 = vmatmul.mubr.f32.gmra.mrb[0].mxu0 %v2491
      %v2639 = vpop.f32.mrb[0].mxu0
      %v2640 = vadd.f32 %v1248, %v2639
      %v2641 = vpop.f32.mrb[0].mxu0
      %2642 = vmatprep.mubr.f32.mxu0 0.0
      %2643 = vmatmul.mubr.f32.gmra.mrb[0].mxu0 %v2493
      %v2644 = vpop.f32.mrb[0].mxu0
      %v2645 = vadd.f32 %v1249, %v2644
      %v2646 = vpop.f32.mrb[0].mxu0
      %2647 = vmatprep.mubr.f32.mxu0 0.0
      %2648 = vmatmul.mubr.f32.gmra.mrb[0].mxu0 %v2495
      %v2649 = vpop.f32.mrb[0].mxu0
      %v2650 = vadd.f32 %v1250, %v2649
      %v2651 = vpop.f32.mrb[0].mxu0
      %2652 = vmatprep.mubr.f32.mxu0 0.0
      %2653 = vmatmul.mubr.f32.gmra.mrb[0].mxu0 %v2497
      %v2654 = vpop.f32.mrb[0].mxu0
      %v2655 = vadd.f32 %v1251, %v2654
      %v2656 = vpop.f32.mrb[0].mxu0
      %2657 = vmatprep.mubr.f32.mxu0 0.0
      %2658 = vmatmul.mubr.f32.gmra.mrb[0].mxu0 %v2499
      %v2659 = vpop.f32.mrb[0].mxu0
      %v2660 = vadd.f32 %v1252, %v2659
      %v2661 = vpop.f32.mrb[0].mxu0
      %2662 = vmatprep.mubr.f32.mxu0 0.0
      %2663 = vmatmul.mubr.f32.gmra.mrb[0].mxu0 %v2501
      %v2664 = vpop.f32.mrb[0].mxu0
      %v2665 = vadd.f32 %v1253, %v2664
      %v2666 = vpop.f32.mrb[0].mxu0
      %2667 = vmatprep.mubr.f32.mxu0 0.0
      %2668 = vmatmul.mubr.f32.gmra.mrb[0].mxu0 %v2503
      %v2669 = vpop.f32.mrb[0].mxu0
      %v2670 = vadd.f32 %v1254, %v2669
      %v2671 = vpop.f32.mrb[0].mxu0
      %2672 = vmatprep.mubr.f32.mxu0 0.0
      %2673 = vmatmul.mubr.f32.gmra.mrb[0].mxu0 %v2505
      %v2674 = vpop.f32.mrb[0].mxu0
      %v2675 = vadd.f32 %v1255, %v2674
      %v2676 = vpop.f32.mrb[0].mxu0
      %2677 = vmatprep.mubr.f32.mxu0 0.0
      %2678 = vmatmul.mubr.f32.gmra.mrb[0].mxu0 %v2507
      %v2679 = vpop.f32.mrb[0].mxu0
      %v2680 = vadd.f32 %v1256, %v2679
      %v2681 = vpop.f32.mrb[0].mxu0
      %2682 = vmatprep.mubr.f32.mxu0 0.0
      %2683 = vmatmul.mubr.f32.gmra.mrb[0].mxu0 %v2509
      %v2684 = vpop.f32.mrb[0].mxu0
      %v2685 = vadd.f32 %v1257, %v2684
      %v2686 = vpop.f32.mrb[0].mxu0
      %2687 = vdwg.mxu0
      %2688 = vmax.xlane.f32.xlu0 %v2610
      %v2689 = vpop.xlane.xlu0 %2688
      %2690 = vmax.xlane.f32.xlu0 %v2615
      %v2691 = vpop.xlane.xlu0 %2690
      %2692 = vmax.xlane.f32.xlu0 %v2620
      %v2693 = vpop.xlane.xlu0 %2692
      %2694 = vmax.xlane.f32.xlu0 %v2625
      %v2695 = vpop.xlane.xlu0 %2694
      %2696 = vmax.xlane.f32.xlu0 %v2630
      %v2697 = vpop.xlane.xlu0 %2696
      %2698 = vmax.xlane.f32.xlu0 %v2635
      %v2699 = vpop.xlane.xlu0 %2698
      %2700 = vmax.xlane.f32.xlu0 %v2640
      %v2701 = vpop.xlane.xlu0 %2700
      %2702 = vmax.xlane.f32.xlu0 %v2645
      %v2703 = vpop.xlane.xlu0 %2702
      %2704 = vmax.xlane.f32.xlu0 %v2650
      %v2705 = vpop.xlane.xlu0 %2704
      %2706 = vmax.xlane.f32.xlu0 %v2655
      %v2707 = vpop.xlane.xlu0 %2706
      %2708 = vmax.xlane.f32.xlu0 %v2660
      %v2709 = vpop.xlane.xlu0 %2708
      %2710 = vmax.xlane.f32.xlu0 %v2665
      %v2711 = vpop.xlane.xlu0 %2710
      %2712 = vmax.xlane.f32.xlu0 %v2670
      %v2713 = vpop.xlane.xlu0 %2712
      %2714 = vmax.xlane.f32.xlu0 %v2675
      %v2715 = vpop.xlane.xlu0 %2714
      %2716 = vmax.xlane.f32.xlu0 %v2680
      %v2717 = vpop.xlane.xlu0 %2716
      %2718 = vmax.xlane.f32.xlu0 %v2685
      %v2719 = vpop.xlane.xlu0 %2718
      %v2720 = vsub.f32 %v2610, %v2689
      %v2721 = vsub.f32 %v2615, %v2691
      %v2722 = vsub.f32 %v2620, %v2693
      %v2723 = vsub.f32 %v2625, %v2695
      %v2724 = vsub.f32 %v2630, %v2697
      %v2725 = vsub.f32 %v2635, %v2699
      %v2726 = vsub.f32 %v2640, %v2701
      %v2727 = vsub.f32 %v2645, %v2703
      %v2728 = vsub.f32 %v2650, %v2705
      %v2729 = vsub.f32 %v2655, %v2707
      %v2730 = vsub.f32 %v2660, %v2709
      %v2731 = vsub.f32 %v2665, %v2711
      %v2732 = vsub.f32 %v2670, %v2713
      %v2733 = vsub.f32 %v2675, %v2715
      %v2734 = vsub.f32 %v2680, %v2717
      %v2735 = vsub.f32 %v2685, %v2719
      %v2736 = vmul.f32 %v2720, 1.442695
      %v2737 = vpow.pop %v2736
      %v2738 = vmul.f32 %v2721, 1.442695
      %v2739 = vpow.pop %v2738
      %v2740 = vmul.f32 %v2722, 1.442695
      %v2741 = vpow.pop %v2740
      %v2742 = vmul.f32 %v2723, 1.442695
      %v2743 = vpow.pop %v2742
      %v2744 = vmul.f32 %v2724, 1.442695
      %v2745 = vpow.pop %v2744
      %v2746 = vmul.f32 %v2725, 1.442695
      %v2747 = vpow.pop %v2746
      %v2748 = vmul.f32 %v2726, 1.442695
      %v2749 = vpow.pop %v2748
      %v2750 = vmul.f32 %v2727, 1.442695
      %v2751 = vpow.pop %v2750
      %v2752 = vmul.f32 %v2728, 1.442695
      %v2753 = vpow.pop %v2752
      %v2754 = vmul.f32 %v2729, 1.442695
      %v2755 = vpow.pop %v2754
      %v2756 = vmul.f32 %v2730, 1.442695
      %v2757 = vpow.pop %v2756
      %v2758 = vmul.f32 %v2731, 1.442695
      %v2759 = vpow.pop %v2758
      %v2760 = vmul.f32 %v2732, 1.442695
      %v2761 = vpow.pop %v2760
      %v2762 = vmul.f32 %v2733, 1.442695
      %v2763 = vpow.pop %v2762
      %v2764 = vmul.f32 %v2734, 1.442695
      %v2765 = vpow.pop %v2764
      %v2766 = vmul.f32 %v2735, 1.442695
      %v2767 = vpow.pop %v2766
      %2768 = vadd.xlane.f32.xlu0 %v2737
      %v2769 = vpop.xlane.xlu0 %2768
      %2770 = vadd.xlane.f32.xlu0 %v2739
      %v2771 = vpop.xlane.xlu0 %2770
      %2772 = vadd.xlane.f32.xlu0 %v2741
      %v2773 = vpop.xlane.xlu0 %2772
      %2774 = vadd.xlane.f32.xlu0 %v2743
      %v2775 = vpop.xlane.xlu0 %2774
      %2776 = vadd.xlane.f32.xlu0 %v2745
      %v2777 = vpop.xlane.xlu0 %2776
      %2778 = vadd.xlane.f32.xlu0 %v2747
      %v2779 = vpop.xlane.xlu0 %2778
      %2780 = vadd.xlane.f32.xlu0 %v2749
      %v2781 = vpop.xlane.xlu0 %2780
      %2782 = vadd.xlane.f32.xlu0 %v2751
      %v2783 = vpop.xlane.xlu0 %2782
      %2784 = vadd.xlane.f32.xlu0 %v2753
      %v2785 = vpop.xlane.xlu0 %2784
      %2786 = vadd.xlane.f32.xlu0 %v2755
      %v2787 = vpop.xlane.xlu0 %2786
      %2788 = vadd.xlane.f32.xlu0 %v2757
      %v2789 = vpop.xlane.xlu0 %2788
      %2790 = vadd.xlane.f32.xlu0 %v2759
      %v2791 = vpop.xlane.xlu0 %2790
      %2792 = vadd.xlane.f32.xlu0 %v2761
      %v2793 = vpop.xlane.xlu0 %2792
      %2794 = vadd.xlane.f32.xlu0 %v2763
      %v2795 = vpop.xlane.xlu0 %2794
      %2796 = vadd.xlane.f32.xlu0 %v2765
      %v2797 = vpop.xlane.xlu0 %2796
      %2798 = vadd.xlane.f32.xlu0 %v2767
      %v2799 = vpop.xlane.xlu0 %2798
      %v2800 = vrcp.pop %v2769
      %v2801 = vrcp.pop %v2771
      %v2802 = vrcp.pop %v2773
      %v2803 = vrcp.pop %v2775
      %v2804 = vrcp.pop %v2777
      %v2805 = vrcp.pop %v2779
      %v2806 = vrcp.pop %v2781
      %v2807 = vrcp.pop %v2783
      %v2808 = vrcp.pop %v2785
      %v2809 = vrcp.pop %v2787
      %v2810 = vrcp.pop %v2789
      %v2811 = vrcp.pop %v2791
      %v2812 = vrcp.pop %v2793
      %v2813 = vrcp.pop %v2795
      %v2814 = vrcp.pop %v2797
      %v2815 = vrcp.pop %v2799
      %v2816 = vmul.f32 %v2737, %v2800
      %v2817 = vmul.f32 %v2739, %v2801
      %v2818 = vmul.f32 %v2741, %v2802
      %v2819 = vmul.f32 %v2743, %v2803
      %v2820 = vmul.f32 %v2745, %v2804
      %v2821 = vmul.f32 %v2747, %v2805
      %v2822 = vmul.f32 %v2749, %v2806
      %v2823 = vmul.f32 %v2751, %v2807
      %v2824 = vmul.f32 %v2753, %v2808
      %v2825 = vmul.f32 %v2755, %v2809
      %v2826 = vmul.f32 %v2757, %v2810
      %v2827 = vmul.f32 %v2759, %v2811
      %v2828 = vmul.f32 %v2761, %v2812
      %v2829 = vmul.f32 %v2763, %v2813
      %v2830 = vmul.f32 %v2765, %v2814
      %v2831 = vmul.f32 %v2767, %v2815
      %2832 = vrot.lane.b32.xlu0 %v1174, 112
      %v2833 = vpop.permute.xlu0 %2832
      %2834 = vrot.lane.b32.xlu0 %v1175, 112
      %v2835 = vpop.permute.xlu0 %2834
      %2836 = vrot.lane.b32.xlu0 %v1176, 112
      %v2837 = vpop.permute.xlu0 %2836
      %2838 = vrot.lane.b32.xlu0 %v1177, 112
      %v2839 = vpop.permute.xlu0 %2838
      %2840 = vrot.lane.b32.xlu0 %v1178, 112
      %v2841 = vpop.permute.xlu0 %2840
      %2842 = vrot.lane.b32.xlu0 %v1179, 112
      %v2843 = vpop.permute.xlu0 %2842
      %2844 = vrot.lane.b32.xlu0 %v1180, 112
      %v2845 = vpop.permute.xlu0 %2844
      %2846 = vrot.lane.b32.xlu0 %v1181, 112
      %v2847 = vpop.permute.xlu0 %2846
      %2848 = vrot.lane.b32.xlu0 %v1182, 112
      %v2849 = vpop.permute.xlu0 %2848
      %2850 = vrot.lane.b32.xlu0 %v1183, 112
      %v2851 = vpop.permute.xlu0 %2850
      %2852 = vrot.lane.b32.xlu0 %v1184, 112
      %v2853 = vpop.permute.xlu0 %2852
      %2854 = vrot.lane.b32.xlu0 %v1185, 112
      %v2855 = vpop.permute.xlu0 %2854
      %2856 = vrot.lane.b32.xlu0 %v1186, 112
      %v2857 = vpop.permute.xlu0 %2856
      %2858 = vrot.lane.b32.xlu0 %v1187, 112
      %v2859 = vpop.permute.xlu0 %2858
      %2860 = vrot.lane.b32.xlu0 %v1188, 112
      %v2861 = vpop.permute.xlu0 %2860
      %2862 = vrot.lane.b32.xlu0 %v1189, 112
      %v2863 = vpop.permute.xlu0 %2862
      %2880 = vmatprep.subr.mxu0 0.0
      %2881 = vmatpush1.msra.mxu0 %v2833
      %2882 = vmatprep.subr.mxu0 0.0
      %2883 = vmatpush1.msra.mxu0 %v2835
      %2884 = vmatprep.subr.mxu0 0.0
      %2885 = vmatpush1.msra.mxu0 %v2837
      %2886 = vmatprep.subr.mxu0 0.0
      %2887 = vmatpush1.msra.mxu0 %v2839
      %2888 = vmatprep.subr.mxu0 0.0
      %2889 = vmatpush1.msra.mxu0 %v2841
      %2890 = vmatprep.subr.mxu0 0.0
      %2891 = vmatpush1.msra.mxu0 %v2843
      %2892 = vmatprep.subr.mxu0 0.0
      %2893 = vmatpush1.msra.mxu0 %v2845
      %2894 = vmatprep.subr.mxu0 0.0
      %2895 = vmatpush1.msra.mxu0 %v2847
      %2896 = vmatprep.subr.mxu0 0.0
      %2897 = vmatpush1.msra.mxu0 %v2849
      %2898 = vmatprep.subr.mxu0 0.0
      %2899 = vmatpush1.msra.mxu0 %v2851
      %2900 = vmatprep.subr.mxu0 0.0
      %2901 = vmatpush1.msra.mxu0 %v2853
      %2902 = vmatprep.subr.mxu0 0.0
      %2903 = vmatpush1.msra.mxu0 %v2855
      %2904 = vmatprep.subr.mxu0 0.0
      %2905 = vmatpush1.msra.mxu0 %v2857
      %2906 = vmatprep.subr.mxu0 0.0
      %2907 = vmatpush1.msra.mxu0 %v2859
      %2908 = vmatprep.subr.mxu0 0.0
      %2909 = vmatpush1.msra.mxu0 %v2861
      %2910 = vmatprep.subr.mxu0 0.0
      %2911 = vmatpush1.msra.mxu0 %v2863
      %2912 = vmatprep.subr.mxu0 0.0
      %2913 = vmatpush1.msra.mxu0 0.0
      %2914 = vmatprep.subr.mxu0 0.0
      %2915 = vmatpush1.msra.mxu0 0.0
      %2916 = vmatprep.subr.mxu0 0.0
      %2917 = vmatpush1.msra.mxu0 0.0
      %2918 = vmatprep.subr.mxu0 0.0
      %2919 = vmatpush1.msra.mxu0 0.0
      %2920 = vmatprep.subr.mxu0 0.0
      %2921 = vmatpush1.msra.mxu0 0.0
      %2922 = vmatprep.subr.mxu0 0.0
      %2923 = vmatpush1.msra.mxu0 0.0
      %2924 = vmatprep.subr.mxu0 0.0
      %2925 = vmatpush1.msra.mxu0 0.0
      %2926 = vmatprep.subr.mxu0 0.0
      %2927 = vmatpush1.msra.mxu0 0.0
      %2928 = vmatprep.subr.mxu0 0.0
      %2929 = vmatpush1.msra.mxu0 0.0
      %2930 = vmatprep.subr.mxu0 0.0
      %2931 = vmatpush1.msra.mxu0 0.0
      %2932 = vmatprep.subr.mxu0 0.0
      %2933 = vmatpush1.msra.mxu0 0.0
      %2934 = vmatprep.subr.mxu0 0.0
      %2935 = vmatpush1.msra.mxu0 0.0
      %2936 = vmatprep.subr.mxu0 0.0
      %2937 = vmatpush1.msra.mxu0 0.0
      %2938 = vmatprep.subr.mxu0 0.0
      %2939 = vmatpush1.msra.mxu0 0.0
      %2940 = vmatprep.subr.mxu0 0.0
      %2941 = vmatpush1.msra.mxu0 0.0
      %2942 = vmatprep.subr.mxu0 0.0
      %2943 = vmatpush1.msra.mxu0 0.0
      %2944 = vmatprep.mubr.f32.mxu0 0.0
      %2945 = vmatmul.mubr.f32.gmra.mrb[0].mxu0 %v2816
      %v2946 = vpop.f32.mrb[0].mxu0
      %v2947 = vadd.f32 0.0, %v2946
      %v2948 = vpop.f32.mrb[0].mxu0
      %2949 = vmatprep.mubr.f32.mxu0 0.0
      %2950 = vmatmul.mubr.f32.gmra.mrb[0].mxu0 %v2817
      %v2951 = vpop.f32.mrb[0].mxu0
      %v2952 = vadd.f32 0.0, %v2951
      %v2953 = vpop.f32.mrb[0].mxu0
      %2954 = vmatprep.mubr.f32.mxu0 0.0
      %2955 = vmatmul.mubr.f32.gmra.mrb[0].mxu0 %v2818
      %v2956 = vpop.f32.mrb[0].mxu0
      %v2957 = vadd.f32 0.0, %v2956
      %v2958 = vpop.f32.mrb[0].mxu0
      %2959 = vmatprep.mubr.f32.mxu0 0.0
      %2960 = vmatmul.mubr.f32.gmra.mrb[0].mxu0 %v2819
      %v2961 = vpop.f32.mrb[0].mxu0
      %v2962 = vadd.f32 0.0, %v2961
      %v2963 = vpop.f32.mrb[0].mxu0
      %2964 = vmatprep.mubr.f32.mxu0 0.0
      %2965 = vmatmul.mubr.f32.gmra.mrb[0].mxu0 %v2820
      %v2966 = vpop.f32.mrb[0].mxu0
      %v2967 = vadd.f32 0.0, %v2966
      %v2968 = vpop.f32.mrb[0].mxu0
      %2969 = vmatprep.mubr.f32.mxu0 0.0
      %2970 = vmatmul.mubr.f32.gmra.mrb[0].mxu0 %v2821
      %v2971 = vpop.f32.mrb[0].mxu0
      %v2972 = vadd.f32 0.0, %v2971
      %v2973 = vpop.f32.mrb[0].mxu0
      %2974 = vmatprep.mubr.f32.mxu0 0.0
      %2975 = vmatmul.mubr.f32.gmra.mrb[0].mxu0 %v2822
      %v2976 = vpop.f32.mrb[0].mxu0
      %v2977 = vadd.f32 0.0, %v2976
      %v2978 = vpop.f32.mrb[0].mxu0
      %2979 = vmatprep.mubr.f32.mxu0 0.0
      %2980 = vmatmul.mubr.f32.gmra.mrb[0].mxu0 %v2823
      %v2981 = vpop.f32.mrb[0].mxu0
      %v2982 = vadd.f32 0.0, %v2981
      %v2983 = vpop.f32.mrb[0].mxu0
      %2984 = vmatprep.mubr.f32.mxu0 0.0
      %2985 = vmatmul.mubr.f32.gmra.mrb[0].mxu0 %v2824
      %v2986 = vpop.f32.mrb[0].mxu0
      %v2987 = vadd.f32 0.0, %v2986
      %v2988 = vpop.f32.mrb[0].mxu0
      %2989 = vmatprep.mubr.f32.mxu0 0.0
      %2990 = vmatmul.mubr.f32.gmra.mrb[0].mxu0 %v2825
      %v2991 = vpop.f32.mrb[0].mxu0
      %v2992 = vadd.f32 0.0, %v2991
      %v2993 = vpop.f32.mrb[0].mxu0
      %2994 = vmatprep.mubr.f32.mxu0 0.0
      %2995 = vmatmul.mubr.f32.gmra.mrb[0].mxu0 %v2826
      %v2996 = vpop.f32.mrb[0].mxu0
      %v2997 = vadd.f32 0.0, %v2996
      %v2998 = vpop.f32.mrb[0].mxu0
      %2999 = vmatprep.mubr.f32.mxu0 0.0
      %3000 = vmatmul.mubr.f32.gmra.mrb[0].mxu0 %v2827
      %v3001 = vpop.f32.mrb[0].mxu0
      %v3002 = vadd.f32 0.0, %v3001
      %v3003 = vpop.f32.mrb[0].mxu0
      %3004 = vmatprep.mubr.f32.mxu0 0.0
      %3005 = vmatmul.mubr.f32.gmra.mrb[0].mxu0 %v2828
      %v3006 = vpop.f32.mrb[0].mxu0
      %v3007 = vadd.f32 0.0, %v3006
      %v3008 = vpop.f32.mrb[0].mxu0
      %3009 = vmatprep.mubr.f32.mxu0 0.0
      %3010 = vmatmul.mubr.f32.gmra.mrb[0].mxu0 %v2829
      %v3011 = vpop.f32.mrb[0].mxu0
      %v3012 = vadd.f32 0.0, %v3011
      %v3013 = vpop.f32.mrb[0].mxu0
      %3014 = vmatprep.mubr.f32.mxu0 0.0
      %3015 = vmatmul.mubr.f32.gmra.mrb[0].mxu0 %v2830
      %v3016 = vpop.f32.mrb[0].mxu0
      %v3017 = vadd.f32 0.0, %v3016
      %v3018 = vpop.f32.mrb[0].mxu0
      %3019 = vmatprep.mubr.f32.mxu0 0.0
      %3020 = vmatmul.mubr.f32.gmra.mrb[0].mxu0 %v2831
      %v3021 = vpop.f32.mrb[0].mxu0
      %v3022 = vadd.f32 0.0, %v3021
      %v3023 = vpop.f32.mrb[0].mxu0
      %3024 = vdwg.mxu0
      %3025 = vrot.lane.b32.xlu0 %v702, 104
      %v3026 = vpop.permute.xlu0 %3025
      %3027 = vrot.lane.b32.xlu0 %v703, 104
      %v3028 = vpop.permute.xlu0 %3027
      %3029 = vrot.lane.b32.xlu0 %v704, 104
      %v3030 = vpop.permute.xlu0 %3029
      %3031 = vrot.lane.b32.xlu0 %v705, 104
      %v3032 = vpop.permute.xlu0 %3031
      %3033 = vrot.lane.b32.xlu0 %v706, 104
      %v3034 = vpop.permute.xlu0 %3033
      %3035 = vrot.lane.b32.xlu0 %v707, 104
      %v3036 = vpop.permute.xlu0 %3035
      %3037 = vrot.lane.b32.xlu0 %v708, 104
      %v3038 = vpop.permute.xlu0 %3037
      %3039 = vrot.lane.b32.xlu0 %v709, 104
      %v3040 = vpop.permute.xlu0 %3039
      %3041 = vrot.lane.b32.xlu0 %v710, 104
      %v3042 = vpop.permute.xlu0 %3041
      %3043 = vrot.lane.b32.xlu0 %v711, 104
      %v3044 = vpop.permute.xlu0 %3043
      %3045 = vrot.lane.b32.xlu0 %v712, 104
      %v3046 = vpop.permute.xlu0 %3045
      %3047 = vrot.lane.b32.xlu0 %v713, 104
      %v3048 = vpop.permute.xlu0 %3047
      %3049 = vrot.lane.b32.xlu0 %v714, 104
      %v3050 = vpop.permute.xlu0 %3049
      %3051 = vrot.lane.b32.xlu0 %v715, 104
      %v3052 = vpop.permute.xlu0 %3051
      %3053 = vrot.lane.b32.xlu0 %v716, 104
      %v3054 = vpop.permute.xlu0 %3053
      %3055 = vrot.lane.b32.xlu0 %v717, 104
      %v3056 = vpop.permute.xlu0 %3055
      %3057 = vrot.lane.b32.xlu0 %v938, 104
      %v3058 = vpop.permute.xlu0 %3057
      %3059 = vrot.lane.b32.xlu0 %v939, 104
      %v3060 = vpop.permute.xlu0 %3059
      %3061 = vrot.lane.b32.xlu0 %v940, 104
      %v3062 = vpop.permute.xlu0 %3061
      %3063 = vrot.lane.b32.xlu0 %v941, 104
      %v3064 = vpop.permute.xlu0 %3063
      %3065 = vrot.lane.b32.xlu0 %v942, 104
      %v3066 = vpop.permute.xlu0 %3065
      %3067 = vrot.lane.b32.xlu0 %v943, 104
      %v3068 = vpop.permute.xlu0 %3067
      %3069 = vrot.lane.b32.xlu0 %v944, 104
      %v3070 = vpop.permute.xlu0 %3069
      %3071 = vrot.lane.b32.xlu0 %v945, 104
      %v3072 = vpop.permute.xlu0 %3071
      %3073 = vrot.lane.b32.xlu0 %v946, 104
      %v3074 = vpop.permute.xlu0 %3073
      %3075 = vrot.lane.b32.xlu0 %v947, 104
      %v3076 = vpop.permute.xlu0 %3075
      %3077 = vrot.lane.b32.xlu0 %v948, 104
      %v3078 = vpop.permute.xlu0 %3077
      %3079 = vrot.lane.b32.xlu0 %v949, 104
      %v3080 = vpop.permute.xlu0 %3079
      %3081 = vrot.lane.b32.xlu0 %v950, 104
      %v3082 = vpop.permute.xlu0 %3081
      %3083 = vrot.lane.b32.xlu0 %v951, 104
      %v3084 = vpop.permute.xlu0 %3083
      %3085 = vrot.lane.b32.xlu0 %v952, 104
      %v3086 = vpop.permute.xlu0 %3085
      %3087 = vrot.lane.b32.xlu0 %v953, 104
      %v3088 = vpop.permute.xlu0 %3087
      %v3089 = vsel %vm1258, %v3026, 0
      %v3091 = vsel %vm1258, %v3028, 0
      %v3093 = vsel %vm1258, %v3030, 0
      %v3095 = vsel %vm1258, %v3032, 0
      %v3097 = vsel %vm1258, %v3034, 0
      %v3099 = vsel %vm1258, %v3036, 0
      %v3101 = vsel %vm1258, %v3038, 0
      %v3103 = vsel %vm1258, %v3040, 0
      %v3105 = vsel %vm1258, %v3042, 0
      %v3107 = vsel %vm1258, %v3044, 0
      %v3109 = vsel %vm1258, %v3046, 0
      %v3111 = vsel %vm1258, %v3048, 0
      %v3113 = vsel %vm1258, %v3050, 0
      %v3115 = vsel %vm1258, %v3052, 0
      %v3117 = vsel %vm1258, %v3054, 0
      %v3119 = vsel %vm1258, %v3056, 0
      %v3121 = vsel %vm1258, %v3058, 0
      %v3123 = vsel %vm1258, %v3060, 0
      %v3125 = vsel %vm1258, %v3062, 0
      %v3127 = vsel %vm1258, %v3064, 0
      %v3129 = vsel %vm1258, %v3066, 0
      %v3131 = vsel %vm1258, %v3068, 0
      %v3133 = vsel %vm1258, %v3070, 0
      %v3135 = vsel %vm1258, %v3072, 0
      %v3137 = vsel %vm1258, %v3074, 0
      %v3139 = vsel %vm1258, %v3076, 0
      %v3141 = vsel %vm1258, %v3078, 0
      %v3143 = vsel %vm1258, %v3080, 0
      %v3145 = vsel %vm1258, %v3082, 0
      %v3147 = vsel %vm1258, %v3084, 0
      %v3149 = vsel %vm1258, %v3086, 0
      %v3151 = vsel %vm1258, %v3088, 0
      %3153 = vmatprep.subr.mxu0 0.0
      %3154 = vmatpush1.xpose.msra.mxu0 %v3121
      %3155 = vmatprep.subr.mxu0 0.0
      %3156 = vmatpush1.xpose.msra.mxu0 %v3123
      %3157 = vmatprep.subr.mxu0 0.0
      %3158 = vmatpush1.xpose.msra.mxu0 %v3125
      %3159 = vmatprep.subr.mxu0 0.0
      %3160 = vmatpush1.xpose.msra.mxu0 %v3127
      %3161 = vmatprep.subr.mxu0 0.0
      %3162 = vmatpush1.xpose.msra.mxu0 %v3129
      %3163 = vmatprep.subr.mxu0 0.0
      %3164 = vmatpush1.xpose.msra.mxu0 %v3131
      %3165 = vmatprep.subr.mxu0 0.0
      %3166 = vmatpush1.xpose.msra.mxu0 %v3133
      %3167 = vmatprep.subr.mxu0 0.0
      %3168 = vmatpush1.xpose.msra.mxu0 %v3135
      %3169 = vmatprep.subr.mxu0 0.0
      %3170 = vmatpush1.xpose.msra.mxu0 %v3137
      %3171 = vmatprep.subr.mxu0 0.0
      %3172 = vmatpush1.xpose.msra.mxu0 %v3139
      %3173 = vmatprep.subr.mxu0 0.0
      %3174 = vmatpush1.xpose.msra.mxu0 %v3141
      %3175 = vmatprep.subr.mxu0 0.0
      %3176 = vmatpush1.xpose.msra.mxu0 %v3143
      %3177 = vmatprep.subr.mxu0 0.0
      %3178 = vmatpush1.xpose.msra.mxu0 %v3145
      %3179 = vmatprep.subr.mxu0 0.0
      %3180 = vmatpush1.xpose.msra.mxu0 %v3147
      %3181 = vmatprep.subr.mxu0 0.0
      %3182 = vmatpush1.xpose.msra.mxu0 %v3149
      %3183 = vmatprep.subr.mxu0 0.0
      %3184 = vmatpush1.xpose.msra.mxu0 %v3151
      %3185 = vmatprep.subr.mxu0 0.0
      %3186 = vmatpush1.xpose.msra.mxu0 0.0
      %3187 = vmatprep.subr.mxu0 0.0
      %3188 = vmatpush1.xpose.msra.mxu0 0.0
      %3189 = vmatprep.subr.mxu0 0.0
      %3190 = vmatpush1.xpose.msra.mxu0 0.0
      %3191 = vmatprep.subr.mxu0 0.0
      %3192 = vmatpush1.xpose.msra.mxu0 0.0
      %3193 = vmatprep.subr.mxu0 0.0
      %3194 = vmatpush1.xpose.msra.mxu0 0.0
      %3195 = vmatprep.subr.mxu0 0.0
      %3196 = vmatpush1.xpose.msra.mxu0 0.0
      %3197 = vmatprep.subr.mxu0 0.0
      %3198 = vmatpush1.xpose.msra.mxu0 0.0
      %3199 = vmatprep.subr.mxu0 0.0
      %3200 = vmatpush1.xpose.msra.mxu0 0.0
      %3201 = vmatprep.subr.mxu0 0.0
      %3202 = vmatpush1.xpose.msra.mxu0 0.0
      %3203 = vmatprep.subr.mxu0 0.0
      %3204 = vmatpush1.xpose.msra.mxu0 0.0
      %3205 = vmatprep.subr.mxu0 0.0
      %3206 = vmatpush1.xpose.msra.mxu0 0.0
      %3207 = vmatprep.subr.mxu0 0.0
      %3208 = vmatpush1.xpose.msra.mxu0 0.0
      %3209 = vmatprep.subr.mxu0 0.0
      %3210 = vmatpush1.xpose.msra.mxu0 0.0
      %3211 = vmatprep.subr.mxu0 0.0
      %3212 = vmatpush1.xpose.msra.mxu0 0.0
      %3213 = vmatprep.subr.mxu0 0.0
      %3214 = vmatpush1.xpose.msra.mxu0 0.0
      %3215 = vmatprep.subr.mxu0 0.0
      %3216 = vmatpush1.xpose.msra.mxu0 0.0
      %3217 = vmatprep.mubr.f32.mxu0 0.0
      %3218 = vmatmul.mubr.f32.gmra.mrb[0].mxu0 %v3089
      %v3219 = vpop.f32.mrb[0].mxu0
      %v3220 = vadd.f32 %v1242, %v3219
      %v3221 = vpop.f32.mrb[0].mxu0
      %3222 = vmatprep.mubr.f32.mxu0 0.0
      %3223 = vmatmul.mubr.f32.gmra.mrb[0].mxu0 %v3091
      %v3224 = vpop.f32.mrb[0].mxu0
      %v3225 = vadd.f32 %v1243, %v3224
      %v3226 = vpop.f32.mrb[0].mxu0
      %3227 = vmatprep.mubr.f32.mxu0 0.0
      %3228 = vmatmul.mubr.f32.gmra.mrb[0].mxu0 %v3093
      %v3229 = vpop.f32.mrb[0].mxu0
      %v3230 = vadd.f32 %v1244, %v3229
      %v3231 = vpop.f32.mrb[0].mxu0
      %3232 = vmatprep.mubr.f32.mxu0 0.0
      %3233 = vmatmul.mubr.f32.gmra.mrb[0].mxu0 %v3095
      %v3234 = vpop.f32.mrb[0].mxu0
      %v3235 = vadd.f32 %v1245, %v3234
      %v3236 = vpop.f32.mrb[0].mxu0
      %3237 = vmatprep.mubr.f32.mxu0 0.0
      %3238 = vmatmul.mubr.f32.gmra.mrb[0].mxu0 %v3097
      %v3239 = vpop.f32.mrb[0].mxu0
      %v3240 = vadd.f32 %v1246, %v3239
      %v3241 = vpop.f32.mrb[0].mxu0
      %3242 = vmatprep.mubr.f32.mxu0 0.0
      %3243 = vmatmul.mubr.f32.gmra.mrb[0].mxu0 %v3099
      %v3244 = vpop.f32.mrb[0].mxu0
      %v3245 = vadd.f32 %v1247, %v3244
      %v3246 = vpop.f32.mrb[0].mxu0
      %3247 = vmatprep.mubr.f32.mxu0 0.0
      %3248 = vmatmul.mubr.f32.gmra.mrb[0].mxu0 %v3101
      %v3249 = vpop.f32.mrb[0].mxu0
      %v3250 = vadd.f32 %v1248, %v3249
      %v3251 = vpop.f32.mrb[0].mxu0
      %3252 = vmatprep.mubr.f32.mxu0 0.0
      %3253 = vmatmul.mubr.f32.gmra.mrb[0].mxu0 %v3103
      %v3254 = vpop.f32.mrb[0].mxu0
      %v3255 = vadd.f32 %v1249, %v3254
      %v3256 = vpop.f32.mrb[0].mxu0
      %3257 = vmatprep.mubr.f32.mxu0 0.0
      %3258 = vmatmul.mubr.f32.gmra.mrb[0].mxu0 %v3105
      %v3259 = vpop.f32.mrb[0].mxu0
      %v3260 = vadd.f32 %v1250, %v3259
      %v3261 = vpop.f32.mrb[0].mxu0
      %3262 = vmatprep.mubr.f32.mxu0 0.0
      %3263 = vmatmul.mubr.f32.gmra.mrb[0].mxu0 %v3107
      %v3264 = vpop.f32.mrb[0].mxu0
      %v3265 = vadd.f32 %v1251, %v3264
      %v3266 = vpop.f32.mrb[0].mxu0
      %3267 = vmatprep.mubr.f32.mxu0 0.0
      %3268 = vmatmul.mubr.f32.gmra.mrb[0].mxu0 %v3109
      %v3269 = vpop.f32.mrb[0].mxu0
      %v3270 = vadd.f32 %v1252, %v3269
      %v3271 = vpop.f32.mrb[0].mxu0
      %3272 = vmatprep.mubr.f32.mxu0 0.0
      %3273 = vmatmul.mubr.f32.gmra.mrb[0].mxu0 %v3111
      %v3274 = vpop.f32.mrb[0].mxu0
      %v3275 = vadd.f32 %v1253, %v3274
      %v3276 = vpop.f32.mrb[0].mxu0
      %3277 = vmatprep.mubr.f32.mxu0 0.0
      %3278 = vmatmul.mubr.f32.gmra.mrb[0].mxu0 %v3113
      %v3279 = vpop.f32.mrb[0].mxu0
      %v3280 = vadd.f32 %v1254, %v3279
      %v3281 = vpop.f32.mrb[0].mxu0
      %3282 = vmatprep.mubr.f32.mxu0 0.0
      %3283 = vmatmul.mubr.f32.gmra.mrb[0].mxu0 %v3115
      %v3284 = vpop.f32.mrb[0].mxu0
      %v3285 = vadd.f32 %v1255, %v3284
      %v3286 = vpop.f32.mrb[0].mxu0
      %3287 = vmatprep.mubr.f32.mxu0 0.0
      %3288 = vmatmul.mubr.f32.gmra.mrb[0].mxu0 %v3117
      %v3289 = vpop.f32.mrb[0].mxu0
      %v3290 = vadd.f32 %v1256, %v3289
      %v3291 = vpop.f32.mrb[0].mxu0
      %3292 = vmatprep.mubr.f32.mxu0 0.0
      %3293 = vmatmul.mubr.f32.gmra.mrb[0].mxu0 %v3119
      %v3294 = vpop.f32.mrb[0].mxu0
      %v3295 = vadd.f32 %v1257, %v3294
      %v3296 = vpop.f32.mrb[0].mxu0
      %3297 = vdwg.mxu0
      %3298 = vmax.xlane.f32.xlu0 %v3220
      %v3299 = vpop.xlane.xlu0 %3298
      %3300 = vmax.xlane.f32.xlu0 %v3225
      %v3301 = vpop.xlane.xlu0 %3300
      %3302 = vmax.xlane.f32.xlu0 %v3230
      %v3303 = vpop.xlane.xlu0 %3302
      %3304 = vmax.xlane.f32.xlu0 %v3235
      %v3305 = vpop.xlane.xlu0 %3304
      %3306 = vmax.xlane.f32.xlu0 %v3240
      %v3307 = vpop.xlane.xlu0 %3306
      %3308 = vmax.xlane.f32.xlu0 %v3245
      %v3309 = vpop.xlane.xlu0 %3308
      %3310 = vmax.xlane.f32.xlu0 %v3250
      %v3311 = vpop.xlane.xlu0 %3310
      %3312 = vmax.xlane.f32.xlu0 %v3255
      %v3313 = vpop.xlane.xlu0 %3312
      %3314 = vmax.xlane.f32.xlu0 %v3260
      %v3315 = vpop.xlane.xlu0 %3314
      %3316 = vmax.xlane.f32.xlu0 %v3265
      %v3317 = vpop.xlane.xlu0 %3316
      %3318 = vmax.xlane.f32.xlu0 %v3270
      %v3319 = vpop.xlane.xlu0 %3318
      %3320 = vmax.xlane.f32.xlu0 %v3275
      %v3321 = vpop.xlane.xlu0 %3320
      %3322 = vmax.xlane.f32.xlu0 %v3280
      %v3323 = vpop.xlane.xlu0 %3322
      %3324 = vmax.xlane.f32.xlu0 %v3285
      %v3325 = vpop.xlane.xlu0 %3324
      %3326 = vmax.xlane.f32.xlu0 %v3290
      %v3327 = vpop.xlane.xlu0 %3326
      %3328 = vmax.xlane.f32.xlu0 %v3295
      %v3329 = vpop.xlane.xlu0 %3328
      %v3330 = vsub.f32 %v3220, %v3299
      %v3331 = vsub.f32 %v3225, %v3301
      %v3332 = vsub.f32 %v3230, %v3303
      %v3333 = vsub.f32 %v3235, %v3305
      %v3334 = vsub.f32 %v3240, %v3307
      %v3335 = vsub.f32 %v3245, %v3309
      %v3336 = vsub.f32 %v3250, %v3311
      %v3337 = vsub.f32 %v3255, %v3313
      %v3338 = vsub.f32 %v3260, %v3315
      %v3339 = vsub.f32 %v3265, %v3317
      %v3340 = vsub.f32 %v3270, %v3319
      %v3341 = vsub.f32 %v3275, %v3321
      %v3342 = vsub.f32 %v3280, %v3323
      %v3343 = vsub.f32 %v3285, %v3325
      %v3344 = vsub.f32 %v3290, %v3327
      %v3345 = vsub.f32 %v3295, %v3329
      %v3346 = vmul.f32 %v3330, 1.442695
      %v3347 = vpow.pop %v3346
      %v3348 = vmul.f32 %v3331, 1.442695
      %v3349 = vpow.pop %v3348
      %v3350 = vmul.f32 %v3332, 1.442695
      %v3351 = vpow.pop %v3350
      %v3352 = vmul.f32 %v3333, 1.442695
      %v3353 = vpow.pop %v3352
      %v3354 = vmul.f32 %v3334, 1.442695
      %v3355 = vpow.pop %v3354
      %v3356 = vmul.f32 %v3335, 1.442695
      %v3357 = vpow.pop %v3356
      %v3358 = vmul.f32 %v3336, 1.442695
      %v3359 = vpow.pop %v3358
      %v3360 = vmul.f32 %v3337, 1.442695
      %v3361 = vpow.pop %v3360
      %v3362 = vmul.f32 %v3338, 1.442695
      %v3363 = vpow.pop %v3362
      %v3364 = vmul.f32 %v3339, 1.442695
      %v3365 = vpow.pop %v3364
      %v3366 = vmul.f32 %v3340, 1.442695
      %v3367 = vpow.pop %v3366
      %v3368 = vmul.f32 %v3341, 1.442695
      %v3369 = vpow.pop %v3368
      %v3370 = vmul.f32 %v3342, 1.442695
      %v3371 = vpow.pop %v3370
      %v3372 = vmul.f32 %v3343, 1.442695
      %v3373 = vpow.pop %v3372
      %v3374 = vmul.f32 %v3344, 1.442695
      %v3375 = vpow.pop %v3374
      %v3376 = vmul.f32 %v3345, 1.442695
      %v3377 = vpow.pop %v3376
      %3378 = vadd.xlane.f32.xlu0 %v3347
      %v3379 = vpop.xlane.xlu0 %3378
      %3380 = vadd.xlane.f32.xlu0 %v3349
      %v3381 = vpop.xlane.xlu0 %3380
      %3382 = vadd.xlane.f32.xlu0 %v3351
      %v3383 = vpop.xlane.xlu0 %3382
      %3384 = vadd.xlane.f32.xlu0 %v3353
      %v3385 = vpop.xlane.xlu0 %3384
      %3386 = vadd.xlane.f32.xlu0 %v3355
      %v3387 = vpop.xlane.xlu0 %3386
      %3388 = vadd.xlane.f32.xlu0 %v3357
      %v3389 = vpop.xlane.xlu0 %3388
      %3390 = vadd.xlane.f32.xlu0 %v3359
      %v3391 = vpop.xlane.xlu0 %3390
      %3392 = vadd.xlane.f32.xlu0 %v3361
      %v3393 = vpop.xlane.xlu0 %3392
      %3394 = vadd.xlane.f32.xlu0 %v3363
      %v3395 = vpop.xlane.xlu0 %3394
      %3396 = vadd.xlane.f32.xlu0 %v3365
      %v3397 = vpop.xlane.xlu0 %3396
      %3398 = vadd.xlane.f32.xlu0 %v3367
      %v3399 = vpop.xlane.xlu0 %3398
      %3400 = vadd.xlane.f32.xlu0 %v3369
      %v3401 = vpop.xlane.xlu0 %3400
      %3402 = vadd.xlane.f32.xlu0 %v3371
      %v3403 = vpop.xlane.xlu0 %3402
      %3404 = vadd.xlane.f32.xlu0 %v3373
      %v3405 = vpop.xlane.xlu0 %3404
      %3406 = vadd.xlane.f32.xlu0 %v3375
      %v3407 = vpop.xlane.xlu0 %3406
      %3408 = vadd.xlane.f32.xlu0 %v3377
      %v3409 = vpop.xlane.xlu0 %3408
      %v3410 = vrcp.pop %v3379
      %v3411 = vrcp.pop %v3381
      %v3412 = vrcp.pop %v3383
      %v3413 = vrcp.pop %v3385
      %v3414 = vrcp.pop %v3387
      %v3415 = vrcp.pop %v3389
      %v3416 = vrcp.pop %v3391
      %v3417 = vrcp.pop %v3393
      %v3418 = vrcp.pop %v3395
      %v3419 = vrcp.pop %v3397
      %v3420 = vrcp.pop %v3399
      %v3421 = vrcp.pop %v3401
      %v3422 = vrcp.pop %v3403
      %v3423 = vrcp.pop %v3405
      %v3424 = vrcp.pop %v3407
      %v3425 = vrcp.pop %v3409
      %v3426 = vmul.f32 %v3347, %v3410
      %v3427 = vmul.f32 %v3349, %v3411
      %v3428 = vmul.f32 %v3351, %v3412
      %v3429 = vmul.f32 %v3353, %v3413
      %v3430 = vmul.f32 %v3355, %v3414
      %v3431 = vmul.f32 %v3357, %v3415
      %v3432 = vmul.f32 %v3359, %v3416
      %v3433 = vmul.f32 %v3361, %v3417
      %v3434 = vmul.f32 %v3363, %v3418
      %v3435 = vmul.f32 %v3365, %v3419
      %v3436 = vmul.f32 %v3367, %v3420
      %v3437 = vmul.f32 %v3369, %v3421
      %v3438 = vmul.f32 %v3371, %v3422
      %v3439 = vmul.f32 %v3373, %v3423
      %v3440 = vmul.f32 %v3375, %v3424
      %v3441 = vmul.f32 %v3377, %v3425
      %3442 = vrot.lane.b32.xlu0 %v1174, 104
      %v3443 = vpop.permute.xlu0 %3442
      %3444 = vrot.lane.b32.xlu0 %v1175, 104
      %v3445 = vpop.permute.xlu0 %3444
      %3446 = vrot.lane.b32.xlu0 %v1176, 104
      %v3447 = vpop.permute.xlu0 %3446
      %3448 = vrot.lane.b32.xlu0 %v1177, 104
      %v3449 = vpop.permute.xlu0 %3448
      %3450 = vrot.lane.b32.xlu0 %v1178, 104
      %v3451 = vpop.permute.xlu0 %3450
      %3452 = vrot.lane.b32.xlu0 %v1179, 104
      %v3453 = vpop.permute.xlu0 %3452
      %3454 = vrot.lane.b32.xlu0 %v1180, 104
      %v3455 = vpop.permute.xlu0 %3454
      %3456 = vrot.lane.b32.xlu0 %v1181, 104
      %v3457 = vpop.permute.xlu0 %3456
      %3458 = vrot.lane.b32.xlu0 %v1182, 104
      %v3459 = vpop.permute.xlu0 %3458
      %3460 = vrot.lane.b32.xlu0 %v1183, 104
      %v3461 = vpop.permute.xlu0 %3460
      %3462 = vrot.lane.b32.xlu0 %v1184, 104
      %v3463 = vpop.permute.xlu0 %3462
      %3464 = vrot.lane.b32.xlu0 %v1185, 104
      %v3465 = vpop.permute.xlu0 %3464
      %3466 = vrot.lane.b32.xlu0 %v1186, 104
      %v3467 = vpop.permute.xlu0 %3466
      %3468 = vrot.lane.b32.xlu0 %v1187, 104
      %v3469 = vpop.permute.xlu0 %3468
      %3470 = vrot.lane.b32.xlu0 %v1188, 104
      %v3471 = vpop.permute.xlu0 %3470
      %3472 = vrot.lane.b32.xlu0 %v1189, 104
      %v3473 = vpop.permute.xlu0 %3472
      %3490 = vmatprep.subr.mxu0 0.0
      %3491 = vmatpush1.msra.mxu0 %v3443
      %3492 = vmatprep.subr.mxu0 0.0
      %3493 = vmatpush1.msra.mxu0 %v3445
      %3494 = vmatprep.subr.mxu0 0.0
      %3495 = vmatpush1.msra.mxu0 %v3447
      %3496 = vmatprep.subr.mxu0 0.0
      %3497 = vmatpush1.msra.mxu0 %v3449
      %3498 = vmatprep.subr.mxu0 0.0
      %3499 = vmatpush1.msra.mxu0 %v3451
      %3500 = vmatprep.subr.mxu0 0.0
      %3501 = vmatpush1.msra.mxu0 %v3453
      %3502 = vmatprep.subr.mxu0 0.0
      %3503 = vmatpush1.msra.mxu0 %v3455
      %3504 = vmatprep.subr.mxu0 0.0
      %3505 = vmatpush1.msra.mxu0 %v3457
      %3506 = vmatprep.subr.mxu0 0.0
      %3507 = vmatpush1.msra.mxu0 %v3459
      %3508 = vmatprep.subr.mxu0 0.0
      %3509 = vmatpush1.msra.mxu0 %v3461
      %3510 = vmatprep.subr.mxu0 0.0
      %3511 = vmatpush1.msra.mxu0 %v3463
      %3512 = vmatprep.subr.mxu0 0.0
      %3513 = vmatpush1.msra.mxu0 %v3465
      %3514 = vmatprep.subr.mxu0 0.0
      %3515 = vmatpush1.msra.mxu0 %v3467
      %3516 = vmatprep.subr.mxu0 0.0
      %3517 = vmatpush1.msra.mxu0 %v3469
      %3518 = vmatprep.subr.mxu0 0.0
      %3519 = vmatpush1.msra.mxu0 %v3471
      %3520 = vmatprep.subr.mxu0 0.0
      %3521 = vmatpush1.msra.mxu0 %v3473
      %3522 = vmatprep.subr.mxu0 0.0
      %3523 = vmatpush1.msra.mxu0 0.0
      %3524 = vmatprep.subr.mxu0 0.0
      %3525 = vmatpush1.msra.mxu0 0.0
      %3526 = vmatprep.subr.mxu0 0.0
      %3527 = vmatpush1.msra.mxu0 0.0
      %3528 = vmatprep.subr.mxu0 0.0
      %3529 = vmatpush1.msra.mxu0 0.0
      %3530 = vmatprep.subr.mxu0 0.0
      %3531 = vmatpush1.msra.mxu0 0.0
      %3532 = vmatprep.subr.mxu0 0.0
      %3533 = vmatpush1.msra.mxu0 0.0
      %3534 = vmatprep.subr.mxu0 0.0
      %3535 = vmatpush1.msra.mxu0 0.0
      %3536 = vmatprep.subr.mxu0 0.0
      %3537 = vmatpush1.msra.mxu0 0.0
      %3538 = vmatprep.subr.mxu0 0.0
      %3539 = vmatpush1.msra.mxu0 0.0
      %3540 = vmatprep.subr.mxu0 0.0
      %3541 = vmatpush1.msra.mxu0 0.0
      %3542 = vmatprep.subr.mxu0 0.0
      %3543 = vmatpush1.msra.mxu0 0.0
      %3544 = vmatprep.subr.mxu0 0.0
      %3545 = vmatpush1.msra.mxu0 0.0
      %3546 = vmatprep.subr.mxu0 0.0
      %3547 = vmatpush1.msra.mxu0 0.0
      %3548 = vmatprep.subr.mxu0 0.0
      %3549 = vmatpush1.msra.mxu0 0.0
      %3550 = vmatprep.subr.mxu0 0.0
      %3551 = vmatpush1.msra.mxu0 0.0
      %3552 = vmatprep.subr.mxu0 0.0
      %3553 = vmatpush1.msra.mxu0 0.0
      %3554 = vmatprep.mubr.f32.mxu0 0.0
      %3555 = vmatmul.mubr.f32.gmra.mrb[0].mxu0 %v3426
      %v3556 = vpop.f32.mrb[0].mxu0
      %v3557 = vadd.f32 0.0, %v3556
      %v3558 = vpop.f32.mrb[0].mxu0
      %3559 = vmatprep.mubr.f32.mxu0 0.0
      %3560 = vmatmul.mubr.f32.gmra.mrb[0].mxu0 %v3427
      %v3561 = vpop.f32.mrb[0].mxu0
      %v3562 = vadd.f32 0.0, %v3561
      %v3563 = vpop.f32.mrb[0].mxu0
      %3564 = vmatprep.mubr.f32.mxu0 0.0
      %3565 = vmatmul.mubr.f32.gmra.mrb[0].mxu0 %v3428
      %v3566 = vpop.f32.mrb[0].mxu0
      %v3567 = vadd.f32 0.0, %v3566
      %v3568 = vpop.f32.mrb[0].mxu0
      %3569 = vmatprep.mubr.f32.mxu0 0.0
      %3570 = vmatmul.mubr.f32.gmra.mrb[0].mxu0 %v3429
      %v3571 = vpop.f32.mrb[0].mxu0
      %v3572 = vadd.f32 0.0, %v3571
      %v3573 = vpop.f32.mrb[0].mxu0
      %3574 = vmatprep.mubr.f32.mxu0 0.0
      %3575 = vmatmul.mubr.f32.gmra.mrb[0].mxu0 %v3430
      %v3576 = vpop.f32.mrb[0].mxu0
      %v3577 = vadd.f32 0.0, %v3576
      %v3578 = vpop.f32.mrb[0].mxu0
      %3579 = vmatprep.mubr.f32.mxu0 0.0
      %3580 = vmatmul.mubr.f32.gmra.mrb[0].mxu0 %v3431
      %v3581 = vpop.f32.mrb[0].mxu0
      %v3582 = vadd.f32 0.0, %v3581
      %v3583 = vpop.f32.mrb[0].mxu0
      %3584 = vmatprep.mubr.f32.mxu0 0.0
      %3585 = vmatmul.mubr.f32.gmra.mrb[0].mxu0 %v3432
      %v3586 = vpop.f32.mrb[0].mxu0
      %v3587 = vadd.f32 0.0, %v3586
      %v3588 = vpop.f32.mrb[0].mxu0
      %3589 = vmatprep.mubr.f32.mxu0 0.0
      %3590 = vmatmul.mubr.f32.gmra.mrb[0].mxu0 %v3433
      %v3591 = vpop.f32.mrb[0].mxu0
      %v3592 = vadd.f32 0.0, %v3591
      %v3593 = vpop.f32.mrb[0].mxu0
      %3594 = vmatprep.mubr.f32.mxu0 0.0
      %3595 = vmatmul.mubr.f32.gmra.mrb[0].mxu0 %v3434
      %v3596 = vpop.f32.mrb[0].mxu0
      %v3597 = vadd.f32 0.0, %v3596
      %v3598 = vpop.f32.mrb[0].mxu0
      %3599 = vmatprep.mubr.f32.mxu0 0.0
      %3600 = vmatmul.mubr.f32.gmra.mrb[0].mxu0 %v3435
      %v3601 = vpop.f32.mrb[0].mxu0
      %v3602 = vadd.f32 0.0, %v3601
      %v3603 = vpop.f32.mrb[0].mxu0
      %3604 = vmatprep.mubr.f32.mxu0 0.0
      %3605 = vmatmul.mubr.f32.gmra.mrb[0].mxu0 %v3436
      %v3606 = vpop.f32.mrb[0].mxu0
      %v3607 = vadd.f32 0.0, %v3606
      %v3608 = vpop.f32.mrb[0].mxu0
      %3609 = vmatprep.mubr.f32.mxu0 0.0
      %3610 = vmatmul.mubr.f32.gmra.mrb[0].mxu0 %v3437
      %v3611 = vpop.f32.mrb[0].mxu0
      %v3612 = vadd.f32 0.0, %v3611
      %v3613 = vpop.f32.mrb[0].mxu0
      %3614 = vmatprep.mubr.f32.mxu0 0.0
      %3615 = vmatmul.mubr.f32.gmra.mrb[0].mxu0 %v3438
      %v3616 = vpop.f32.mrb[0].mxu0
      %v3617 = vadd.f32 0.0, %v3616
      %v3618 = vpop.f32.mrb[0].mxu0
      %3619 = vmatprep.mubr.f32.mxu0 0.0
      %3620 = vmatmul.mubr.f32.gmra.mrb[0].mxu0 %v3439
      %v3621 = vpop.f32.mrb[0].mxu0
      %v3622 = vadd.f32 0.0, %v3621
      %v3623 = vpop.f32.mrb[0].mxu0
      %3624 = vmatprep.mubr.f32.mxu0 0.0
      %3625 = vmatmul.mubr.f32.gmra.mrb[0].mxu0 %v3440
      %v3626 = vpop.f32.mrb[0].mxu0
      %v3627 = vadd.f32 0.0, %v3626
      %v3628 = vpop.f32.mrb[0].mxu0
      %3629 = vmatprep.mubr.f32.mxu0 0.0
      %3630 = vmatmul.mubr.f32.gmra.mrb[0].mxu0 %v3441
      %v3631 = vpop.f32.mrb[0].mxu0
      %v3632 = vadd.f32 0.0, %v3631
      %v3633 = vpop.f32.mrb[0].mxu0
      %3634 = vdwg.mxu0
      %3651 = vrot.lane.b32.xlu0 %v2337, 8
      %v3652 = vpop.permute.xlu0 %3651
      %3653 = vrot.lane.b32.xlu0 %v2342, 8
      %v3654 = vpop.permute.xlu0 %3653
      %3655 = vrot.lane.b32.xlu0 %v2347, 8
      %v3656 = vpop.permute.xlu0 %3655
      %3657 = vrot.lane.b32.xlu0 %v2352, 8
      %v3658 = vpop.permute.xlu0 %3657
      %3659 = vrot.lane.b32.xlu0 %v2357, 8
      %v3660 = vpop.permute.xlu0 %3659
      %3661 = vrot.lane.b32.xlu0 %v2362, 8
      %v3662 = vpop.permute.xlu0 %3661
      %3663 = vrot.lane.b32.xlu0 %v2367, 8
      %v3664 = vpop.permute.xlu0 %3663
      %3665 = vrot.lane.b32.xlu0 %v2372, 8
      %v3666 = vpop.permute.xlu0 %3665
      %3667 = vrot.lane.b32.xlu0 %v2377, 8
      %v3668 = vpop.permute.xlu0 %3667
      %3669 = vrot.lane.b32.xlu0 %v2382, 8
      %v3670 = vpop.permute.xlu0 %3669
      %3671 = vrot.lane.b32.xlu0 %v2387, 8
      %v3672 = vpop.permute.xlu0 %3671
      %3673 = vrot.lane.b32.xlu0 %v2392, 8
      %v3674 = vpop.permute.xlu0 %3673
      %3675 = vrot.lane.b32.xlu0 %v2397, 8
      %v3676 = vpop.permute.xlu0 %3675
      %3677 = vrot.lane.b32.xlu0 %v2402, 8
      %v3678 = vpop.permute.xlu0 %3677
      %3679 = vrot.lane.b32.xlu0 %v2407, 8
      %v3680 = vpop.permute.xlu0 %3679
      %3681 = vrot.lane.b32.xlu0 %v2412, 8
      %v3682 = vpop.permute.xlu0 %3681
      %3715 = vrot.lane.b32.xlu0 %v2947, 16
      %v3716 = vpop.permute.xlu0 %3715
      %3717 = vrot.lane.b32.xlu0 %v2952, 16
      %v3718 = vpop.permute.xlu0 %3717
      %3719 = vrot.lane.b32.xlu0 %v2957, 16
      %v3720 = vpop.permute.xlu0 %3719
      %3721 = vrot.lane.b32.xlu0 %v2962, 16
      %v3722 = vpop.permute.xlu0 %3721
      %3723 = vrot.lane.b32.xlu0 %v2967, 16
      %v3724 = vpop.permute.xlu0 %3723
      %3725 = vrot.lane.b32.xlu0 %v2972, 16
      %v3726 = vpop.permute.xlu0 %3725
      %3727 = vrot.lane.b32.xlu0 %v2977, 16
      %v3728 = vpop.permute.xlu0 %3727
      %3729 = vrot.lane.b32.xlu0 %v2982, 16
      %v3730 = vpop.permute.xlu0 %3729
      %3731 = vrot.lane.b32.xlu0 %v2987, 16
      %v3732 = vpop.permute.xlu0 %3731
      %3733 = vrot.lane.b32.xlu0 %v2992, 16
      %v3734 = vpop.permute.xlu0 %3733
      %3735 = vrot.lane.b32.xlu0 %v2997, 16
      %v3736 = vpop.permute.xlu0 %3735
      %3737 = vrot.lane.b32.xlu0 %v3002, 16
      %v3738 = vpop.permute.xlu0 %3737
      %3739 = vrot.lane.b32.xlu0 %v3007, 16
      %v3740 = vpop.permute.xlu0 %3739
      %3741 = vrot.lane.b32.xlu0 %v3012, 16
      %v3742 = vpop.permute.xlu0 %3741
      %3743 = vrot.lane.b32.xlu0 %v3017, 16
      %v3744 = vpop.permute.xlu0 %3743
      %3745 = vrot.lane.b32.xlu0 %v3022, 16
      %v3746 = vpop.permute.xlu0 %3745
      %3779 = vrot.lane.b32.xlu0 %v3557, 24
      %v3780 = vpop.permute.xlu0 %3779
      %3781 = vrot.lane.b32.xlu0 %v3562, 24
      %v3782 = vpop.permute.xlu0 %3781
      %3783 = vrot.lane.b32.xlu0 %v3567, 24
      %v3784 = vpop.permute.xlu0 %3783
      %3785 = vrot.lane.b32.xlu0 %v3572, 24
      %v3786 = vpop.permute.xlu0 %3785
      %3787 = vrot.lane.b32.xlu0 %v3577, 24
      %v3788 = vpop.permute.xlu0 %3787
      %3789 = vrot.lane.b32.xlu0 %v3582, 24
      %v3790 = vpop.permute.xlu0 %3789
      %3791 = vrot.lane.b32.xlu0 %v3587, 24
      %v3792 = vpop.permute.xlu0 %3791
      %3793 = vrot.lane.b32.xlu0 %v3592, 24
      %v3794 = vpop.permute.xlu0 %3793
      %3795 = vrot.lane.b32.xlu0 %v3597, 24
      %v3796 = vpop.permute.xlu0 %3795
      %3797 = vrot.lane.b32.xlu0 %v3602, 24
      %v3798 = vpop.permute.xlu0 %3797
      %3799 = vrot.lane.b32.xlu0 %v3607, 24
      %v3800 = vpop.permute.xlu0 %3799
      %3801 = vrot.lane.b32.xlu0 %v3612, 24
      %v3802 = vpop.permute.xlu0 %3801
      %3803 = vrot.lane.b32.xlu0 %v3617, 24
      %v3804 = vpop.permute.xlu0 %3803
      %3805 = vrot.lane.b32.xlu0 %v3622, 24
      %v3806 = vpop.permute.xlu0 %3805
      %3807 = vrot.lane.b32.xlu0 %v3627, 24
      %v3808 = vpop.permute.xlu0 %3807
      %3809 = vrot.lane.b32.xlu0 %v3632, 24
      %v3810 = vpop.permute.xlu0 %3809
      %v3827 = vsel %vm1258, %v1711, %v3652
      %v3828 = vsel %vm1258, %v1716, %v3654
      %v3829 = vsel %vm1258, %v1721, %v3656
      %v3830 = vsel %vm1258, %v1726, %v3658
      %v3831 = vsel %vm1258, %v1731, %v3660
      %v3832 = vsel %vm1258, %v1736, %v3662
      %v3833 = vsel %vm1258, %v1741, %v3664
      %v3834 = vsel %vm1258, %v1746, %v3666
      %v3835 = vsel %vm1258, %v1751, %v3668
      %v3836 = vsel %vm1258, %v1756, %v3670
      %v3837 = vsel %vm1258, %v1761, %v3672
      %v3838 = vsel %vm1258, %v1766, %v3674
      %v3839 = vsel %vm1258, %v1771, %v3676
      %v3840 = vsel %vm1258, %v1776, %v3678
      %v3841 = vsel %vm1258, %v1781, %v3680
      %v3842 = vsel %vm1258, %v1786, %v3682
      %vm3843 = vcmask 130048
      %v3844 = vsel %vm3843, %v3827, %v3716
      %v3845 = vsel %vm3843, %v3828, %v3718
      %v3846 = vsel %vm3843, %v3829, %v3720
      %v3847 = vsel %vm3843, %v3830, %v3722
      %v3848 = vsel %vm3843, %v3831, %v3724
      %v3849 = vsel %vm3843, %v3832, %v3726
      %v3850 = vsel %vm3843, %v3833, %v3728
      %v3851 = vsel %vm3843, %v3834, %v3730
      %v3852 = vsel %vm3843, %v3835, %v3732
      %v3853 = vsel %vm3843, %v3836, %v3734
      %v3854 = vsel %vm3843, %v3837, %v3736
      %v3855 = vsel %vm3843, %v3838, %v3738
      %v3856 = vsel %vm3843, %v3839, %v3740
      %v3857 = vsel %vm3843, %v3840, %v3742
      %v3858 = vsel %vm3843, %v3841, %v3744
      %v3859 = vsel %vm3843, %v3842, %v3746
      %vm3860 = vcmask 195584
      %v3861 = vsel %vm3860, %v3844, %v3780
      %v3862 = vsel %vm3860, %v3845, %v3782
      %v3863 = vsel %vm3860, %v3846, %v3784
      %v3864 = vsel %vm3860, %v3847, %v3786
      %v3865 = vsel %vm3860, %v3848, %v3788
      %v3866 = vsel %vm3860, %v3849, %v3790
      %v3867 = vsel %vm3860, %v3850, %v3792
      %v3868 = vsel %vm3860, %v3851, %v3794
      %v3869 = vsel %vm3860, %v3852, %v3796
      %v3870 = vsel %vm3860, %v3853, %v3798
      %v3871 = vsel %vm3860, %v3854, %v3800
      %v3872 = vsel %vm3860, %v3855, %v3802
      %v3873 = vsel %vm3860, %v3856, %v3804
      %v3874 = vsel %vm3860, %v3857, %v3806
      %v3875 = vsel %vm3860, %v3858, %v3808
      %v3876 = vsel %vm3860, %v3859, %v3810
      %v3877 = vld [vmem:[%s9] sm:$0xff]
      %v3878 = vld [vmem:[%s9 + $0x8] sm:$0xff]
      %v3879 = vld [vmem:[%s9 + $0x10] sm:$0xff]
      %v3880 = vld [vmem:[%s9 + $0x18] sm:$0xff]
      %v3881 = vld [vmem:[%s10] sm:$0x1]
      %v3883 = vlaneseq
      %v3884 = vshrl.u32 %v3883, 7
      %v3885 = vsub.s32 0, %v3884
      %v3886 = vrot.slane %v3881, %v3885
      %v3889 = vsel %vm508, %v3861, 0
      %v3892 = vsel %vm508, %v3862, 0
      %v3895 = vsel %vm508, %v3863, 0
      %v3898 = vsel %vm508, %v3864, 0
      %v3901 = vsel %vm508, %v3865, 0
      %v3904 = vsel %vm508, %v3866, 0
      %v3907 = vsel %vm508, %v3867, 0
      %v3910 = vsel %vm508, %v3868, 0
      %v3913 = vsel %vm508, %v3869, 0
      %v3916 = vsel %vm508, %v3870, 0
      %v3919 = vsel %vm508, %v3871, 0
      %v3922 = vsel %vm508, %v3872, 0
      %v3925 = vsel %vm508, %v3873, 0
      %v3928 = vsel %vm508, %v3874, 0
      %v3931 = vsel %vm508, %v3875, 0
      %v3934 = vsel %vm508, %v3876, 0
      %3936 = vmatprep.subr.mxu0 0.0
      %3937 = vmatpush1.msra.mxu0 %v3877
      %3938 = vmatprep.subr.mxu0 0.0
      %3939 = vmatpush1.msra.mxu0 %v3878
      %3940 = vmatprep.subr.mxu0 0.0
      %3941 = vmatpush1.msra.mxu0 %v3879
      %3942 = vmatprep.subr.mxu0 0.0
      %3943 = vmatpush1.msra.mxu0 %v3880
      %3944 = vmatprep.subr.mxu0 0.0
      %3945 = vmatpush1.msra.mxu0 0.0
      %3946 = vmatprep.subr.mxu0 0.0
      %3947 = vmatpush1.msra.mxu0 0.0
      %3948 = vmatprep.subr.mxu0 0.0
      %3949 = vmatpush1.msra.mxu0 0.0
      %3950 = vmatprep.subr.mxu0 0.0
      %3951 = vmatpush1.msra.mxu0 0.0
      %3952 = vmatprep.subr.mxu0 0.0
      %3953 = vmatpush1.msra.mxu0 0.0
      %3954 = vmatprep.subr.mxu0 0.0
      %3955 = vmatpush1.msra.mxu0 0.0
      %3956 = vmatprep.subr.mxu0 0.0
      %3957 = vmatpush1.msra.mxu0 0.0
      %3958 = vmatprep.subr.mxu0 0.0
      %3959 = vmatpush1.msra.mxu0 0.0
      %3960 = vmatprep.subr.mxu0 0.0
      %3961 = vmatpush1.msra.mxu0 0.0
      %3962 = vmatprep.subr.mxu0 0.0
      %3963 = vmatpush1.msra.mxu0 0.0
      %3964 = vmatprep.subr.mxu0 0.0
      %3965 = vmatpush1.msra.mxu0 0.0
      %3966 = vmatprep.subr.mxu0 0.0
      %3967 = vmatpush1.msra.mxu0 0.0
      %3968 = vmatprep.subr.mxu0 0.0
      %3969 = vmatpush1.msra.mxu0 0.0
      %3970 = vmatprep.subr.mxu0 0.0
      %3971 = vmatpush1.msra.mxu0 0.0
      %3972 = vmatprep.subr.mxu0 0.0
      %3973 = vmatpush1.msra.mxu0 0.0
      %3974 = vmatprep.subr.mxu0 0.0
      %3975 = vmatpush1.msra.mxu0 0.0
      %3976 = vmatprep.subr.mxu0 0.0
      %3977 = vmatpush1.msra.mxu0 0.0
      %3978 = vmatprep.subr.mxu0 0.0
      %3979 = vmatpush1.msra.mxu0 0.0
      %3980 = vmatprep.subr.mxu0 0.0
      %3981 = vmatpush1.msra.mxu0 0.0
      %3982 = vmatprep.subr.mxu0 0.0
      %3983 = vmatpush1.msra.mxu0 0.0
      %3984 = vmatprep.subr.mxu0 0.0
      %3985 = vmatpush1.msra.mxu0 0.0
      %3986 = vmatprep.subr.mxu0 0.0
      %3987 = vmatpush1.msra.mxu0 0.0
      %3988 = vmatprep.subr.mxu0 0.0
      %3989 = vmatpush1.msra.mxu0 0.0
      %3990 = vmatprep.subr.mxu0 0.0
      %3991 = vmatpush1.msra.mxu0 0.0
      %3992 = vmatprep.subr.mxu0 0.0
      %3993 = vmatpush1.msra.mxu0 0.0
      %3994 = vmatprep.subr.mxu0 0.0
      %3995 = vmatpush1.msra.mxu0 0.0
      %3996 = vmatprep.subr.mxu0 0.0
      %3997 = vmatpush1.msra.mxu0 0.0
      %3998 = vmatprep.subr.mxu0 0.0
      %3999 = vmatpush1.msra.mxu0 0.0
      %4000 = vmatprep.mubr.f32.mxu0 0.0
      %4001 = vmatmul.mubr.f32.gmra.mrb[0].mxu0 %v3889
      %v4002 = vpop.f32.mrb[0].mxu0
      %v4003 = vadd.f32 %v3886, %v4002
      %v4004 = vpop.f32.mrb[0].mxu0
      %4005 = vmatprep.mubr.f32.mxu0 0.0
      %4006 = vmatmul.mubr.f32.gmra.mrb[0].mxu0 %v3892
      %v4007 = vpop.f32.mrb[0].mxu0
      %v4008 = vadd.f32 %v3886, %v4007
      %v4009 = vpop.f32.mrb[0].mxu0
      %4010 = vmatprep.mubr.f32.mxu0 0.0
      %4011 = vmatmul.mubr.f32.gmra.mrb[0].mxu0 %v3895
      %v4012 = vpop.f32.mrb[0].mxu0
      %v4013 = vadd.f32 %v3886, %v4012
      %v4014 = vpop.f32.mrb[0].mxu0
      %4015 = vmatprep.mubr.f32.mxu0 0.0
      %4016 = vmatmul.mubr.f32.gmra.mrb[0].mxu0 %v3898
      %v4017 = vpop.f32.mrb[0].mxu0
      %v4018 = vadd.f32 %v3886, %v4017
      %v4019 = vpop.f32.mrb[0].mxu0
      %4020 = vmatprep.mubr.f32.mxu0 0.0
      %4021 = vmatmul.mubr.f32.gmra.mrb[0].mxu0 %v3901
      %v4022 = vpop.f32.mrb[0].mxu0
      %v4023 = vadd.f32 %v3886, %v4022
      %v4024 = vpop.f32.mrb[0].mxu0
      %4025 = vmatprep.mubr.f32.mxu0 0.0
      %4026 = vmatmul.mubr.f32.gmra.mrb[0].mxu0 %v3904
      %v4027 = vpop.f32.mrb[0].mxu0
      %v4028 = vadd.f32 %v3886, %v4027
      %v4029 = vpop.f32.mrb[0].mxu0
      %4030 = vmatprep.mubr.f32.mxu0 0.0
      %4031 = vmatmul.mubr.f32.gmra.mrb[0].mxu0 %v3907
      %v4032 = vpop.f32.mrb[0].mxu0
      %v4033 = vadd.f32 %v3886, %v4032
      %v4034 = vpop.f32.mrb[0].mxu0
      %4035 = vmatprep.mubr.f32.mxu0 0.0
      %4036 = vmatmul.mubr.f32.gmra.mrb[0].mxu0 %v3910
      %v4037 = vpop.f32.mrb[0].mxu0
      %v4038 = vadd.f32 %v3886, %v4037
      %v4039 = vpop.f32.mrb[0].mxu0
      %4040 = vmatprep.mubr.f32.mxu0 0.0
      %4041 = vmatmul.mubr.f32.gmra.mrb[0].mxu0 %v3913
      %v4042 = vpop.f32.mrb[0].mxu0
      %v4043 = vadd.f32 %v3886, %v4042
      %v4044 = vpop.f32.mrb[0].mxu0
      %4045 = vmatprep.mubr.f32.mxu0 0.0
      %4046 = vmatmul.mubr.f32.gmra.mrb[0].mxu0 %v3916
      %v4047 = vpop.f32.mrb[0].mxu0
      %v4048 = vadd.f32 %v3886, %v4047
      %v4049 = vpop.f32.mrb[0].mxu0
      %4050 = vmatprep.mubr.f32.mxu0 0.0
      %4051 = vmatmul.mubr.f32.gmra.mrb[0].mxu0 %v3919
      %v4052 = vpop.f32.mrb[0].mxu0
      %v4053 = vadd.f32 %v3886, %v4052
      %v4054 = vpop.f32.mrb[0].mxu0
      %4055 = vmatprep.mubr.f32.mxu0 0.0
      %4056 = vmatmul.mubr.f32.gmra.mrb[0].mxu0 %v3922
      %v4057 = vpop.f32.mrb[0].mxu0
      %v4058 = vadd.f32 %v3886, %v4057
      %v4059 = vpop.f32.mrb[0].mxu0
      %4060 = vmatprep.mubr.f32.mxu0 0.0
      %4061 = vmatmul.mubr.f32.gmra.mrb[0].mxu0 %v3925
      %v4062 = vpop.f32.mrb[0].mxu0
      %v4063 = vadd.f32 %v3886, %v4062
      %v4064 = vpop.f32.mrb[0].mxu0
      %4065 = vmatprep.mubr.f32.mxu0 0.0
      %4066 = vmatmul.mubr.f32.gmra.mrb[0].mxu0 %v3928
      %v4067 = vpop.f32.mrb[0].mxu0
      %v4068 = vadd.f32 %v3886, %v4067
      %v4069 = vpop.f32.mrb[0].mxu0
      %4070 = vmatprep.mubr.f32.mxu0 0.0
      %4071 = vmatmul.mubr.f32.gmra.mrb[0].mxu0 %v3931
      %v4072 = vpop.f32.mrb[0].mxu0
      %v4073 = vadd.f32 %v3886, %v4072
      %v4074 = vpop.f32.mrb[0].mxu0
      %4075 = vmatprep.mubr.f32.mxu0 0.0
      %4076 = vmatmul.mubr.f32.gmra.mrb[0].mxu0 %v3934
      %v4077 = vpop.f32.mrb[0].mxu0
      %v4078 = vadd.f32 %v3886, %v4077
      %v4079 = vpop.f32.mrb[0].mxu0
      %4080 = vdwg.mxu0
      %v4081 = vmax.f32 %v4003, 0.0
      %v4082 = vmax.f32 %v4008, 0.0
      %v4083 = vmax.f32 %v4013, 0.0
      %v4084 = vmax.f32 %v4018, 0.0
      %v4085 = vmax.f32 %v4023, 0.0
      %v4086 = vmax.f32 %v4028, 0.0
      %v4087 = vmax.f32 %v4033, 0.0
      %v4088 = vmax.f32 %v4038, 0.0
      %v4089 = vmax.f32 %v4043, 0.0
      %v4090 = vmax.f32 %v4048, 0.0
      %v4091 = vmax.f32 %v4053, 0.0
      %v4092 = vmax.f32 %v4058, 0.0
      %v4093 = vmax.f32 %v4063, 0.0
      %v4094 = vmax.f32 %v4068, 0.0
      %v4095 = vmax.f32 %v4073, 0.0
      %v4096 = vmax.f32 %v4078, 0.0
      %v4097 = vld [vmem:[%s11] sm:$0xff]
      %v4098 = vld [vmem:[%s11 + $0x8] sm:$0xff]
      %v4099 = vld [vmem:[%s11 + $0x10] sm:$0xff]
      %v4100 = vld [vmem:[%s11 + $0x18] sm:$0xff]
      %v4101 = vld [vmem:[%s12] sm:$0x1]
      %v4103 = vlaneseq
      %v4104 = vshrl.u32 %v4103, 7
      %v4105 = vsub.s32 0, %v4104
      %v4106 = vrot.slane %v4101, %v4105
      %v4109 = vsel %vm508, %v4081, 0
      %v4112 = vsel %vm508, %v4082, 0
      %v4115 = vsel %vm508, %v4083, 0
      %v4118 = vsel %vm508, %v4084, 0
      %v4121 = vsel %vm508, %v4085, 0
      %v4124 = vsel %vm508, %v4086, 0
      %v4127 = vsel %vm508, %v4087, 0
      %v4130 = vsel %vm508, %v4088, 0
      %v4133 = vsel %vm508, %v4089, 0
      %v4136 = vsel %vm508, %v4090, 0
      %v4139 = vsel %vm508, %v4091, 0
      %v4142 = vsel %vm508, %v4092, 0
      %v4145 = vsel %vm508, %v4093, 0
      %v4148 = vsel %vm508, %v4094, 0
      %v4151 = vsel %vm508, %v4095, 0
      %v4154 = vsel %vm508, %v4096, 0
      %4156 = vmatprep.subr.mxu0 0.0
      %4157 = vmatpush1.msra.mxu0 %v4097
      %4158 = vmatprep.subr.mxu0 0.0
      %4159 = vmatpush1.msra.mxu0 %v4098
      %4160 = vmatprep.subr.mxu0 0.0
      %4161 = vmatpush1.msra.mxu0 %v4099
      %4162 = vmatprep.subr.mxu0 0.0
      %4163 = vmatpush1.msra.mxu0 %v4100
      %4164 = vmatprep.subr.mxu0 0.0
      %4165 = vmatpush1.msra.mxu0 0.0
      %4166 = vmatprep.subr.mxu0 0.0
      %4167 = vmatpush1.msra.mxu0 0.0
      %4168 = vmatprep.subr.mxu0 0.0
      %4169 = vmatpush1.msra.mxu0 0.0
      %4170 = vmatprep.subr.mxu0 0.0
      %4171 = vmatpush1.msra.mxu0 0.0
      %4172 = vmatprep.subr.mxu0 0.0
      %4173 = vmatpush1.msra.mxu0 0.0
      %4174 = vmatprep.subr.mxu0 0.0
      %4175 = vmatpush1.msra.mxu0 0.0
      %4176 = vmatprep.subr.mxu0 0.0
      %4177 = vmatpush1.msra.mxu0 0.0
      %4178 = vmatprep.subr.mxu0 0.0
      %4179 = vmatpush1.msra.mxu0 0.0
      %4180 = vmatprep.subr.mxu0 0.0
      %4181 = vmatpush1.msra.mxu0 0.0
      %4182 = vmatprep.subr.mxu0 0.0
      %4183 = vmatpush1.msra.mxu0 0.0
      %4184 = vmatprep.subr.mxu0 0.0
      %4185 = vmatpush1.msra.mxu0 0.0
      %4186 = vmatprep.subr.mxu0 0.0
      %4187 = vmatpush1.msra.mxu0 0.0
      %4188 = vmatprep.subr.mxu0 0.0
      %4189 = vmatpush1.msra.mxu0 0.0
      %4190 = vmatprep.subr.mxu0 0.0
      %4191 = vmatpush1.msra.mxu0 0.0
      %4192 = vmatprep.subr.mxu0 0.0
      %4193 = vmatpush1.msra.mxu0 0.0
      %4194 = vmatprep.subr.mxu0 0.0
      %4195 = vmatpush1.msra.mxu0 0.0
      %4196 = vmatprep.subr.mxu0 0.0
      %4197 = vmatpush1.msra.mxu0 0.0
      %4198 = vmatprep.subr.mxu0 0.0
      %4199 = vmatpush1.msra.mxu0 0.0
      %4200 = vmatprep.subr.mxu0 0.0
      %4201 = vmatpush1.msra.mxu0 0.0
      %4202 = vmatprep.subr.mxu0 0.0
      %4203 = vmatpush1.msra.mxu0 0.0
      %4204 = vmatprep.subr.mxu0 0.0
      %4205 = vmatpush1.msra.mxu0 0.0
      %4206 = vmatprep.subr.mxu0 0.0
      %4207 = vmatpush1.msra.mxu0 0.0
      %4208 = vmatprep.subr.mxu0 0.0
      %4209 = vmatpush1.msra.mxu0 0.0
      %4210 = vmatprep.subr.mxu0 0.0
      %4211 = vmatpush1.msra.mxu0 0.0
      %4212 = vmatprep.subr.mxu0 0.0
      %4213 = vmatpush1.msra.mxu0 0.0
      %4214 = vmatprep.subr.mxu0 0.0
      %4215 = vmatpush1.msra.mxu0 0.0
      %4216 = vmatprep.subr.mxu0 0.0
      %4217 = vmatpush1.msra.mxu0 0.0
      %4218 = vmatprep.subr.mxu0 0.0
      %4219 = vmatpush1.msra.mxu0 0.0
      %4220 = vmatprep.mubr.f32.mxu0 0.0
      %4221 = vmatmul.mubr.f32.gmra.mrb[0].mxu0 %v4109
      %v4222 = vpop.f32.mrb[0].mxu0
      %v4223 = vadd.f32 %v4106, %v4222
      %v4224 = vpop.f32.mrb[0].mxu0
      %4225 = vmatprep.mubr.f32.mxu0 0.0
      %4226 = vmatmul.mubr.f32.gmra.mrb[0].mxu0 %v4112
      %v4227 = vpop.f32.mrb[0].mxu0
      %v4228 = vadd.f32 %v4106, %v4227
      %v4229 = vpop.f32.mrb[0].mxu0
      %4230 = vmatprep.mubr.f32.mxu0 0.0
      %4231 = vmatmul.mubr.f32.gmra.mrb[0].mxu0 %v4115
      %v4232 = vpop.f32.mrb[0].mxu0
      %v4233 = vadd.f32 %v4106, %v4232
      %v4234 = vpop.f32.mrb[0].mxu0
      %4235 = vmatprep.mubr.f32.mxu0 0.0
      %4236 = vmatmul.mubr.f32.gmra.mrb[0].mxu0 %v4118
      %v4237 = vpop.f32.mrb[0].mxu0
      %v4238 = vadd.f32 %v4106, %v4237
      %v4239 = vpop.f32.mrb[0].mxu0
      %4240 = vmatprep.mubr.f32.mxu0 0.0
      %4241 = vmatmul.mubr.f32.gmra.mrb[0].mxu0 %v4121
      %v4242 = vpop.f32.mrb[0].mxu0
      %v4243 = vadd.f32 %v4106, %v4242
      %v4244 = vpop.f32.mrb[0].mxu0
      %4245 = vmatprep.mubr.f32.mxu0 0.0
      %4246 = vmatmul.mubr.f32.gmra.mrb[0].mxu0 %v4124
      %v4247 = vpop.f32.mrb[0].mxu0
      %v4248 = vadd.f32 %v4106, %v4247
      %v4249 = vpop.f32.mrb[0].mxu0
      %4250 = vmatprep.mubr.f32.mxu0 0.0
      %4251 = vmatmul.mubr.f32.gmra.mrb[0].mxu0 %v4127
      %v4252 = vpop.f32.mrb[0].mxu0
      %v4253 = vadd.f32 %v4106, %v4252
      %v4254 = vpop.f32.mrb[0].mxu0
      %4255 = vmatprep.mubr.f32.mxu0 0.0
      %4256 = vmatmul.mubr.f32.gmra.mrb[0].mxu0 %v4130
      %v4257 = vpop.f32.mrb[0].mxu0
      %v4258 = vadd.f32 %v4106, %v4257
      %v4259 = vpop.f32.mrb[0].mxu0
      %4260 = vmatprep.mubr.f32.mxu0 0.0
      %4261 = vmatmul.mubr.f32.gmra.mrb[0].mxu0 %v4133
      %v4262 = vpop.f32.mrb[0].mxu0
      %v4263 = vadd.f32 %v4106, %v4262
      %v4264 = vpop.f32.mrb[0].mxu0
      %4265 = vmatprep.mubr.f32.mxu0 0.0
      %4266 = vmatmul.mubr.f32.gmra.mrb[0].mxu0 %v4136
      %v4267 = vpop.f32.mrb[0].mxu0
      %v4268 = vadd.f32 %v4106, %v4267
      %v4269 = vpop.f32.mrb[0].mxu0
      %4270 = vmatprep.mubr.f32.mxu0 0.0
      %4271 = vmatmul.mubr.f32.gmra.mrb[0].mxu0 %v4139
      %v4272 = vpop.f32.mrb[0].mxu0
      %v4273 = vadd.f32 %v4106, %v4272
      %v4274 = vpop.f32.mrb[0].mxu0
      %4275 = vmatprep.mubr.f32.mxu0 0.0
      %4276 = vmatmul.mubr.f32.gmra.mrb[0].mxu0 %v4142
      %v4277 = vpop.f32.mrb[0].mxu0
      %v4278 = vadd.f32 %v4106, %v4277
      %v4279 = vpop.f32.mrb[0].mxu0
      %4280 = vmatprep.mubr.f32.mxu0 0.0
      %4281 = vmatmul.mubr.f32.gmra.mrb[0].mxu0 %v4145
      %v4282 = vpop.f32.mrb[0].mxu0
      %v4283 = vadd.f32 %v4106, %v4282
      %v4284 = vpop.f32.mrb[0].mxu0
      %4285 = vmatprep.mubr.f32.mxu0 0.0
      %4286 = vmatmul.mubr.f32.gmra.mrb[0].mxu0 %v4148
      %v4287 = vpop.f32.mrb[0].mxu0
      %v4288 = vadd.f32 %v4106, %v4287
      %v4289 = vpop.f32.mrb[0].mxu0
      %4290 = vmatprep.mubr.f32.mxu0 0.0
      %4291 = vmatmul.mubr.f32.gmra.mrb[0].mxu0 %v4151
      %v4292 = vpop.f32.mrb[0].mxu0
      %v4293 = vadd.f32 %v4106, %v4292
      %v4294 = vpop.f32.mrb[0].mxu0
      %4295 = vmatprep.mubr.f32.mxu0 0.0
      %4296 = vmatmul.mubr.f32.gmra.mrb[0].mxu0 %v4154
      %v4297 = vpop.f32.mrb[0].mxu0
      %v4298 = vadd.f32 %v4106, %v4297
      %v4299 = vpop.f32.mrb[0].mxu0
      %4300 = vdwg.mxu0
      %4301 = vst.msk [vmem:[%s480] sm:$0xff] %vm508, %v4223
      %4302 = vst.msk [vmem:[%s480 + $0x8] sm:$0xff] %vm508, %v4228
      %4303 = vst.msk [vmem:[%s480 + $0x10] sm:$0xff] %vm508, %v4233
      %4304 = vst.msk [vmem:[%s480 + $0x18] sm:$0xff] %vm508, %v4238
      %4305 = vst.msk [vmem:[%s480 + $0x20] sm:$0xff] %vm508, %v4243
      %4306 = vst.msk [vmem:[%s480 + $0x28] sm:$0xff] %vm508, %v4248
      %4307 = vst.msk [vmem:[%s480 + $0x30] sm:$0xff] %vm508, %v4253
      %4308 = vst.msk [vmem:[%s480 + $0x38] sm:$0xff] %vm508, %v4258
      %4309 = vst.msk [vmem:[%s480 + $0x40] sm:$0xff] %vm508, %v4263
      %4310 = vst.msk [vmem:[%s480 + $0x48] sm:$0xff] %vm508, %v4268
      %4311 = vst.msk [vmem:[%s480 + $0x50] sm:$0xff] %vm508, %v4273
      %4312 = vst.msk [vmem:[%s480 + $0x58] sm:$0xff] %vm508, %v4278
      %4313 = vst.msk [vmem:[%s480 + $0x60] sm:$0xff] %vm508, %v4283
      %4314 = vst.msk [vmem:[%s480 + $0x68] sm:$0xff] %vm508, %v4288
      %4315 = vst.msk [vmem:[%s480 + $0x70] sm:$0xff] %vm508, %v4293
      %4316 = vst.msk [vmem:[%s480 + $0x78] sm:$0xff] %vm508, %v4298
      %p4317 = scmp.lt.s32.totalorder %s24, 1
      %s4318 = scalar_select %p4317, %s24, 1
      %s4319 = smul.addr %s4318, 16
      %s4320 = smul.addr %s4319, 8
      %s4321 = scalar_lea.vmem %s13, %s4320
      // Predicated region
      $region73: #{tpu_custom_call.1} parent=71 // pred_check
        %p4322 = pneg %p330
      $region74: #{tpu_custom_call.1} parent=71 // pred_check_branch
        %4324 = sbr.rel (%p4322) target = $region76
      $region75: #{tpu_custom_call.1} parent=71 // pred_region
        _
      $region76: #{tpu_custom_call.1} parent=71 // pred_fallthru
        _
    $region72: #{tpu_custom_call.1} parent=5 // pred_fallthru
      _
    %p4325 = scmp.le.s32.totalorder 2, %s19
    // Predicated region
    $region77: #{tpu_custom_call.1} parent=5 // pred_check
      %p4326 = pneg %p4325
    $region78: #{tpu_custom_call.1} parent=5 // pred_check_branch
      %4328 = sbr.rel (%p4326) target = $region80
    $region79: #{tpu_custom_call.1} parent=5 // pred_region
      %s4329 = ssub.s32 %s19, 2
      // Predicated region
      $region81: #{tpu_custom_call.1} parent=79 // pred_check
        %p4330 = pneg %p336
      $region82: #{tpu_custom_call.1} parent=79 // pred_check_branch
        %4332 = sbr.rel (%p4330) target = $region84
      $region83: #{tpu_custom_call.1} parent=79 // pred_region
        %p4333 = scmp.lt.s32.totalorder %s25, 1
        %s4334 = scalar_select %p4333, %s25, 1
        %s4335 = smul.addr %s4334, 16
        %s4336 = smul.addr %s4335, 8
        %s4337 = scalar_lea.vmem %s13, %s4336
      $region84: #{tpu_custom_call.1} parent=79 // pred_fallthru
        _
    $region80: #{tpu_custom_call.1} parent=5 // pred_fallthru
      _
  $region6: #{tpu_custom_call.1} parent=0 // loop_footer
    %s23 = sadd.s32 1, %s19
  $region7: #{tpu_custom_call.1} parent=0 // loop_footer_branch
    %18 = sbr.rel target = $region3
  $region8: #{tpu_custom_call.1} parent=0 // loop_exit
    _

</llo_original>
